<compile_context>
chip_gen: v7x
topology: tpu7x:2x2x1
jax: 0.10.0
libtpu: 0.0.40
codegen_flags: <defaults>
</compile_context>

<pallas_src>
import functools
import math

import jax
import jax.numpy as jnp
from jax.experimental import pallas as pl
from jax.experimental.pallas import tpu as pltpu

_F32 = jnp.float32
_BF16 = jnp.bfloat16


# ---------------------------------------------------------------------------
# The fused per-batch kernel
# ---------------------------------------------------------------------------
def _fused_layer_kernel(*refs, nhead, d_model, split, eps, has_gmask):
    x_ref = refs[0]            # (1, S, D)  f32   this batch element
    lmask_ref = refs[1]        # (H, S, S)  bf16  this batch's additive mask
    wi = 2
    gmask_ref = None
    if has_gmask:              # trace-time branch: no mask materialized when None
        gmask_ref = refs[2]
        wi = 3
    (la_wq, la_wk, la_wv, la_bq, la_bk, la_bv, la_wo, la_bo,
     ga_wq, ga_wk, ga_wv, ga_bq, ga_bk, ga_bv, ga_wo, ga_bo,
     ln1_g, ln1_b, ln2_g, ln2_b,
     w1_pm, b1_pm, w2_pm, b2_pm,
     w1_vm, b1_vm, w2_vm, b2_vm,
     ln3p_g, ln3p_b, ln3v_g, ln3v_b) = refs[wi:wi + 32]
    o_ref = refs[wi + 32]      # (1, S, D)  f32

    x = x_ref[0]               # (S, D) f32
    s_len = x.shape[0]

    def add_ln(a, res, g_ref, b_ref):
        # y = LayerNorm(a + res) over last dim (biased variance, torch.nn.LayerNorm).
        y = a + res
        mu = jnp.mean(y, axis=-1, keepdims=True)
        var = jnp.mean((y - mu) ** 2, axis=-1, keepdims=True)
        return (y - mu) * jax.lax.rsqrt(var + eps) * g_ref[...] + b_ref[...]

    def self_attn(xin, wq, wk, wv, bq, bk, bv, wo, bo, mask_ref):
        x_bf = xin.astype(_BF16)     # cast once; all matmuls bf16 operands, f32 acc

        def head_body(h, acc):
            # Per-head projections from per-head packed weights — no lane slices.
            q = jnp.dot(x_bf, wq[h], preferred_element_type=_F32) + bq[h]
            k = jnp.dot(x_bf, wk[h], preferred_element_type=_F32) + bk[h]
            v = jnp.dot(x_bf, wv[h], preferred_element_type=_F32) + bv[h]
            # scores = q @ k^T (contract over Dh); 1/sqrt(Dh) already folded into q.
            s = jax.lax.dot_general(
                q.astype(_BF16), k.astype(_BF16),
                dimension_numbers=(((1,), (1,)), ((), ())),
                preferred_element_type=_F32)                         # (S, S) f32
            if mask_ref is not None:                                 # trace-time
                s = s + mask_ref[h].astype(_F32)
            # softmax kept in f32; exact normalization for PyTorch parity.
            s = s - jnp.max(s, axis=-1, keepdims=True)
            p = jnp.exp(s)
            p = p / jnp.sum(p, axis=-1, keepdims=True)
            o_h = jnp.dot(p.astype(_BF16), v.astype(_BF16),
                          preferred_element_type=_F32)               # (S, Dh)
            # Accumulate the (linear) out-projection per head — no concat.
            return acc + jnp.dot(o_h.astype(_BF16), wo[h],
                                 preferred_element_type=_F32)

        acc0 = jnp.zeros((s_len, d_model), _F32)
        acc = jax.lax.fori_loop(0, nhead, head_body, acc0)
        return acc + bo[...]

    def ffn(xin, w1_ref, b1_ref, w2_ref, b2_ref):
        hdn = jnp.dot(xin.astype(_BF16), w1_ref[...],
                      preferred_element_type=_F32) + b1_ref[...]
        hdn = jnp.maximum(hdn, 0.0)                                  # relu
        return jnp.dot(hdn.astype(_BF16), w2_ref[...],
                       preferred_element_type=_F32) + b2_ref[...]

    # local attention block + norm1
    x1 = add_ln(x, self_attn(x, la_wq, la_wk, la_wv, la_bq, la_bk, la_bv,
                             la_wo, la_bo, lmask_ref), ln1_g, ln1_b)
    # global attention block + norm2
    x2 = add_ln(x1, self_attn(x1, ga_wq, ga_wk, ga_wv, ga_bq, ga_bk, ga_bv,
                              ga_wo, ga_bo, gmask_ref), ln2_g, ln2_b)

    # split feed-forward along the sequence axis (batch_first=False semantics)
    x_pm = x2[:split]
    x_vm = x2[split:]
    y_pm = add_ln(x_pm, ffn(x_pm, w1_pm, b1_pm, w2_pm, b2_pm), ln3p_g, ln3p_b)
    y_vm = add_ln(x_vm, ffn(x_vm, w1_vm, b1_vm, w2_vm, b2_vm), ln3v_g, ln3v_b)

    # Two direct stores — no concatenated (S, D) temporary.
    o_ref[0, :split, :] = y_pm
    o_ref[0, split:, :] = y_vm


# ---------------------------------------------------------------------------
# Wrapper: one pallas_call for the whole layer
# ---------------------------------------------------------------------------
def decoder_layer_forward(tgt, local_mask, packed_params, *, nhead, split_point,
                          global_mask=None, eps=1e-5, single_buffer_weights=True):
    s, b, d = tgt.shape
    has_gmask = global_mask is not None

    # Batch-first relayout so each grid step gets a contiguous lane-dense (1,S,D)
    # slab.  TODO(synk): when stacking layers, keep activations batch-first
    # end-to-end so this HBM transpose is paid once per model, not per layer.
    x_bsd = jnp.transpose(tgt, (1, 0, 2)).astype(_F32)

    inputs = [x_bsd, local_mask.astype(_BF16)]        # bf16 mask: halves mask DMA
    x_spec = pl.BlockSpec((1, s, d), lambda i: (i, 0, 0))
    mask_spec = pl.BlockSpec((nhead, s, s), lambda i: (i, 0, 0))
    in_specs = [x_spec, mask_spec]
    if has_gmask:
        gm = global_mask
        if gm.ndim == 2:                              # (S, S) -> (B*H, S, S)
            gm = jnp.broadcast_to(gm, (b * nhead, s, s))
        inputs.append(gm.astype(_BF16))
        in_specs.append(mask_spec)

    # Weights / LN params never change across grid steps: single-buffer them so
    # the pipeliner does not double their VMEM footprint.
    w_kwargs = dict(pipeline_mode=pl.Buffered(1)) if single_buffer_weights else {}
    for w in packed_params:
        inputs.append(w)
        in_specs.append(
            pl.BlockSpec(w.shape, lambda i, nd=w.ndim: (0,) * nd, **w_kwargs))

    kernel = functools.partial(
        _fused_layer_kernel, nhead=nhead, d_model=d,
        split=split_point, eps=eps, has_gmask=has_gmask)

    # ---- explicit VMEM budget + cost estimate -------------------------------
    def nbytes(a):
        return a.size * a.dtype.itemsize

    dff = max(w.shape[-1] for w in packed_params if w.ndim == 2)
    weight_bytes = sum(nbytes(w) for w in packed_params)
    stream_bytes = 2 * (2 * s * d * 4                       # x in + out, double-buffered
                        + (2 if has_gmask else 1) * nhead * s * s * 2)
    work_bytes = 8 * s * d * 4 + 2 * s * s * 4 + 2 * s * dff * 4
    vmem_needed = ((1 if single_buffer_weights else 2) * weight_bytes
                   + stream_bytes + work_bytes)
    vmem_limit = int(min(max(2 * vmem_needed, 32 * 1024 * 1024), 64 * 1024 * 1024))

    attn_flops = 2 * (2 * s * d * 3 * d      # q/k/v projections
                      + 2 * s * s * d        # scores
                      + 2 * s * s * d        # p @ v
                      + 2 * s * d * d)       # out projection
    ffn_flops = 4 * s * d * dff
    cost = pl.CostEstimate(
        flops=b * (attn_flops + ffn_flops),
        transcendentals=b * 2 * nhead * s * s,
        bytes_accessed=sum(nbytes(a) for a in inputs) + b * s * d * 4)

    out_bsd = pl.pallas_call(
        kernel,
        out_shape=jax.ShapeDtypeStruct((b, s, d), _F32),
        grid=(b,),
        in_specs=in_specs,
        out_specs=pl.BlockSpec((1, s, d), lambda i: (i, 0, 0)),
        compiler_params=pltpu.CompilerParams(
            dimension_semantics=("parallel",),
            vmem_limit_bytes=vmem_limit),
        cost_estimate=cost,
    )(*inputs)

    return jnp.transpose(out_bsd, (1, 0, 2)), None     # need_attn_weights=False


# ---------------------------------------------------------------------------
# Parameters (PyTorch layout) and one-time packing (outside jit)
# ---------------------------------------------------------------------------
def init_params(key, d_model, nhead, dim_feedforward):
    keys = jax.random.split(key, 16)
    kit = iter(keys)

    def w(shape, scale=0.02):
        return jax.random.normal(next(kit), shape, _F32) * scale

    def attn_params():
        return {
            "in_w": w((3 * d_model, d_model)),        # in_proj_weight (PyTorch layout)
            "in_b": jnp.zeros((3 * d_model,), _F32),
            "out_w": w((d_model, d_model)),           # out_proj.weight
            "out_b": jnp.zeros((d_model,), _F32),
        }

    params = {
        "local_attn": attn_params(),
        "global_attn": attn_params(),
        "w1_pm": w((dim_feedforward, d_model)),
        "b1_pm": jnp.zeros((dim_feedforward,), _F32),
        "w2_pm": w((d_model, dim_feedforward)),
        "b2_pm": jnp.zeros((d_model,), _F32),
        "w1_vm": w((dim_feedforward, d_model)),
        "b1_vm": jnp.zeros((dim_feedforward,), _F32),
        "w2_vm": w((d_model, dim_feedforward)),
        "b2_vm": jnp.zeros((d_model,), _F32),
    }
    for name in ("ln1", "ln2", "ln3_pm", "ln3_vm"):
        params[name + "_g"] = jnp.ones((d_model,), _F32)
        params[name + "_b"] = jnp.zeros((d_model,), _F32)
    return params


def pack_params(p, *, nhead):
    """One-time packing (outside jit):
       * attention weights repacked PER HEAD — Wq/Wk/Wv: (H, D, Dh) bf16,
         out-proj: (H, Dh, D) bf16; 1/sqrt(Dh) folded into the q rows;
       * FFN weights pre-transposed to (Din, Dout) bf16;
       * biases / LayerNorm params kept in f32 for exact adds/normalization.
    """
    d = p["ln1_g"].shape[0]
    dh = d // nhead
    scale = 1.0 / math.sqrt(dh)

    def attn(ap):
        iw = jnp.asarray(ap["in_w"], _F32)
        ib = jnp.asarray(ap["in_b"], _F32)
        ow = jnp.asarray(ap["out_w"], _F32)
        ob = jnp.asarray(ap["out_b"], _F32)

        def head_w(slab, sc=1.0):     # (D_out, D_in) -> (H, D_in, Dh)
            return (slab * sc).reshape(nhead, dh, d).transpose(0, 2, 1).astype(_BF16)

        def head_b(slab, sc=1.0):     # (D,) -> (H, 1, Dh)
            return (slab * sc).reshape(nhead, 1, dh).astype(_F32)

        wq, wk, wv = head_w(iw[:d], scale), head_w(iw[d:2 * d]), head_w(iw[2 * d:])
        bq, bk, bv = head_b(ib[:d], scale), head_b(ib[d:2 * d]), head_b(ib[2 * d:])
        wo = ow.T.reshape(nhead, dh, d).astype(_BF16)   # (H, Dh, D)
        bo = ob.reshape(1, d).astype(_F32)
        return [wq, wk, wv, bq, bk, bv, wo, bo]

    def lin_w(w):   # PyTorch (Dout, Din) -> (Din, Dout) bf16
        return jnp.asarray(w, _F32).T.astype(_BF16)

    def row(v):
        return jnp.asarray(v, _F32).reshape(1, -1)

    packed = (
        attn(p["local_attn"]) + attn(p["global_attn"]) + [
            row(p["ln1_g"]), row(p["ln1_b"]), row(p["ln2_g"]), row(p["ln2_b"]),
            lin_w(p["w1_pm"]), row(p["b1_pm"]), lin_w(p["w2_pm"]), row(p["b2_pm"]),
            lin_w(p["w1_vm"]), row(p["b1_vm"]), lin_w(p["w2_vm"]), row(p["b2_vm"]),
            row(p["ln3_pm_g"]), row(p["ln3_pm_b"]),
            row(p["ln3_vm_g"]), row(p["ln3_vm_b"]),
        ])
    return packed


# ---------------------------------------------------------------------------
# Pure-JAX reference (mirrors the PyTorch module, eval mode) for validation
# ---------------------------------------------------------------------------
def reference_forward(tgt, local_mask, params, *, nhead, split_point,
                      global_mask=None, eps=1e-5):
    s, b, d = tgt.shape
    dh = d // nhead
    scale = 1.0 / math.sqrt(dh)

    def mha(x, ap, mask):
        xf = x.reshape(s * b, d)
        qkv = xf @ ap["in_w"].T + ap["in_b"]
        q, k, v = jnp.split(qkv, 3, axis=-1)

        def heads(t):
            return t.reshape(s, b * nhead, dh).transpose(1, 0, 2)

        qh, kh, vh = heads(q) * scale, heads(k), heads(v)
        sc = jnp.einsum("bqd,bkd->bqk", qh, kh)
        if mask is not None:
            sc = sc + mask
        p = jax.nn.softmax(sc, axis=-1)
        o = jnp.einsum("bqk,bkd->bqd", p, vh)
        o = o.transpose(1, 0, 2).reshape(s * b, d)
        return (o @ ap["out_w"].T + ap["out_b"]).reshape(s, b, d)

    def ln(x, g, bb):
        mu = jnp.mean(x, -1, keepdims=True)
        var = jnp.mean((x - mu) ** 2, -1, keepdims=True)
        return (x - mu) / jnp.sqrt(var + eps) * g + bb

    def ffn(xp, w1, b1, w2, b2):
        return jnp.maximum(xp @ w1.T + b1, 0.0) @ w2.T + b2

    x = ln(tgt + mha(tgt, params["local_attn"], local_mask),
           params["ln1_g"], params["ln1_b"])
    x = ln(x + mha(x, params["global_attn"], global_mask),
           params["ln2_g"], params["ln2_b"])
    sp = split_point
    y_pm = ln(x[:sp] + ffn(x[:sp], params["w1_pm"], params["b1_pm"],
                           params["w2_pm"], params["b2_pm"]),
              params["ln3_pm_g"], params["ln3_pm_b"])
    y_vm = ln(x[sp:] + ffn(x[sp:], params["w1_vm"], params["b1_vm"],
                           params["w2_vm"], params["b2_vm"]),
              params["ln3_vm_g"], params["ln3_vm_b"])
    return jnp.concatenate([y_pm, y_vm], axis=0)


if __name__ == "__main__":
    S, B, D, H, DFF, SPLIT = 8, 2, 32, 4, 64, 4

    key = jax.random.PRNGKey(0)
    k_tgt, k_mask, k_params = jax.random.split(key, 3)

    tgt = jax.random.normal(k_tgt, (S, B, D), _F32)                    # (seq, batch, d_model)
    local_mask = 0.1 * jax.random.normal(k_mask, (B * H, S, S), _F32)  # additive 3-D mask
    params = init_params(k_params, D, H, DFF)
    packed = pack_params(params, nhead=H)   # per-head bf16 weights, packed once outside jit

    def build_fwd(single_buffer_weights):
        return jax.jit(functools.partial(
            decoder_layer_forward, nhead=H, split_point=SPLIT, global_mask=None,
            single_buffer_weights=single_buffer_weights))

    try:
        fwd = build_fwd(True)
        out, attn_w = fwd(tgt, local_mask, packed)
        jax.block_until_ready(out)
    except Exception:
        # Fallback for Pallas builds that reject single-buffered (Buffered(1))
        # constant blocks — identical math, default double-buffered weights.
        fwd = build_fwd(False)
        out, attn_w = fwd(tgt, local_mask, packed)
        jax.block_until_ready(out)

    assert out.shape == (S, B, D) and attn_w is None
    assert bool(jnp.all(jnp.isfinite(out)))

    # Validate against the plain-JAX (f32) reference of the PyTorch math.
    # Tolerance covers bf16 matmul operands / bf16 mask streaming.
    ref = reference_forward(tgt, local_mask, params, nhead=H,
                            split_point=SPLIT, global_mask=None)
    assert bool(jnp.allclose(out, ref, rtol=2e-2, atol=2e-2))

    print("KERNEL_OK")
</pallas_src>

<mosaic_0001>
module attributes {stable_mosaic.version = 11 : i64} {
  func.func @_fused_layer_kernel(%arg0: i32, %arg1: memref<1x8x32xf32, #tpu.memory_space<vmem>>, %arg2: memref<4x8x8xbf16, #tpu.memory_space<vmem>>, %arg3: memref<4x32x8xbf16, #tpu.memory_space<vmem>>, %arg4: memref<4x32x8xbf16, #tpu.memory_space<vmem>>, %arg5: memref<4x32x8xbf16, #tpu.memory_space<vmem>>, %arg6: memref<4x1x8xf32, #tpu.memory_space<vmem>>, %arg7: memref<4x1x8xf32, #tpu.memory_space<vmem>>, %arg8: memref<4x1x8xf32, #tpu.memory_space<vmem>>, %arg9: memref<4x8x32xbf16, #tpu.memory_space<vmem>>, %arg10: memref<1x32xf32, #tpu.memory_space<vmem>>, %arg11: memref<4x32x8xbf16, #tpu.memory_space<vmem>>, %arg12: memref<4x32x8xbf16, #tpu.memory_space<vmem>>, %arg13: memref<4x32x8xbf16, #tpu.memory_space<vmem>>, %arg14: memref<4x1x8xf32, #tpu.memory_space<vmem>>, %arg15: memref<4x1x8xf32, #tpu.memory_space<vmem>>, %arg16: memref<4x1x8xf32, #tpu.memory_space<vmem>>, %arg17: memref<4x8x32xbf16, #tpu.memory_space<vmem>>, %arg18: memref<1x32xf32, #tpu.memory_space<vmem>>, %arg19: memref<1x32xf32, #tpu.memory_space<vmem>>, %arg20: memref<1x32xf32, #tpu.memory_space<vmem>>, %arg21: memref<1x32xf32, #tpu.memory_space<vmem>>, %arg22: memref<1x32xf32, #tpu.memory_space<vmem>>, %arg23: memref<32x64xbf16, #tpu.memory_space<vmem>>, %arg24: memref<1x64xf32, #tpu.memory_space<vmem>>, %arg25: memref<64x32xbf16, #tpu.memory_space<vmem>>, %arg26: memref<1x32xf32, #tpu.memory_space<vmem>>, %arg27: memref<32x64xbf16, #tpu.memory_space<vmem>>, %arg28: memref<1x64xf32, #tpu.memory_space<vmem>>, %arg29: memref<64x32xbf16, #tpu.memory_space<vmem>>, %arg30: memref<1x32xf32, #tpu.memory_space<vmem>>, %arg31: memref<1x32xf32, #tpu.memory_space<vmem>>, %arg32: memref<1x32xf32, #tpu.memory_space<vmem>>, %arg33: memref<1x32xf32, #tpu.memory_space<vmem>>, %arg34: memref<1x32xf32, #tpu.memory_space<vmem>>, %arg35: memref<1x8x32xf32, #tpu.memory_space<vmem>>) attributes {dimension_semantics = [#tpu.dimension_semantics<parallel>], iteration_bounds = array<i64: 2>, scalar_prefetch = 0 : i64, scratch_operands = 0 : i64, tpu.core_type = #tpu.core_type<tc>, window_params = [{transform_indices = @transform_0, window_bounds = array<i64: 1, 8, 32>}, {transform_indices = @transform_1, window_bounds = array<i64: 4, 8, 8>}, {pipeline_mode = #tpu.pipeline_mode<synchronous>, transform_indices = @transform_2, window_bounds = array<i64: 4, 32, 8>}, {pipeline_mode = #tpu.pipeline_mode<synchronous>, transform_indices = @transform_3, window_bounds = array<i64: 4, 32, 8>}, {pipeline_mode = #tpu.pipeline_mode<synchronous>, transform_indices = @transform_4, window_bounds = array<i64: 4, 32, 8>}, {pipeline_mode = #tpu.pipeline_mode<synchronous>, transform_indices = @transform_5, window_bounds = array<i64: 4, 1, 8>}, {pipeline_mode = #tpu.pipeline_mode<synchronous>, transform_indices = @transform_6, window_bounds = array<i64: 4, 1, 8>}, {pipeline_mode = #tpu.pipeline_mode<synchronous>, transform_indices = @transform_7, window_bounds = array<i64: 4, 1, 8>}, {pipeline_mode = #tpu.pipeline_mode<synchronous>, transform_indices = @transform_8, window_bounds = array<i64: 4, 8, 32>}, {pipeline_mode = #tpu.pipeline_mode<synchronous>, transform_indices = @transform_9, window_bounds = array<i64: 1, 32>}, {pipeline_mode = #tpu.pipeline_mode<synchronous>, transform_indices = @transform_10, window_bounds = array<i64: 4, 32, 8>}, {pipeline_mode = #tpu.pipeline_mode<synchronous>, transform_indices = @transform_11, window_bounds = array<i64: 4, 32, 8>}, {pipeline_mode = #tpu.pipeline_mode<synchronous>, transform_indices = @transform_12, window_bounds = array<i64: 4, 32, 8>}, {pipeline_mode = #tpu.pipeline_mode<synchronous>, transform_indices = @transform_13, window_bounds = array<i64: 4, 1, 8>}, {pipeline_mode = #tpu.pipeline_mode<synchronous>, transform_indices = @transform_14, window_bounds = array<i64: 4, 1, 8>}, {pipeline_mode = #tpu.pipeline_mode<synchronous>, transform_indices = @transform_15, window_bounds = array<i64: 4, 1, 8>}, {pipeline_mode = #tpu.pipeline_mode<synchronous>, transform_indices = @transform_16, window_bounds = array<i64: 4, 8, 32>}, {pipeline_mode = #tpu.pipeline_mode<synchronous>, transform_indices = @transform_17, window_bounds = array<i64: 1, 32>}, {pipeline_mode = #tpu.pipeline_mode<synchronous>, transform_indices = @transform_18, window_bounds = array<i64: 1, 32>}, {pipeline_mode = #tpu.pipeline_mode<synchronous>, transform_indices = @transform_19, window_bounds = array<i64: 1, 32>}, {pipeline_mode = #tpu.pipeline_mode<synchronous>, transform_indices = @transform_20, window_bounds = array<i64: 1, 32>}, {pipeline_mode = #tpu.pipeline_mode<synchronous>, transform_indices = @transform_21, window_bounds = array<i64: 1, 32>}, {pipeline_mode = #tpu.pipeline_mode<synchronous>, transform_indices = @transform_22, window_bounds = array<i64: 32, 64>}, {pipeline_mode = #tpu.pipeline_mode<synchronous>, transform_indices = @transform_23, window_bounds = array<i64: 1, 64>}, {pipeline_mode = #tpu.pipeline_mode<synchronous>, transform_indices = @transform_24, window_bounds = array<i64: 64, 32>}, {pipeline_mode = #tpu.pipeline_mode<synchronous>, transform_indices = @transform_25, window_bounds = array<i64: 1, 32>}, {pipeline_mode = #tpu.pipeline_mode<synchronous>, transform_indices = @transform_26, window_bounds = array<i64: 32, 64>}, {pipeline_mode = #tpu.pipeline_mode<synchronous>, transform_indices = @transform_27, window_bounds = array<i64: 1, 64>}, {pipeline_mode = #tpu.pipeline_mode<synchronous>, transform_indices = @transform_28, window_bounds = array<i64: 64, 32>}, {pipeline_mode = #tpu.pipeline_mode<synchronous>, transform_indices = @transform_29, window_bounds = array<i64: 1, 32>}, {pipeline_mode = #tpu.pipeline_mode<synchronous>, transform_indices = @transform_30, window_bounds = array<i64: 1, 32>}, {pipeline_mode = #tpu.pipeline_mode<synchronous>, transform_indices = @transform_31, window_bounds = array<i64: 1, 32>}, {pipeline_mode = #tpu.pipeline_mode<synchronous>, transform_indices = @transform_32, window_bounds = array<i64: 1, 32>}, {pipeline_mode = #tpu.pipeline_mode<synchronous>, transform_indices = @transform_33, window_bounds = array<i64: 1, 32>}, {transform_indices = @transform_34, window_bounds = array<i64: 1, 8, 32>}]} {
    %c0 = arith.constant 0 : index
    %c0_0 = arith.constant 0 : index
    %c0_1 = arith.constant 0 : index
    %0 = vector.load %arg1[%c0, %c0_0, %c0_1] : memref<1x8x32xf32, #tpu.memory_space<vmem>>, vector<1x8x32xf32>
    %1 = vector.shape_cast %0 : vector<1x8x32xf32> to vector<8x32xf32>
    %2 = arith.truncf %1 : vector<8x32xf32> to vector<8x32xbf16>
    %cst = arith.constant 0.000000e+00 : f32
    %3 = vector.broadcast %cst : f32 to vector<8x32xf32>
    %c0_i32 = arith.constant 0 : i32
    %c4_i32 = arith.constant 4 : i32
    %4 = arith.addi %c0_i32, %c4_i32 : i32
    %c1_i32 = arith.constant 1 : i32
    %5 = scf.for %arg36 = %c0_i32 to %4 step %c1_i32 iter_args(%arg37 = %3) -> (vector<8x32xf32>)  : i32 {
      %152 = arith.index_cast %arg36 : i32 to index
      %c0_75 = arith.constant 0 : index
      %c0_76 = arith.constant 0 : index
      %153 = vector.load %arg3[%152, %c0_75, %c0_76] : memref<4x32x8xbf16, #tpu.memory_space<vmem>>, vector<1x32x8xbf16>
      %154 = vector.shape_cast %153 : vector<1x32x8xbf16> to vector<32x8xbf16>
      %cst_77 = arith.constant dense<0.000000e+00> : vector<8x8xf32>
      %155 = tpu.matmul %2, %154, %cst_77 {dimension_numbers = #tpu.dot_dimension_numbers<[1], [0], [0], [1], [0, 0, 1, 1], [], []>} : vector<8x32xbf16>, vector<32x8xbf16>, vector<8x8xf32> -> vector<8x8xf32>
      %156 = arith.index_cast %arg36 : i32 to index
      %c0_78 = arith.constant 0 : index
      %c0_79 = arith.constant 0 : index
      %157 = vector.load %arg6[%156, %c0_78, %c0_79] : memref<4x1x8xf32, #tpu.memory_space<vmem>>, vector<1x1x8xf32>
      %158 = vector.shape_cast %157 : vector<1x1x8xf32> to vector<1x8xf32>
      %159 = vector.broadcast %158 : vector<1x8xf32> to vector<8x8xf32>
      %160 = arith.addf %155, %159 : vector<8x8xf32>
      %161 = arith.index_cast %arg36 : i32 to index
      %c0_80 = arith.constant 0 : index
      %c0_81 = arith.constant 0 : index
      %162 = vector.load %arg4[%161, %c0_80, %c0_81] : memref<4x32x8xbf16, #tpu.memory_space<vmem>>, vector<1x32x8xbf16>
      %163 = vector.shape_cast %162 : vector<1x32x8xbf16> to vector<32x8xbf16>
      %cst_82 = arith.constant dense<0.000000e+00> : vector<8x8xf32>
      %164 = tpu.matmul %2, %163, %cst_82 {dimension_numbers = #tpu.dot_dimension_numbers<[1], [0], [0], [1], [0, 0, 1, 1], [], []>} : vector<8x32xbf16>, vector<32x8xbf16>, vector<8x8xf32> -> vector<8x8xf32>
      %165 = arith.index_cast %arg36 : i32 to index
      %c0_83 = arith.constant 0 : index
      %c0_84 = arith.constant 0 : index
      %166 = vector.load %arg7[%165, %c0_83, %c0_84] : memref<4x1x8xf32, #tpu.memory_space<vmem>>, vector<1x1x8xf32>
      %167 = vector.shape_cast %166 : vector<1x1x8xf32> to vector<1x8xf32>
      %168 = vector.broadcast %167 : vector<1x8xf32> to vector<8x8xf32>
      %169 = arith.addf %164, %168 : vector<8x8xf32>
      %170 = arith.index_cast %arg36 : i32 to index
      %c0_85 = arith.constant 0 : index
      %c0_86 = arith.constant 0 : index
      %171 = vector.load %arg5[%170, %c0_85, %c0_86] : memref<4x32x8xbf16, #tpu.memory_space<vmem>>, vector<1x32x8xbf16>
      %172 = vector.shape_cast %171 : vector<1x32x8xbf16> to vector<32x8xbf16>
      %cst_87 = arith.constant dense<0.000000e+00> : vector<8x8xf32>
      %173 = tpu.matmul %2, %172, %cst_87 {dimension_numbers = #tpu.dot_dimension_numbers<[1], [0], [0], [1], [0, 0, 1, 1], [], []>} : vector<8x32xbf16>, vector<32x8xbf16>, vector<8x8xf32> -> vector<8x8xf32>
      %174 = arith.index_cast %arg36 : i32 to index
      %c0_88 = arith.constant 0 : index
      %c0_89 = arith.constant 0 : index
      %175 = vector.load %arg8[%174, %c0_88, %c0_89] : memref<4x1x8xf32, #tpu.memory_space<vmem>>, vector<1x1x8xf32>
      %176 = vector.shape_cast %175 : vector<1x1x8xf32> to vector<1x8xf32>
      %177 = vector.broadcast %176 : vector<1x8xf32> to vector<8x8xf32>
      %178 = arith.addf %173, %177 : vector<8x8xf32>
      %179 = arith.truncf %160 : vector<8x8xf32> to vector<8x8xbf16>
      %180 = arith.truncf %169 : vector<8x8xf32> to vector<8x8xbf16>
      %cst_90 = arith.constant dense<0.000000e+00> : vector<8x8xf32>
      %181 = tpu.matmul %179, %180, %cst_90 {dimension_numbers = #tpu.dot_dimension_numbers<[1], [1], [0], [0], [0, 0, 1, 0], [], []>} : vector<8x8xbf16>, vector<8x8xbf16>, vector<8x8xf32> -> vector<8x8xf32>
      %182 = arith.index_cast %arg36 : i32 to index
      %c0_91 = arith.constant 0 : index
      %c0_92 = arith.constant 0 : index
      %183 = vector.load %arg2[%182, %c0_91, %c0_92] : memref<4x8x8xbf16, #tpu.memory_space<vmem>>, vector<1x8x8xbf16>
      %184 = vector.shape_cast %183 : vector<1x8x8xbf16> to vector<8x8xbf16>
      %185 = arith.extf %184 : vector<8x8xbf16> to vector<8x8xf32>
      %186 = arith.addf %181, %185 : vector<8x8xf32>
      %cst_93 = arith.constant dense<0xFF800000> : vector<8xf32>
      %187 = vector.multi_reduction <maximumf>, %186, %cst_93 [1] : vector<8x8xf32> to vector<8xf32>
      %188 = vector.shape_cast %187 : vector<8xf32> to vector<8x1xf32>
      %189 = vector.broadcast %188 : vector<8x1xf32> to vector<8x8xf32>
      %190 = arith.subf %186, %189 : vector<8x8xf32>
      %191 = math.exp %190 : vector<8x8xf32>
      %cst_94 = arith.constant dense<0.000000e+00> : vector<8xf32>
      %192 = vector.multi_reduction <add>, %191, %cst_94 [1] : vector<8x8xf32> to vector<8xf32>
      %193 = vector.shape_cast %192 : vector<8xf32> to vector<8x1xf32>
      %194 = vector.broadcast %193 : vector<8x1xf32> to vector<8x8xf32>
      %195 = arith.divf %191, %194 : vector<8x8xf32>
      %196 = arith.truncf %195 : vector<8x8xf32> to vector<8x8xbf16>
      %197 = arith.truncf %178 : vector<8x8xf32> to vector<8x8xbf16>
      %cst_95 = arith.constant dense<0.000000e+00> : vector<8x8xf32>
      %198 = tpu.matmul %196, %197, %cst_95 {dimension_numbers = #tpu.dot_dimension_numbers<[1], [0], [0], [1], [0, 0, 1, 1], [], []>} : vector<8x8xbf16>, vector<8x8xbf16>, vector<8x8xf32> -> vector<8x8xf32>
      %199 = arith.truncf %198 : vector<8x8xf32> to vector<8x8xbf16>
      %200 = arith.index_cast %arg36 : i32 to index
      %c0_96 = arith.constant 0 : index
      %c0_97 = arith.constant 0 : index
      %201 = vector.load %arg9[%200, %c0_96, %c0_97] : memref<4x8x32xbf16, #tpu.memory_space<vmem>>, vector<1x8x32xbf16>
      %202 = vector.shape_cast %201 : vector<1x8x32xbf16> to vector<8x32xbf16>
      %cst_98 = arith.constant dense<0.000000e+00> : vector<8x32xf32>
      %203 = tpu.matmul %199, %202, %cst_98 {dimension_numbers = #tpu.dot_dimension_numbers<[1], [0], [0], [1], [0, 0, 1, 1], [], []>} : vector<8x8xbf16>, vector<8x32xbf16>, vector<8x32xf32> -> vector<8x32xf32>
      %204 = arith.addf %arg37, %203 : vector<8x32xf32>
      scf.yield %204 : vector<8x32xf32>
    }
    %c4_i32_2 = arith.constant 4 : i32
    %c0_3 = arith.constant 0 : index
    %c0_4 = arith.constant 0 : index
    %6 = vector.load %arg10[%c0_3, %c0_4] : memref<1x32xf32, #tpu.memory_space<vmem>>, vector<1x32xf32>
    %7 = vector.broadcast %6 : vector<1x32xf32> to vector<8x32xf32>
    %8 = arith.addf %5, %7 : vector<8x32xf32>
    %9 = arith.addf %1, %8 : vector<8x32xf32>
    %cst_5 = arith.constant dense<0.000000e+00> : vector<8xf32>
    %10 = vector.multi_reduction <add>, %9, %cst_5 [1] : vector<8x32xf32> to vector<8xf32>
    %11 = vector.shape_cast %10 : vector<8xf32> to vector<8x1xf32>
    %cst_6 = arith.constant 3.200000e+01 : f32
    %12 = vector.broadcast %cst_6 : f32 to vector<8x1xf32>
    %13 = arith.divf %11, %12 : vector<8x1xf32>
    %14 = vector.broadcast %13 : vector<8x1xf32> to vector<8x32xf32>
    %15 = arith.subf %9, %14 : vector<8x32xf32>
    %16 = arith.mulf %15, %15 : vector<8x32xf32>
    %cst_7 = arith.constant dense<0.000000e+00> : vector<8xf32>
    %17 = vector.multi_reduction <add>, %16, %cst_7 [1] : vector<8x32xf32> to vector<8xf32>
    %18 = vector.shape_cast %17 : vector<8xf32> to vector<8x1xf32>
    %cst_8 = arith.constant 3.200000e+01 : f32
    %19 = vector.broadcast %cst_8 : f32 to vector<8x1xf32>
    %20 = arith.divf %18, %19 : vector<8x1xf32>
    %21 = vector.broadcast %13 : vector<8x1xf32> to vector<8x32xf32>
    %22 = arith.subf %9, %21 : vector<8x32xf32>
    %cst_9 = arith.constant 9.99999974E-6 : f32
    %23 = vector.broadcast %cst_9 : f32 to vector<8x1xf32>
    %24 = arith.addf %20, %23 : vector<8x1xf32>
    %25 = math.rsqrt %24 : vector<8x1xf32>
    %26 = vector.broadcast %25 : vector<8x1xf32> to vector<8x32xf32>
    %27 = arith.mulf %22, %26 : vector<8x32xf32>
    %c0_10 = arith.constant 0 : index
    %c0_11 = arith.constant 0 : index
    %28 = vector.load %arg19[%c0_10, %c0_11] : memref<1x32xf32, #tpu.memory_space<vmem>>, vector<1x32xf32>
    %29 = vector.broadcast %28 : vector<1x32xf32> to vector<8x32xf32>
    %30 = arith.mulf %27, %29 : vector<8x32xf32>
    %c0_12 = arith.constant 0 : index
    %c0_13 = arith.constant 0 : index
    %31 = vector.load %arg20[%c0_12, %c0_13] : memref<1x32xf32, #tpu.memory_space<vmem>>, vector<1x32xf32>
    %32 = vector.broadcast %31 : vector<1x32xf32> to vector<8x32xf32>
    %33 = arith.addf %30, %32 : vector<8x32xf32>
    %34 = arith.truncf %33 : vector<8x32xf32> to vector<8x32xbf16>
    %cst_14 = arith.constant 0.000000e+00 : f32
    %35 = vector.broadcast %cst_14 : f32 to vector<8x32xf32>
    %c0_i32_15 = arith.constant 0 : i32
    %c4_i32_16 = arith.constant 4 : i32
    %36 = arith.addi %c0_i32_15, %c4_i32_16 : i32
    %c1_i32_17 = arith.constant 1 : i32
    %37 = scf.for %arg36 = %c0_i32_15 to %36 step %c1_i32_17 iter_args(%arg37 = %35) -> (vector<8x32xf32>)  : i32 {
      %152 = arith.index_cast %arg36 : i32 to index
      %c0_75 = arith.constant 0 : index
      %c0_76 = arith.constant 0 : index
      %153 = vector.load %arg11[%152, %c0_75, %c0_76] : memref<4x32x8xbf16, #tpu.memory_space<vmem>>, vector<1x32x8xbf16>
      %154 = vector.shape_cast %153 : vector<1x32x8xbf16> to vector<32x8xbf16>
      %cst_77 = arith.constant dense<0.000000e+00> : vector<8x8xf32>
      %155 = tpu.matmul %34, %154, %cst_77 {dimension_numbers = #tpu.dot_dimension_numbers<[1], [0], [0], [1], [0, 0, 1, 1], [], []>} : vector<8x32xbf16>, vector<32x8xbf16>, vector<8x8xf32> -> vector<8x8xf32>
      %156 = arith.index_cast %arg36 : i32 to index
      %c0_78 = arith.constant 0 : index
      %c0_79 = arith.constant 0 : index
      %157 = vector.load %arg14[%156, %c0_78, %c0_79] : memref<4x1x8xf32, #tpu.memory_space<vmem>>, vector<1x1x8xf32>
      %158 = vector.shape_cast %157 : vector<1x1x8xf32> to vector<1x8xf32>
      %159 = vector.broadcast %158 : vector<1x8xf32> to vector<8x8xf32>
      %160 = arith.addf %155, %159 : vector<8x8xf32>
      %161 = arith.index_cast %arg36 : i32 to index
      %c0_80 = arith.constant 0 : index
      %c0_81 = arith.constant 0 : index
      %162 = vector.load %arg12[%161, %c0_80, %c0_81] : memref<4x32x8xbf16, #tpu.memory_space<vmem>>, vector<1x32x8xbf16>
      %163 = vector.shape_cast %162 : vector<1x32x8xbf16> to vector<32x8xbf16>
      %cst_82 = arith.constant dense<0.000000e+00> : vector<8x8xf32>
      %164 = tpu.matmul %34, %163, %cst_82 {dimension_numbers = #tpu.dot_dimension_numbers<[1], [0], [0], [1], [0, 0, 1, 1], [], []>} : vector<8x32xbf16>, vector<32x8xbf16>, vector<8x8xf32> -> vector<8x8xf32>
      %165 = arith.index_cast %arg36 : i32 to index
      %c0_83 = arith.constant 0 : index
      %c0_84 = arith.constant 0 : index
      %166 = vector.load %arg15[%165, %c0_83, %c0_84] : memref<4x1x8xf32, #tpu.memory_space<vmem>>, vector<1x1x8xf32>
      %167 = vector.shape_cast %166 : vector<1x1x8xf32> to vector<1x8xf32>
      %168 = vector.broadcast %167 : vector<1x8xf32> to vector<8x8xf32>
      %169 = arith.addf %164, %168 : vector<8x8xf32>
      %170 = arith.index_cast %arg36 : i32 to index
      %c0_85 = arith.constant 0 : index
      %c0_86 = arith.constant 0 : index
      %171 = vector.load %arg13[%170, %c0_85, %c0_86] : memref<4x32x8xbf16, #tpu.memory_space<vmem>>, vector<1x32x8xbf16>
      %172 = vector.shape_cast %171 : vector<1x32x8xbf16> to vector<32x8xbf16>
      %cst_87 = arith.constant dense<0.000000e+00> : vector<8x8xf32>
      %173 = tpu.matmul %34, %172, %cst_87 {dimension_numbers = #tpu.dot_dimension_numbers<[1], [0], [0], [1], [0, 0, 1, 1], [], []>} : vector<8x32xbf16>, vector<32x8xbf16>, vector<8x8xf32> -> vector<8x8xf32>
      %174 = arith.index_cast %arg36 : i32 to index
      %c0_88 = arith.constant 0 : index
      %c0_89 = arith.constant 0 : index
      %175 = vector.load %arg16[%174, %c0_88, %c0_89] : memref<4x1x8xf32, #tpu.memory_space<vmem>>, vector<1x1x8xf32>
      %176 = vector.shape_cast %175 : vector<1x1x8xf32> to vector<1x8xf32>
      %177 = vector.broadcast %176 : vector<1x8xf32> to vector<8x8xf32>
      %178 = arith.addf %173, %177 : vector<8x8xf32>
      %179 = arith.truncf %160 : vector<8x8xf32> to vector<8x8xbf16>
      %180 = arith.truncf %169 : vector<8x8xf32> to vector<8x8xbf16>
      %cst_90 = arith.constant dense<0.000000e+00> : vector<8x8xf32>
      %181 = tpu.matmul %179, %180, %cst_90 {dimension_numbers = #tpu.dot_dimension_numbers<[1], [1], [0], [0], [0, 0, 1, 0], [], []>} : vector<8x8xbf16>, vector<8x8xbf16>, vector<8x8xf32> -> vector<8x8xf32>
      %cst_91 = arith.constant dense<0xFF800000> : vector<8xf32>
      %182 = vector.multi_reduction <maximumf>, %181, %cst_91 [1] : vector<8x8xf32> to vector<8xf32>
      %183 = vector.shape_cast %182 : vector<8xf32> to vector<8x1xf32>
      %184 = vector.broadcast %183 : vector<8x1xf32> to vector<8x8xf32>
      %185 = arith.subf %181, %184 : vector<8x8xf32>
      %186 = math.exp %185 : vector<8x8xf32>
      %cst_92 = arith.constant dense<0.000000e+00> : vector<8xf32>
      %187 = vector.multi_reduction <add>, %186, %cst_92 [1] : vector<8x8xf32> to vector<8xf32>
      %188 = vector.shape_cast %187 : vector<8xf32> to vector<8x1xf32>
      %189 = vector.broadcast %188 : vector<8x1xf32> to vector<8x8xf32>
      %190 = arith.divf %186, %189 : vector<8x8xf32>
      %191 = arith.truncf %190 : vector<8x8xf32> to vector<8x8xbf16>
      %192 = arith.truncf %178 : vector<8x8xf32> to vector<8x8xbf16>
      %cst_93 = arith.constant dense<0.000000e+00> : vector<8x8xf32>
      %193 = tpu.matmul %191, %192, %cst_93 {dimension_numbers = #tpu.dot_dimension_numbers<[1], [0], [0], [1], [0, 0, 1, 1], [], []>} : vector<8x8xbf16>, vector<8x8xbf16>, vector<8x8xf32> -> vector<8x8xf32>
      %194 = arith.truncf %193 : vector<8x8xf32> to vector<8x8xbf16>
      %195 = arith.index_cast %arg36 : i32 to index
      %c0_94 = arith.constant 0 : index
      %c0_95 = arith.constant 0 : index
      %196 = vector.load %arg17[%195, %c0_94, %c0_95] : memref<4x8x32xbf16, #tpu.memory_space<vmem>>, vector<1x8x32xbf16>
      %197 = vector.shape_cast %196 : vector<1x8x32xbf16> to vector<8x32xbf16>
      %cst_96 = arith.constant dense<0.000000e+00> : vector<8x32xf32>
      %198 = tpu.matmul %194, %197, %cst_96 {dimension_numbers = #tpu.dot_dimension_numbers<[1], [0], [0], [1], [0, 0, 1, 1], [], []>} : vector<8x8xbf16>, vector<8x32xbf16>, vector<8x32xf32> -> vector<8x32xf32>
      %199 = arith.addf %arg37, %198 : vector<8x32xf32>
      scf.yield %199 : vector<8x32xf32>
    }
    %c4_i32_18 = arith.constant 4 : i32
    %c0_19 = arith.constant 0 : index
    %c0_20 = arith.constant 0 : index
    %38 = vector.load %arg18[%c0_19, %c0_20] : memref<1x32xf32, #tpu.memory_space<vmem>>, vector<1x32xf32>
    %39 = vector.broadcast %38 : vector<1x32xf32> to vector<8x32xf32>
    %40 = arith.addf %37, %39 : vector<8x32xf32>
    %41 = arith.addf %33, %40 : vector<8x32xf32>
    %cst_21 = arith.constant dense<0.000000e+00> : vector<8xf32>
    %42 = vector.multi_reduction <add>, %41, %cst_21 [1] : vector<8x32xf32> to vector<8xf32>
    %43 = vector.shape_cast %42 : vector<8xf32> to vector<8x1xf32>
    %cst_22 = arith.constant 3.200000e+01 : f32
    %44 = vector.broadcast %cst_22 : f32 to vector<8x1xf32>
    %45 = arith.divf %43, %44 : vector<8x1xf32>
    %46 = vector.broadcast %45 : vector<8x1xf32> to vector<8x32xf32>
    %47 = arith.subf %41, %46 : vector<8x32xf32>
    %48 = arith.mulf %47, %47 : vector<8x32xf32>
    %cst_23 = arith.constant dense<0.000000e+00> : vector<8xf32>
    %49 = vector.multi_reduction <add>, %48, %cst_23 [1] : vector<8x32xf32> to vector<8xf32>
    %50 = vector.shape_cast %49 : vector<8xf32> to vector<8x1xf32>
    %cst_24 = arith.constant 3.200000e+01 : f32
    %51 = vector.broadcast %cst_24 : f32 to vector<8x1xf32>
    %52 = arith.divf %50, %51 : vector<8x1xf32>
    %53 = vector.broadcast %45 : vector<8x1xf32> to vector<8x32xf32>
    %54 = arith.subf %41, %53 : vector<8x32xf32>
    %cst_25 = arith.constant 9.99999974E-6 : f32
    %55 = vector.broadcast %cst_25 : f32 to vector<8x1xf32>
    %56 = arith.addf %52, %55 : vector<8x1xf32>
    %57 = math.rsqrt %56 : vector<8x1xf32>
    %58 = vector.broadcast %57 : vector<8x1xf32> to vector<8x32xf32>
    %59 = arith.mulf %54, %58 : vector<8x32xf32>
    %c0_26 = arith.constant 0 : index
    %c0_27 = arith.constant 0 : index
    %60 = vector.load %arg21[%c0_26, %c0_27] : memref<1x32xf32, #tpu.memory_space<vmem>>, vector<1x32xf32>
    %61 = vector.broadcast %60 : vector<1x32xf32> to vector<8x32xf32>
    %62 = arith.mulf %59, %61 : vector<8x32xf32>
    %c0_28 = arith.constant 0 : index
    %c0_29 = arith.constant 0 : index
    %63 = vector.load %arg22[%c0_28, %c0_29] : memref<1x32xf32, #tpu.memory_space<vmem>>, vector<1x32xf32>
    %64 = vector.broadcast %63 : vector<1x32xf32> to vector<8x32xf32>
    %65 = arith.addf %62, %64 : vector<8x32xf32>
    %66 = vector.extract_strided_slice %65 {offsets = [0, 0], sizes = [4, 32], strides = [1, 1]} : vector<8x32xf32> to vector<4x32xf32>
    %67 = vector.extract_strided_slice %65 {offsets = [4, 0], sizes = [4, 32], strides = [1, 1]} : vector<8x32xf32> to vector<4x32xf32>
    %68 = arith.truncf %66 : vector<4x32xf32> to vector<4x32xbf16>
    %c0_30 = arith.constant 0 : index
    %c0_31 = arith.constant 0 : index
    %69 = vector.load %arg23[%c0_30, %c0_31] : memref<32x64xbf16, #tpu.memory_space<vmem>>, vector<32x64xbf16>
    %cst_32 = arith.constant dense<0.000000e+00> : vector<4x64xf32>
    %70 = tpu.matmul %68, %69, %cst_32 {dimension_numbers = #tpu.dot_dimension_numbers<[1], [0], [0], [1], [0, 0, 1, 1], [], []>} : vector<4x32xbf16>, vector<32x64xbf16>, vector<4x64xf32> -> vector<4x64xf32>
    %c0_33 = arith.constant 0 : index
    %c0_34 = arith.constant 0 : index
    %71 = vector.load %arg24[%c0_33, %c0_34] : memref<1x64xf32, #tpu.memory_space<vmem>>, vector<1x64xf32>
    %72 = vector.broadcast %71 : vector<1x64xf32> to vector<4x64xf32>
    %73 = arith.addf %70, %72 : vector<4x64xf32>
    %cst_35 = arith.constant 0.000000e+00 : f32
    %74 = vector.broadcast %cst_35 : f32 to vector<4x64xf32>
    %75 = arith.maximumf %73, %74 : vector<4x64xf32>
    %76 = arith.truncf %75 : vector<4x64xf32> to vector<4x64xbf16>
    %c0_36 = arith.constant 0 : index
    %c0_37 = arith.constant 0 : index
    %77 = vector.load %arg25[%c0_36, %c0_37] : memref<64x32xbf16, #tpu.memory_space<vmem>>, vector<64x32xbf16>
    %cst_38 = arith.constant dense<0.000000e+00> : vector<4x32xf32>
    %78 = tpu.matmul %76, %77, %cst_38 {dimension_numbers = #tpu.dot_dimension_numbers<[1], [0], [0], [1], [0, 0, 1, 1], [], []>} : vector<4x64xbf16>, vector<64x32xbf16>, vector<4x32xf32> -> vector<4x32xf32>
    %c0_39 = arith.constant 0 : index
    %c0_40 = arith.constant 0 : index
    %79 = vector.load %arg26[%c0_39, %c0_40] : memref<1x32xf32, #tpu.memory_space<vmem>>, vector<1x32xf32>
    %80 = vector.broadcast %79 : vector<1x32xf32> to vector<4x32xf32>
    %81 = arith.addf %78, %80 : vector<4x32xf32>
    %82 = arith.addf %66, %81 : vector<4x32xf32>
    %cst_41 = arith.constant dense<0.000000e+00> : vector<4xf32>
    %83 = vector.multi_reduction <add>, %82, %cst_41 [1] : vector<4x32xf32> to vector<4xf32>
    %84 = vector.shape_cast %83 : vector<4xf32> to vector<4x1xf32>
    %cst_42 = arith.constant 3.200000e+01 : f32
    %85 = vector.broadcast %cst_42 : f32 to vector<4x1xf32>
    %86 = arith.divf %84, %85 : vector<4x1xf32>
    %87 = vector.broadcast %86 : vector<4x1xf32> to vector<4x32xf32>
    %88 = arith.subf %82, %87 : vector<4x32xf32>
    %89 = arith.mulf %88, %88 : vector<4x32xf32>
    %cst_43 = arith.constant dense<0.000000e+00> : vector<4xf32>
    %90 = vector.multi_reduction <add>, %89, %cst_43 [1] : vector<4x32xf32> to vector<4xf32>
    %91 = vector.shape_cast %90 : vector<4xf32> to vector<4x1xf32>
    %cst_44 = arith.constant 3.200000e+01 : f32
    %92 = vector.broadcast %cst_44 : f32 to vector<4x1xf32>
    %93 = arith.divf %91, %92 : vector<4x1xf32>
    %94 = vector.broadcast %86 : vector<4x1xf32> to vector<4x32xf32>
    %95 = arith.subf %82, %94 : vector<4x32xf32>
    %cst_45 = arith.constant 9.99999974E-6 : f32
    %96 = vector.broadcast %cst_45 : f32 to vector<4x1xf32>
    %97 = arith.addf %93, %96 : vector<4x1xf32>
    %98 = math.rsqrt %97 : vector<4x1xf32>
    %99 = vector.broadcast %98 : vector<4x1xf32> to vector<4x32xf32>
    %100 = arith.mulf %95, %99 : vector<4x32xf32>
    %c0_46 = arith.constant 0 : index
    %c0_47 = arith.constant 0 : index
    %101 = vector.load %arg31[%c0_46, %c0_47] : memref<1x32xf32, #tpu.memory_space<vmem>>, vector<1x32xf32>
    %102 = vector.broadcast %101 : vector<1x32xf32> to vector<4x32xf32>
    %103 = arith.mulf %100, %102 : vector<4x32xf32>
    %c0_48 = arith.constant 0 : index
    %c0_49 = arith.constant 0 : index
    %104 = vector.load %arg32[%c0_48, %c0_49] : memref<1x32xf32, #tpu.memory_space<vmem>>, vector<1x32xf32>
    %105 = vector.broadcast %104 : vector<1x32xf32> to vector<4x32xf32>
    %106 = arith.addf %103, %105 : vector<4x32xf32>
    %107 = arith.truncf %67 : vector<4x32xf32> to vector<4x32xbf16>
    %c0_50 = arith.constant 0 : index
    %c0_51 = arith.constant 0 : index
    %108 = vector.load %arg27[%c0_50, %c0_51] : memref<32x64xbf16, #tpu.memory_space<vmem>>, vector<32x64xbf16>
    %cst_52 = arith.constant dense<0.000000e+00> : vector<4x64xf32>
    %109 = tpu.matmul %107, %108, %cst_52 {dimension_numbers = #tpu.dot_dimension_numbers<[1], [0], [0], [1], [0, 0, 1, 1], [], []>} : vector<4x32xbf16>, vector<32x64xbf16>, vector<4x64xf32> -> vector<4x64xf32>
    %c0_53 = arith.constant 0 : index
    %c0_54 = arith.constant 0 : index
    %110 = vector.load %arg28[%c0_53, %c0_54] : memref<1x64xf32, #tpu.memory_space<vmem>>, vector<1x64xf32>
    %111 = vector.broadcast %110 : vector<1x64xf32> to vector<4x64xf32>
    %112 = arith.addf %109, %111 : vector<4x64xf32>
    %cst_55 = arith.constant 0.000000e+00 : f32
    %113 = vector.broadcast %cst_55 : f32 to vector<4x64xf32>
    %114 = arith.maximumf %112, %113 : vector<4x64xf32>
    %115 = arith.truncf %114 : vector<4x64xf32> to vector<4x64xbf16>
    %c0_56 = arith.constant 0 : index
    %c0_57 = arith.constant 0 : index
    %116 = vector.load %arg29[%c0_56, %c0_57] : memref<64x32xbf16, #tpu.memory_space<vmem>>, vector<64x32xbf16>
    %cst_58 = arith.constant dense<0.000000e+00> : vector<4x32xf32>
    %117 = tpu.matmul %115, %116, %cst_58 {dimension_numbers = #tpu.dot_dimension_numbers<[1], [0], [0], [1], [0, 0, 1, 1], [], []>} : vector<4x64xbf16>, vector<64x32xbf16>, vector<4x32xf32> -> vector<4x32xf32>
    %c0_59 = arith.constant 0 : index
    %c0_60 = arith.constant 0 : index
    %118 = vector.load %arg30[%c0_59, %c0_60] : memref<1x32xf32, #tpu.memory_space<vmem>>, vector<1x32xf32>
    %119 = vector.broadcast %118 : vector<1x32xf32> to vector<4x32xf32>
    %120 = arith.addf %117, %119 : vector<4x32xf32>
    %121 = arith.addf %67, %120 : vector<4x32xf32>
    %cst_61 = arith.constant dense<0.000000e+00> : vector<4xf32>
    %122 = vector.multi_reduction <add>, %121, %cst_61 [1] : vector<4x32xf32> to vector<4xf32>
    %123 = vector.shape_cast %122 : vector<4xf32> to vector<4x1xf32>
    %cst_62 = arith.constant 3.200000e+01 : f32
    %124 = vector.broadcast %cst_62 : f32 to vector<4x1xf32>
    %125 = arith.divf %123, %124 : vector<4x1xf32>
    %126 = vector.broadcast %125 : vector<4x1xf32> to vector<4x32xf32>
    %127 = arith.subf %121, %126 : vector<4x32xf32>
    %128 = arith.mulf %127, %127 : vector<4x32xf32>
    %cst_63 = arith.constant dense<0.000000e+00> : vector<4xf32>
    %129 = vector.multi_reduction <add>, %128, %cst_63 [1] : vector<4x32xf32> to vector<4xf32>
    %130 = vector.shape_cast %129 : vector<4xf32> to vector<4x1xf32>
    %cst_64 = arith.constant 3.200000e+01 : f32
    %131 = vector.broadcast %cst_64 : f32 to vector<4x1xf32>
    %132 = arith.divf %130, %131 : vector<4x1xf32>
    %133 = vector.broadcast %125 : vector<4x1xf32> to vector<4x32xf32>
    %134 = arith.subf %121, %133 : vector<4x32xf32>
    %cst_65 = arith.constant 9.99999974E-6 : f32
    %135 = vector.broadcast %cst_65 : f32 to vector<4x1xf32>
    %136 = arith.addf %132, %135 : vector<4x1xf32>
    %137 = math.rsqrt %136 : vector<4x1xf32>
    %138 = vector.broadcast %137 : vector<4x1xf32> to vector<4x32xf32>
    %139 = arith.mulf %134, %138 : vector<4x32xf32>
    %c0_66 = arith.constant 0 : index
    %c0_67 = arith.constant 0 : index
    %140 = vector.load %arg33[%c0_66, %c0_67] : memref<1x32xf32, #tpu.memory_space<vmem>>, vector<1x32xf32>
    %141 = vector.broadcast %140 : vector<1x32xf32> to vector<4x32xf32>
    %142 = arith.mulf %139, %141 : vector<4x32xf32>
    %c0_68 = arith.constant 0 : index
    %c0_69 = arith.constant 0 : index
    %143 = vector.load %arg34[%c0_68, %c0_69] : memref<1x32xf32, #tpu.memory_space<vmem>>, vector<1x32xf32>
    %144 = vector.broadcast %143 : vector<1x32xf32> to vector<4x32xf32>
    %145 = arith.addf %142, %144 : vector<4x32xf32>
    %c0_70 = arith.constant 0 : index
    %c0_71 = arith.constant 0 : index
    %c0_72 = arith.constant 0 : index
    %146 = vector.load %arg35[%c0_70, %c0_71, %c0_72] : memref<1x8x32xf32, #tpu.memory_space<vmem>>, vector<1x4x32xf32>
    %147 = vector.shape_cast %146 : vector<1x4x32xf32> to vector<4x32xf32>
    %148 = vector.shape_cast %106 : vector<4x32xf32> to vector<1x4x32xf32>
    tpu.vector_store %arg35[%c0_70, %c0_71, %c0_72], %148 {strides = array<i32>} : memref<1x8x32xf32, #tpu.memory_space<vmem>>, vector<1x4x32xf32>,
    %c0_73 = arith.constant 0 : index
    %c4 = arith.constant 4 : index
    %c0_74 = arith.constant 0 : index
    %149 = vector.load %arg35[%c0_73, %c4, %c0_74] : memref<1x8x32xf32, #tpu.memory_space<vmem>>, vector<1x4x32xf32>
    %150 = vector.shape_cast %149 : vector<1x4x32xf32> to vector<4x32xf32>
    %151 = vector.shape_cast %145 : vector<4x32xf32> to vector<1x4x32xf32>
    tpu.vector_store %arg35[%c0_73, %c4, %c0_74], %151 {strides = array<i32>} : memref<1x8x32xf32, #tpu.memory_space<vmem>>, vector<1x4x32xf32>,
    return
  }
  func.func @transform_0(%arg0: i32) -> (i32, i32, i32) {
    %c0_i32 = arith.constant 0 : i32
    %c0_i32_0 = arith.constant 0 : i32
    %c0_i32_1 = arith.constant 0 : i32
    return %arg0, %c0_i32, %c0_i32_0 : i32, i32, i32
  }
  func.func @transform_1(%arg0: i32) -> (i32, i32, i32) {
    %c0_i32 = arith.constant 0 : i32
    %c0_i32_0 = arith.constant 0 : i32
    %c0_i32_1 = arith.constant 0 : i32
    return %arg0, %c0_i32, %c0_i32_0 : i32, i32, i32
  }
  func.func @transform_2(%arg0: i32) -> (i32, i32, i32) {
    %c0_i32 = arith.constant 0 : i32
    %c0_i32_0 = arith.constant 0 : i32
    %c0_i32_1 = arith.constant 0 : i32
    %c0_i32_2 = arith.constant 0 : i32
    return %c0_i32, %c0_i32_0, %c0_i32_1 : i32, i32, i32
  }
  func.func @transform_3(%arg0: i32) -> (i32, i32, i32) {
    %c0_i32 = arith.constant 0 : i32
    %c0_i32_0 = arith.constant 0 : i32
    %c0_i32_1 = arith.constant 0 : i32
    %c0_i32_2 = arith.constant 0 : i32
    return %c0_i32, %c0_i32_0, %c0_i32_1 : i32, i32, i32
  }
  func.func @transform_4(%arg0: i32) -> (i32, i32, i32) {
    %c0_i32 = arith.constant 0 : i32
    %c0_i32_0 = arith.constant 0 : i32
    %c0_i32_1 = arith.constant 0 : i32
    %c0_i32_2 = arith.constant 0 : i32
    return %c0_i32, %c0_i32_0, %c0_i32_1 : i32, i32, i32
  }
  func.func @transform_5(%arg0: i32) -> (i32, i32, i32) {
    %c0_i32 = arith.constant 0 : i32
    %c0_i32_0 = arith.constant 0 : i32
    %c0_i32_1 = arith.constant 0 : i32
    %c0_i32_2 = arith.constant 0 : i32
    return %c0_i32, %c0_i32_0, %c0_i32_1 : i32, i32, i32
  }
  func.func @transform_6(%arg0: i32) -> (i32, i32, i32) {
    %c0_i32 = arith.constant 0 : i32
    %c0_i32_0 = arith.constant 0 : i32
    %c0_i32_1 = arith.constant 0 : i32
    %c0_i32_2 = arith.constant 0 : i32
    return %c0_i32, %c0_i32_0, %c0_i32_1 : i32, i32, i32
  }
  func.func @transform_7(%arg0: i32) -> (i32, i32, i32) {
    %c0_i32 = arith.constant 0 : i32
    %c0_i32_0 = arith.constant 0 : i32
    %c0_i32_1 = arith.constant 0 : i32
    %c0_i32_2 = arith.constant 0 : i32
    return %c0_i32, %c0_i32_0, %c0_i32_1 : i32, i32, i32
  }
  func.func @transform_8(%arg0: i32) -> (i32, i32, i32) {
    %c0_i32 = arith.constant 0 : i32
    %c0_i32_0 = arith.constant 0 : i32
    %c0_i32_1 = arith.constant 0 : i32
    %c0_i32_2 = arith.constant 0 : i32
    return %c0_i32, %c0_i32_0, %c0_i32_1 : i32, i32, i32
  }
  func.func @transform_9(%arg0: i32) -> (i32, i32) {
    %c0_i32 = arith.constant 0 : i32
    %c0_i32_0 = arith.constant 0 : i32
    %c0_i32_1 = arith.constant 0 : i32
    return %c0_i32, %c0_i32_0 : i32, i32
  }
  func.func @transform_10(%arg0: i32) -> (i32, i32, i32) {
    %c0_i32 = arith.constant 0 : i32
    %c0_i32_0 = arith.constant 0 : i32
    %c0_i32_1 = arith.constant 0 : i32
    %c0_i32_2 = arith.constant 0 : i32
    return %c0_i32, %c0_i32_0, %c0_i32_1 : i32, i32, i32
  }
  func.func @transform_11(%arg0: i32) -> (i32, i32, i32) {
    %c0_i32 = arith.constant 0 : i32
    %c0_i32_0 = arith.constant 0 : i32
    %c0_i32_1 = arith.constant 0 : i32
    %c0_i32_2 = arith.constant 0 : i32
    return %c0_i32, %c0_i32_0, %c0_i32_1 : i32, i32, i32
  }
  func.func @transform_12(%arg0: i32) -> (i32, i32, i32) {
    %c0_i32 = arith.constant 0 : i32
    %c0_i32_0 = arith.constant 0 : i32
    %c0_i32_1 = arith.constant 0 : i32
    %c0_i32_2 = arith.constant 0 : i32
    return %c0_i32, %c0_i32_0, %c0_i32_1 : i32, i32, i32
  }
  func.func @transform_13(%arg0: i32) -> (i32, i32, i32) {
    %c0_i32 = arith.constant 0 : i32
    %c0_i32_0 = arith.constant 0 : i32
    %c0_i32_1 = arith.constant 0 : i32
    %c0_i32_2 = arith.constant 0 : i32
    return %c0_i32, %c0_i32_0, %c0_i32_1 : i32, i32, i32
  }
  func.func @transform_14(%arg0: i32) -> (i32, i32, i32) {
    %c0_i32 = arith.constant 0 : i32
    %c0_i32_0 = arith.constant 0 : i32
    %c0_i32_1 = arith.constant 0 : i32
    %c0_i32_2 = arith.constant 0 : i32
    return %c0_i32, %c0_i32_0, %c0_i32_1 : i32, i32, i32
  }
  func.func @transform_15(%arg0: i32) -> (i32, i32, i32) {
    %c0_i32 = arith.constant 0 : i32
    %c0_i32_0 = arith.constant 0 : i32
    %c0_i32_1 = arith.constant 0 : i32
    %c0_i32_2 = arith.constant 0 : i32
    return %c0_i32, %c0_i32_0, %c0_i32_1 : i32, i32, i32
  }
  func.func @transform_16(%arg0: i32) -> (i32, i32, i32) {
    %c0_i32 = arith.constant 0 : i32
    %c0_i32_0 = arith.constant 0 : i32
    %c0_i32_1 = arith.constant 0 : i32
    %c0_i32_2 = arith.constant 0 : i32
    return %c0_i32, %c0_i32_0, %c0_i32_1 : i32, i32, i32
  }
  func.func @transform_17(%arg0: i32) -> (i32, i32) {
    %c0_i32 = arith.constant 0 : i32
    %c0_i32_0 = arith.constant 0 : i32
    %c0_i32_1 = arith.constant 0 : i32
    return %c0_i32, %c0_i32_0 : i32, i32
  }
  func.func @transform_18(%arg0: i32) -> (i32, i32) {
    %c0_i32 = arith.constant 0 : i32
    %c0_i32_0 = arith.constant 0 : i32
    %c0_i32_1 = arith.constant 0 : i32
    return %c0_i32, %c0_i32_0 : i32, i32
  }
  func.func @transform_19(%arg0: i32) -> (i32, i32) {
    %c0_i32 = arith.constant 0 : i32
    %c0_i32_0 = arith.constant 0 : i32
    %c0_i32_1 = arith.constant 0 : i32
    return %c0_i32, %c0_i32_0 : i32, i32
  }
  func.func @transform_20(%arg0: i32) -> (i32, i32) {
    %c0_i32 = arith.constant 0 : i32
    %c0_i32_0 = arith.constant 0 : i32
    %c0_i32_1 = arith.constant 0 : i32
    return %c0_i32, %c0_i32_0 : i32, i32
  }
  func.func @transform_21(%arg0: i32) -> (i32, i32) {
    %c0_i32 = arith.constant 0 : i32
    %c0_i32_0 = arith.constant 0 : i32
    %c0_i32_1 = arith.constant 0 : i32
    return %c0_i32, %c0_i32_0 : i32, i32
  }
  func.func @transform_22(%arg0: i32) -> (i32, i32) {
    %c0_i32 = arith.constant 0 : i32
    %c0_i32_0 = arith.constant 0 : i32
    %c0_i32_1 = arith.constant 0 : i32
    return %c0_i32, %c0_i32_0 : i32, i32
  }
  func.func @transform_23(%arg0: i32) -> (i32, i32) {
    %c0_i32 = arith.constant 0 : i32
    %c0_i32_0 = arith.constant 0 : i32
    %c0_i32_1 = arith.constant 0 : i32
    return %c0_i32, %c0_i32_0 : i32, i32
  }
  func.func @transform_24(%arg0: i32) -> (i32, i32) {
    %c0_i32 = arith.constant 0 : i32
    %c0_i32_0 = arith.constant 0 : i32
    %c0_i32_1 = arith.constant 0 : i32
    return %c0_i32, %c0_i32_0 : i32, i32
  }
  func.func @transform_25(%arg0: i32) -> (i32, i32) {
    %c0_i32 = arith.constant 0 : i32
    %c0_i32_0 = arith.constant 0 : i32
    %c0_i32_1 = arith.constant 0 : i32
    return %c0_i32, %c0_i32_0 : i32, i32
  }
  func.func @transform_26(%arg0: i32) -> (i32, i32) {
    %c0_i32 = arith.constant 0 : i32
    %c0_i32_0 = arith.constant 0 : i32
    %c0_i32_1 = arith.constant 0 : i32
    return %c0_i32, %c0_i32_0 : i32, i32
  }
  func.func @transform_27(%arg0: i32) -> (i32, i32) {
    %c0_i32 = arith.constant 0 : i32
    %c0_i32_0 = arith.constant 0 : i32
    %c0_i32_1 = arith.constant 0 : i32
    return %c0_i32, %c0_i32_0 : i32, i32
  }
  func.func @transform_28(%arg0: i32) -> (i32, i32) {
    %c0_i32 = arith.constant 0 : i32
    %c0_i32_0 = arith.constant 0 : i32
    %c0_i32_1 = arith.constant 0 : i32
    return %c0_i32, %c0_i32_0 : i32, i32
  }
  func.func @transform_29(%arg0: i32) -> (i32, i32) {
    %c0_i32 = arith.constant 0 : i32
    %c0_i32_0 = arith.constant 0 : i32
    %c0_i32_1 = arith.constant 0 : i32
    return %c0_i32, %c0_i32_0 : i32, i32
  }
  func.func @transform_30(%arg0: i32) -> (i32, i32) {
    %c0_i32 = arith.constant 0 : i32
    %c0_i32_0 = arith.constant 0 : i32
    %c0_i32_1 = arith.constant 0 : i32
    return %c0_i32, %c0_i32_0 : i32, i32
  }
  func.func @transform_31(%arg0: i32) -> (i32, i32) {
    %c0_i32 = arith.constant 0 : i32
    %c0_i32_0 = arith.constant 0 : i32
    %c0_i32_1 = arith.constant 0 : i32
    return %c0_i32, %c0_i32_0 : i32, i32
  }
  func.func @transform_32(%arg0: i32) -> (i32, i32) {
    %c0_i32 = arith.constant 0 : i32
    %c0_i32_0 = arith.constant 0 : i32
    %c0_i32_1 = arith.constant 0 : i32
    return %c0_i32, %c0_i32_0 : i32, i32
  }
  func.func @transform_33(%arg0: i32) -> (i32, i32) {
    %c0_i32 = arith.constant 0 : i32
    %c0_i32_0 = arith.constant 0 : i32
    %c0_i32_1 = arith.constant 0 : i32
    return %c0_i32, %c0_i32_0 : i32, i32
  }
  func.func @transform_34(%arg0: i32) -> (i32, i32, i32) {
    %c0_i32 = arith.constant 0 : i32
    %c0_i32_0 = arith.constant 0 : i32
    %c0_i32_1 = arith.constant 0 : i32
    return %arg0, %c0_i32, %c0_i32_0 : i32, i32, i32
  }
}

module attributes {stable_mosaic.version = 11 : i64} {
  func.func @_fused_layer_kernel(%arg0: i32, %arg1: memref<1x8x32xf32, #tpu.memory_space<vmem>>, %arg2: memref<4x8x8xbf16, #tpu.memory_space<vmem>>, %arg3: memref<4x32x8xbf16, #tpu.memory_space<vmem>>, %arg4: memref<4x32x8xbf16, #tpu.memory_space<vmem>>, %arg5: memref<4x32x8xbf16, #tpu.memory_space<vmem>>, %arg6: memref<4x1x8xf32, #tpu.memory_space<vmem>>, %arg7: memref<4x1x8xf32, #tpu.memory_space<vmem>>, %arg8: memref<4x1x8xf32, #tpu.memory_space<vmem>>, %arg9: memref<4x8x32xbf16, #tpu.memory_space<vmem>>, %arg10: memref<1x32xf32, #tpu.memory_space<vmem>>, %arg11: memref<4x32x8xbf16, #tpu.memory_space<vmem>>, %arg12: memref<4x32x8xbf16, #tpu.memory_space<vmem>>, %arg13: memref<4x32x8xbf16, #tpu.memory_space<vmem>>, %arg14: memref<4x1x8xf32, #tpu.memory_space<vmem>>, %arg15: memref<4x1x8xf32, #tpu.memory_space<vmem>>, %arg16: memref<4x1x8xf32, #tpu.memory_space<vmem>>, %arg17: memref<4x8x32xbf16, #tpu.memory_space<vmem>>, %arg18: memref<1x32xf32, #tpu.memory_space<vmem>>, %arg19: memref<1x32xf32, #tpu.memory_space<vmem>>, %arg20: memref<1x32xf32, #tpu.memory_space<vmem>>, %arg21: memref<1x32xf32, #tpu.memory_space<vmem>>, %arg22: memref<1x32xf32, #tpu.memory_space<vmem>>, %arg23: memref<32x64xbf16, #tpu.memory_space<vmem>>, %arg24: memref<1x64xf32, #tpu.memory_space<vmem>>, %arg25: memref<64x32xbf16, #tpu.memory_space<vmem>>, %arg26: memref<1x32xf32, #tpu.memory_space<vmem>>, %arg27: memref<32x64xbf16, #tpu.memory_space<vmem>>, %arg28: memref<1x64xf32, #tpu.memory_space<vmem>>, %arg29: memref<64x32xbf16, #tpu.memory_space<vmem>>, %arg30: memref<1x32xf32, #tpu.memory_space<vmem>>, %arg31: memref<1x32xf32, #tpu.memory_space<vmem>>, %arg32: memref<1x32xf32, #tpu.memory_space<vmem>>, %arg33: memref<1x32xf32, #tpu.memory_space<vmem>>, %arg34: memref<1x32xf32, #tpu.memory_space<vmem>>, %arg35: memref<1x8x32xf32, #tpu.memory_space<vmem>>) attributes {dimension_semantics = [#tpu.dimension_semantics<parallel>], iteration_bounds = array<i64: 2>, scalar_prefetch = 0 : i64, scratch_operands = 0 : i64, tpu.core_type = #tpu.core_type<tc>, window_params = [{transform_indices = @transform_0, window_bounds = array<i64: 1, 8, 32>}, {transform_indices = @transform_1, window_bounds = array<i64: 4, 8, 8>}, {pipeline_mode = #tpu.pipeline_mode<synchronous>, transform_indices = @transform_2, window_bounds = array<i64: 4, 32, 8>}, {pipeline_mode = #tpu.pipeline_mode<synchronous>, transform_indices = @transform_3, window_bounds = array<i64: 4, 32, 8>}, {pipeline_mode = #tpu.pipeline_mode<synchronous>, transform_indices = @transform_4, window_bounds = array<i64: 4, 32, 8>}, {pipeline_mode = #tpu.pipeline_mode<synchronous>, transform_indices = @transform_5, window_bounds = array<i64: 4, 1, 8>}, {pipeline_mode = #tpu.pipeline_mode<synchronous>, transform_indices = @transform_6, window_bounds = array<i64: 4, 1, 8>}, {pipeline_mode = #tpu.pipeline_mode<synchronous>, transform_indices = @transform_7, window_bounds = array<i64: 4, 1, 8>}, {pipeline_mode = #tpu.pipeline_mode<synchronous>, transform_indices = @transform_8, window_bounds = array<i64: 4, 8, 32>}, {pipeline_mode = #tpu.pipeline_mode<synchronous>, transform_indices = @transform_9, window_bounds = array<i64: 1, 32>}, {pipeline_mode = #tpu.pipeline_mode<synchronous>, transform_indices = @transform_10, window_bounds = array<i64: 4, 32, 8>}, {pipeline_mode = #tpu.pipeline_mode<synchronous>, transform_indices = @transform_11, window_bounds = array<i64: 4, 32, 8>}, {pipeline_mode = #tpu.pipeline_mode<synchronous>, transform_indices = @transform_12, window_bounds = array<i64: 4, 32, 8>}, {pipeline_mode = #tpu.pipeline_mode<synchronous>, transform_indices = @transform_13, window_bounds = array<i64: 4, 1, 8>}, {pipeline_mode = #tpu.pipeline_mode<synchronous>, transform_indices = @transform_14, window_bounds = array<i64: 4, 1, 8>}, {pipeline_mode = #tpu.pipeline_mode<synchronous>, transform_indices = @transform_15, window_bounds = array<i64: 4, 1, 8>}, {pipeline_mode = #tpu.pipeline_mode<synchronous>, transform_indices = @transform_16, window_bounds = array<i64: 4, 8, 32>}, {pipeline_mode = #tpu.pipeline_mode<synchronous>, transform_indices = @transform_17, window_bounds = array<i64: 1, 32>}, {pipeline_mode = #tpu.pipeline_mode<synchronous>, transform_indices = @transform_18, window_bounds = array<i64: 1, 32>}, {pipeline_mode = #tpu.pipeline_mode<synchronous>, transform_indices = @transform_19, window_bounds = array<i64: 1, 32>}, {pipeline_mode = #tpu.pipeline_mode<synchronous>, transform_indices = @transform_20, window_bounds = array<i64: 1, 32>}, {pipeline_mode = #tpu.pipeline_mode<synchronous>, transform_indices = @transform_21, window_bounds = array<i64: 1, 32>}, {pipeline_mode = #tpu.pipeline_mode<synchronous>, transform_indices = @transform_22, window_bounds = array<i64: 32, 64>}, {pipeline_mode = #tpu.pipeline_mode<synchronous>, transform_indices = @transform_23, window_bounds = array<i64: 1, 64>}, {pipeline_mode = #tpu.pipeline_mode<synchronous>, transform_indices = @transform_24, window_bounds = array<i64: 64, 32>}, {pipeline_mode = #tpu.pipeline_mode<synchronous>, transform_indices = @transform_25, window_bounds = array<i64: 1, 32>}, {pipeline_mode = #tpu.pipeline_mode<synchronous>, transform_indices = @transform_26, window_bounds = array<i64: 32, 64>}, {pipeline_mode = #tpu.pipeline_mode<synchronous>, transform_indices = @transform_27, window_bounds = array<i64: 1, 64>}, {pipeline_mode = #tpu.pipeline_mode<synchronous>, transform_indices = @transform_28, window_bounds = array<i64: 64, 32>}, {pipeline_mode = #tpu.pipeline_mode<synchronous>, transform_indices = @transform_29, window_bounds = array<i64: 1, 32>}, {pipeline_mode = #tpu.pipeline_mode<synchronous>, transform_indices = @transform_30, window_bounds = array<i64: 1, 32>}, {pipeline_mode = #tpu.pipeline_mode<synchronous>, transform_indices = @transform_31, window_bounds = array<i64: 1, 32>}, {pipeline_mode = #tpu.pipeline_mode<synchronous>, transform_indices = @transform_32, window_bounds = array<i64: 1, 32>}, {pipeline_mode = #tpu.pipeline_mode<synchronous>, transform_indices = @transform_33, window_bounds = array<i64: 1, 32>}, {transform_indices = @transform_34, window_bounds = array<i64: 1, 8, 32>}]} {
    %c0 = arith.constant 0 : index
    %c0_0 = arith.constant 0 : index
    %c0_1 = arith.constant 0 : index
    %0 = vector.load %arg1[%c0, %c0_0, %c0_1] : memref<1x8x32xf32, #tpu.memory_space<vmem>>, vector<1x8x32xf32>
    %1 = vector.shape_cast %0 : vector<1x8x32xf32> to vector<8x32xf32>
    %2 = arith.truncf %1 : vector<8x32xf32> to vector<8x32xbf16>
    %cst = arith.constant 0.000000e+00 : f32
    %3 = vector.broadcast %cst : f32 to vector<8x32xf32>
    %c0_i32 = arith.constant 0 : i32
    %c4_i32 = arith.constant 4 : i32
    %4 = arith.addi %c0_i32, %c4_i32 : i32
    %c1_i32 = arith.constant 1 : i32
    %5 = scf.for %arg36 = %c0_i32 to %4 step %c1_i32 iter_args(%arg37 = %3) -> (vector<8x32xf32>)  : i32 {
      %152 = arith.index_cast %arg36 : i32 to index
      %c0_75 = arith.constant 0 : index
      %c0_76 = arith.constant 0 : index
      %153 = vector.load %arg3[%152, %c0_75, %c0_76] : memref<4x32x8xbf16, #tpu.memory_space<vmem>>, vector<1x32x8xbf16>
      %154 = vector.shape_cast %153 : vector<1x32x8xbf16> to vector<32x8xbf16>
      %cst_77 = arith.constant dense<0.000000e+00> : vector<8x8xf32>
      %155 = tpu.matmul %2, %154, %cst_77 {dimension_numbers = #tpu.dot_dimension_numbers<[1], [0], [0], [1], [0, 0, 1, 1], [], []>} : vector<8x32xbf16>, vector<32x8xbf16>, vector<8x8xf32> -> vector<8x8xf32>
      %156 = arith.index_cast %arg36 : i32 to index
      %c0_78 = arith.constant 0 : index
      %c0_79 = arith.constant 0 : index
      %157 = vector.load %arg6[%156, %c0_78, %c0_79] : memref<4x1x8xf32, #tpu.memory_space<vmem>>, vector<1x1x8xf32>
      %158 = vector.shape_cast %157 : vector<1x1x8xf32> to vector<1x8xf32>
      %159 = vector.broadcast %158 : vector<1x8xf32> to vector<8x8xf32>
      %160 = arith.addf %155, %159 : vector<8x8xf32>
      %161 = arith.index_cast %arg36 : i32 to index
      %c0_80 = arith.constant 0 : index
      %c0_81 = arith.constant 0 : index
      %162 = vector.load %arg4[%161, %c0_80, %c0_81] : memref<4x32x8xbf16, #tpu.memory_space<vmem>>, vector<1x32x8xbf16>
      %163 = vector.shape_cast %162 : vector<1x32x8xbf16> to vector<32x8xbf16>
      %cst_82 = arith.constant dense<0.000000e+00> : vector<8x8xf32>
      %164 = tpu.matmul %2, %163, %cst_82 {dimension_numbers = #tpu.dot_dimension_numbers<[1], [0], [0], [1], [0, 0, 1, 1], [], []>} : vector<8x32xbf16>, vector<32x8xbf16>, vector<8x8xf32> -> vector<8x8xf32>
      %165 = arith.index_cast %arg36 : i32 to index
      %c0_83 = arith.constant 0 : index
      %c0_84 = arith.constant 0 : index
      %166 = vector.load %arg7[%165, %c0_83, %c0_84] : memref<4x1x8xf32, #tpu.memory_space<vmem>>, vector<1x1x8xf32>
      %167 = vector.shape_cast %166 : vector<1x1x8xf32> to vector<1x8xf32>
      %168 = vector.broadcast %167 : vector<1x8xf32> to vector<8x8xf32>
      %169 = arith.addf %164, %168 : vector<8x8xf32>
      %170 = arith.index_cast %arg36 : i32 to index
      %c0_85 = arith.constant 0 : index
      %c0_86 = arith.constant 0 : index
      %171 = vector.load %arg5[%170, %c0_85, %c0_86] : memref<4x32x8xbf16, #tpu.memory_space<vmem>>, vector<1x32x8xbf16>
      %172 = vector.shape_cast %171 : vector<1x32x8xbf16> to vector<32x8xbf16>
      %cst_87 = arith.constant dense<0.000000e+00> : vector<8x8xf32>
      %173 = tpu.matmul %2, %172, %cst_87 {dimension_numbers = #tpu.dot_dimension_numbers<[1], [0], [0], [1], [0, 0, 1, 1], [], []>} : vector<8x32xbf16>, vector<32x8xbf16>, vector<8x8xf32> -> vector<8x8xf32>
      %174 = arith.index_cast %arg36 : i32 to index
      %c0_88 = arith.constant 0 : index
      %c0_89 = arith.constant 0 : index
      %175 = vector.load %arg8[%174, %c0_88, %c0_89] : memref<4x1x8xf32, #tpu.memory_space<vmem>>, vector<1x1x8xf32>
      %176 = vector.shape_cast %175 : vector<1x1x8xf32> to vector<1x8xf32>
      %177 = vector.broadcast %176 : vector<1x8xf32> to vector<8x8xf32>
      %178 = arith.addf %173, %177 : vector<8x8xf32>
      %179 = arith.truncf %160 : vector<8x8xf32> to vector<8x8xbf16>
      %180 = arith.truncf %169 : vector<8x8xf32> to vector<8x8xbf16>
      %cst_90 = arith.constant dense<0.000000e+00> : vector<8x8xf32>
      %181 = tpu.matmul %179, %180, %cst_90 {dimension_numbers = #tpu.dot_dimension_numbers<[1], [1], [0], [0], [0, 0, 1, 0], [], []>} : vector<8x8xbf16>, vector<8x8xbf16>, vector<8x8xf32> -> vector<8x8xf32>
      %182 = arith.index_cast %arg36 : i32 to index
      %c0_91 = arith.constant 0 : index
      %c0_92 = arith.constant 0 : index
      %183 = vector.load %arg2[%182, %c0_91, %c0_92] : memref<4x8x8xbf16, #tpu.memory_space<vmem>>, vector<1x8x8xbf16>
      %184 = vector.shape_cast %183 : vector<1x8x8xbf16> to vector<8x8xbf16>
      %185 = arith.extf %184 : vector<8x8xbf16> to vector<8x8xf32>
      %186 = arith.addf %181, %185 : vector<8x8xf32>
      %cst_93 = arith.constant dense<0xFF800000> : vector<8xf32>
      %187 = vector.multi_reduction <maximumf>, %186, %cst_93 [1] : vector<8x8xf32> to vector<8xf32>
      %188 = vector.shape_cast %187 : vector<8xf32> to vector<8x1xf32>
      %189 = vector.broadcast %188 : vector<8x1xf32> to vector<8x8xf32>
      %190 = arith.subf %186, %189 : vector<8x8xf32>
      %191 = math.exp %190 : vector<8x8xf32>
      %cst_94 = arith.constant dense<0.000000e+00> : vector<8xf32>
      %192 = vector.multi_reduction <add>, %191, %cst_94 [1] : vector<8x8xf32> to vector<8xf32>
      %193 = vector.shape_cast %192 : vector<8xf32> to vector<8x1xf32>
      %194 = vector.broadcast %193 : vector<8x1xf32> to vector<8x8xf32>
      %195 = arith.divf %191, %194 : vector<8x8xf32>
      %196 = arith.truncf %195 : vector<8x8xf32> to vector<8x8xbf16>
      %197 = arith.truncf %178 : vector<8x8xf32> to vector<8x8xbf16>
      %cst_95 = arith.constant dense<0.000000e+00> : vector<8x8xf32>
      %198 = tpu.matmul %196, %197, %cst_95 {dimension_numbers = #tpu.dot_dimension_numbers<[1], [0], [0], [1], [0, 0, 1, 1], [], []>} : vector<8x8xbf16>, vector<8x8xbf16>, vector<8x8xf32> -> vector<8x8xf32>
      %199 = arith.truncf %198 : vector<8x8xf32> to vector<8x8xbf16>
      %200 = arith.index_cast %arg36 : i32 to index
      %c0_96 = arith.constant 0 : index
      %c0_97 = arith.constant 0 : index
      %201 = vector.load %arg9[%200, %c0_96, %c0_97] : memref<4x8x32xbf16, #tpu.memory_space<vmem>>, vector<1x8x32xbf16>
      %202 = vector.shape_cast %201 : vector<1x8x32xbf16> to vector<8x32xbf16>
      %cst_98 = arith.constant dense<0.000000e+00> : vector<8x32xf32>
      %203 = tpu.matmul %199, %202, %cst_98 {dimension_numbers = #tpu.dot_dimension_numbers<[1], [0], [0], [1], [0, 0, 1, 1], [], []>} : vector<8x8xbf16>, vector<8x32xbf16>, vector<8x32xf32> -> vector<8x32xf32>
      %204 = arith.addf %arg37, %203 : vector<8x32xf32>
      scf.yield %204 : vector<8x32xf32>
    }
    %c4_i32_2 = arith.constant 4 : i32
    %c0_3 = arith.constant 0 : index
    %c0_4 = arith.constant 0 : index
    %6 = vector.load %arg10[%c0_3, %c0_4] : memref<1x32xf32, #tpu.memory_space<vmem>>, vector<1x32xf32>
    %7 = vector.broadcast %6 : vector<1x32xf32> to vector<8x32xf32>
    %8 = arith.addf %5, %7 : vector<8x32xf32>
    %9 = arith.addf %1, %8 : vector<8x32xf32>
    %cst_5 = arith.constant dense<0.000000e+00> : vector<8xf32>
    %10 = vector.multi_reduction <add>, %9, %cst_5 [1] : vector<8x32xf32> to vector<8xf32>
    %11 = vector.shape_cast %10 : vector<8xf32> to vector<8x1xf32>
    %cst_6 = arith.constant 3.200000e+01 : f32
    %12 = vector.broadcast %cst_6 : f32 to vector<8x1xf32>
    %13 = arith.divf %11, %12 : vector<8x1xf32>
    %14 = vector.broadcast %13 : vector<8x1xf32> to vector<8x32xf32>
    %15 = arith.subf %9, %14 : vector<8x32xf32>
    %16 = arith.mulf %15, %15 : vector<8x32xf32>
    %cst_7 = arith.constant dense<0.000000e+00> : vector<8xf32>
    %17 = vector.multi_reduction <add>, %16, %cst_7 [1] : vector<8x32xf32> to vector<8xf32>
    %18 = vector.shape_cast %17 : vector<8xf32> to vector<8x1xf32>
    %cst_8 = arith.constant 3.200000e+01 : f32
    %19 = vector.broadcast %cst_8 : f32 to vector<8x1xf32>
    %20 = arith.divf %18, %19 : vector<8x1xf32>
    %21 = vector.broadcast %13 : vector<8x1xf32> to vector<8x32xf32>
    %22 = arith.subf %9, %21 : vector<8x32xf32>
    %cst_9 = arith.constant 9.99999974E-6 : f32
    %23 = vector.broadcast %cst_9 : f32 to vector<8x1xf32>
    %24 = arith.addf %20, %23 : vector<8x1xf32>
    %25 = math.rsqrt %24 : vector<8x1xf32>
    %26 = vector.broadcast %25 : vector<8x1xf32> to vector<8x32xf32>
    %27 = arith.mulf %22, %26 : vector<8x32xf32>
    %c0_10 = arith.constant 0 : index
    %c0_11 = arith.constant 0 : index
    %28 = vector.load %arg19[%c0_10, %c0_11] : memref<1x32xf32, #tpu.memory_space<vmem>>, vector<1x32xf32>
    %29 = vector.broadcast %28 : vector<1x32xf32> to vector<8x32xf32>
    %30 = arith.mulf %27, %29 : vector<8x32xf32>
    %c0_12 = arith.constant 0 : index
    %c0_13 = arith.constant 0 : index
    %31 = vector.load %arg20[%c0_12, %c0_13] : memref<1x32xf32, #tpu.memory_space<vmem>>, vector<1x32xf32>
    %32 = vector.broadcast %31 : vector<1x32xf32> to vector<8x32xf32>
    %33 = arith.addf %30, %32 : vector<8x32xf32>
    %34 = arith.truncf %33 : vector<8x32xf32> to vector<8x32xbf16>
    %cst_14 = arith.constant 0.000000e+00 : f32
    %35 = vector.broadcast %cst_14 : f32 to vector<8x32xf32>
    %c0_i32_15 = arith.constant 0 : i32
    %c4_i32_16 = arith.constant 4 : i32
    %36 = arith.addi %c0_i32_15, %c4_i32_16 : i32
    %c1_i32_17 = arith.constant 1 : i32
    %37 = scf.for %arg36 = %c0_i32_15 to %36 step %c1_i32_17 iter_args(%arg37 = %35) -> (vector<8x32xf32>)  : i32 {
      %152 = arith.index_cast %arg36 : i32 to index
      %c0_75 = arith.constant 0 : index
      %c0_76 = arith.constant 0 : index
      %153 = vector.load %arg11[%152, %c0_75, %c0_76] : memref<4x32x8xbf16, #tpu.memory_space<vmem>>, vector<1x32x8xbf16>
      %154 = vector.shape_cast %153 : vector<1x32x8xbf16> to vector<32x8xbf16>
      %cst_77 = arith.constant dense<0.000000e+00> : vector<8x8xf32>
      %155 = tpu.matmul %34, %154, %cst_77 {dimension_numbers = #tpu.dot_dimension_numbers<[1], [0], [0], [1], [0, 0, 1, 1], [], []>} : vector<8x32xbf16>, vector<32x8xbf16>, vector<8x8xf32> -> vector<8x8xf32>
      %156 = arith.index_cast %arg36 : i32 to index
      %c0_78 = arith.constant 0 : index
      %c0_79 = arith.constant 0 : index
      %157 = vector.load %arg14[%156, %c0_78, %c0_79] : memref<4x1x8xf32, #tpu.memory_space<vmem>>, vector<1x1x8xf32>
      %158 = vector.shape_cast %157 : vector<1x1x8xf32> to vector<1x8xf32>
      %159 = vector.broadcast %158 : vector<1x8xf32> to vector<8x8xf32>
      %160 = arith.addf %155, %159 : vector<8x8xf32>
      %161 = arith.index_cast %arg36 : i32 to index
      %c0_80 = arith.constant 0 : index
      %c0_81 = arith.constant 0 : index
      %162 = vector.load %arg12[%161, %c0_80, %c0_81] : memref<4x32x8xbf16, #tpu.memory_space<vmem>>, vector<1x32x8xbf16>
      %163 = vector.shape_cast %162 : vector<1x32x8xbf16> to vector<32x8xbf16>
      %cst_82 = arith.constant dense<0.000000e+00> : vector<8x8xf32>
      %164 = tpu.matmul %34, %163, %cst_82 {dimension_numbers = #tpu.dot_dimension_numbers<[1], [0], [0], [1], [0, 0, 1, 1], [], []>} : vector<8x32xbf16>, vector<32x8xbf16>, vector<8x8xf32> -> vector<8x8xf32>
      %165 = arith.index_cast %arg36 : i32 to index
      %c0_83 = arith.constant 0 : index
      %c0_84 = arith.constant 0 : index
      %166 = vector.load %arg15[%165, %c0_83, %c0_84] : memref<4x1x8xf32, #tpu.memory_space<vmem>>, vector<1x1x8xf32>
      %167 = vector.shape_cast %166 : vector<1x1x8xf32> to vector<1x8xf32>
      %168 = vector.broadcast %167 : vector<1x8xf32> to vector<8x8xf32>
      %169 = arith.addf %164, %168 : vector<8x8xf32>
      %170 = arith.index_cast %arg36 : i32 to index
      %c0_85 = arith.constant 0 : index
      %c0_86 = arith.constant 0 : index
      %171 = vector.load %arg13[%170, %c0_85, %c0_86] : memref<4x32x8xbf16, #tpu.memory_space<vmem>>, vector<1x32x8xbf16>
      %172 = vector.shape_cast %171 : vector<1x32x8xbf16> to vector<32x8xbf16>
      %cst_87 = arith.constant dense<0.000000e+00> : vector<8x8xf32>
      %173 = tpu.matmul %34, %172, %cst_87 {dimension_numbers = #tpu.dot_dimension_numbers<[1], [0], [0], [1], [0, 0, 1, 1], [], []>} : vector<8x32xbf16>, vector<32x8xbf16>, vector<8x8xf32> -> vector<8x8xf32>
      %174 = arith.index_cast %arg36 : i32 to index
      %c0_88 = arith.constant 0 : index
      %c0_89 = arith.constant 0 : index
      %175 = vector.load %arg16[%174, %c0_88, %c0_89] : memref<4x1x8xf32, #tpu.memory_space<vmem>>, vector<1x1x8xf32>
      %176 = vector.shape_cast %175 : vector<1x1x8xf32> to vector<1x8xf32>
      %177 = vector.broadcast %176 : vector<1x8xf32> to vector<8x8xf32>
      %178 = arith.addf %173, %177 : vector<8x8xf32>
      %179 = arith.truncf %160 : vector<8x8xf32> to vector<8x8xbf16>
      %180 = arith.truncf %169 : vector<8x8xf32> to vector<8x8xbf16>
      %cst_90 = arith.constant dense<0.000000e+00> : vector<8x8xf32>
      %181 = tpu.matmul %179, %180, %cst_90 {dimension_numbers = #tpu.dot_dimension_numbers<[1], [1], [0], [0], [0, 0, 1, 0], [], []>} : vector<8x8xbf16>, vector<8x8xbf16>, vector<8x8xf32> -> vector<8x8xf32>
      %cst_91 = arith.constant dense<0xFF800000> : vector<8xf32>
      %182 = vector.multi_reduction <maximumf>, %181, %cst_91 [1] : vector<8x8xf32> to vector<8xf32>
      %183 = vector.shape_cast %182 : vector<8xf32> to vector<8x1xf32>
      %184 = vector.broadcast %183 : vector<8x1xf32> to vector<8x8xf32>
      %185 = arith.subf %181, %184 : vector<8x8xf32>
      %186 = math.exp %185 : vector<8x8xf32>
      %cst_92 = arith.constant dense<0.000000e+00> : vector<8xf32>
      %187 = vector.multi_reduction <add>, %186, %cst_92 [1] : vector<8x8xf32> to vector<8xf32>
      %188 = vector.shape_cast %187 : vector<8xf32> to vector<8x1xf32>
      %189 = vector.broadcast %188 : vector<8x1xf32> to vector<8x8xf32>
      %190 = arith.divf %186, %189 : vector<8x8xf32>
      %191 = arith.truncf %190 : vector<8x8xf32> to vector<8x8xbf16>
      %192 = arith.truncf %178 : vector<8x8xf32> to vector<8x8xbf16>
      %cst_93 = arith.constant dense<0.000000e+00> : vector<8x8xf32>
      %193 = tpu.matmul %191, %192, %cst_93 {dimension_numbers = #tpu.dot_dimension_numbers<[1], [0], [0], [1], [0, 0, 1, 1], [], []>} : vector<8x8xbf16>, vector<8x8xbf16>, vector<8x8xf32> -> vector<8x8xf32>
      %194 = arith.truncf %193 : vector<8x8xf32> to vector<8x8xbf16>
      %195 = arith.index_cast %arg36 : i32 to index
      %c0_94 = arith.constant 0 : index
      %c0_95 = arith.constant 0 : index
      %196 = vector.load %arg17[%195, %c0_94, %c0_95] : memref<4x8x32xbf16, #tpu.memory_space<vmem>>, vector<1x8x32xbf16>
      %197 = vector.shape_cast %196 : vector<1x8x32xbf16> to vector<8x32xbf16>
      %cst_96 = arith.constant dense<0.000000e+00> : vector<8x32xf32>
      %198 = tpu.matmul %194, %197, %cst_96 {dimension_numbers = #tpu.dot_dimension_numbers<[1], [0], [0], [1], [0, 0, 1, 1], [], []>} : vector<8x8xbf16>, vector<8x32xbf16>, vector<8x32xf32> -> vector<8x32xf32>
      %199 = arith.addf %arg37, %198 : vector<8x32xf32>
      scf.yield %199 : vector<8x32xf32>
    }
    %c4_i32_18 = arith.constant 4 : i32
    %c0_19 = arith.constant 0 : index
    %c0_20 = arith.constant 0 : index
    %38 = vector.load %arg18[%c0_19, %c0_20] : memref<1x32xf32, #tpu.memory_space<vmem>>, vector<1x32xf32>
    %39 = vector.broadcast %38 : vector<1x32xf32> to vector<8x32xf32>
    %40 = arith.addf %37, %39 : vector<8x32xf32>
    %41 = arith.addf %33, %40 : vector<8x32xf32>
    %cst_21 = arith.constant dense<0.000000e+00> : vector<8xf32>
    %42 = vector.multi_reduction <add>, %41, %cst_21 [1] : vector<8x32xf32> to vector<8xf32>
    %43 = vector.shape_cast %42 : vector<8xf32> to vector<8x1xf32>
    %cst_22 = arith.constant 3.200000e+01 : f32
    %44 = vector.broadcast %cst_22 : f32 to vector<8x1xf32>
    %45 = arith.divf %43, %44 : vector<8x1xf32>
    %46 = vector.broadcast %45 : vector<8x1xf32> to vector<8x32xf32>
    %47 = arith.subf %41, %46 : vector<8x32xf32>
    %48 = arith.mulf %47, %47 : vector<8x32xf32>
    %cst_23 = arith.constant dense<0.000000e+00> : vector<8xf32>
    %49 = vector.multi_reduction <add>, %48, %cst_23 [1] : vector<8x32xf32> to vector<8xf32>
    %50 = vector.shape_cast %49 : vector<8xf32> to vector<8x1xf32>
    %cst_24 = arith.constant 3.200000e+01 : f32
    %51 = vector.broadcast %cst_24 : f32 to vector<8x1xf32>
    %52 = arith.divf %50, %51 : vector<8x1xf32>
    %53 = vector.broadcast %45 : vector<8x1xf32> to vector<8x32xf32>
    %54 = arith.subf %41, %53 : vector<8x32xf32>
    %cst_25 = arith.constant 9.99999974E-6 : f32
    %55 = vector.broadcast %cst_25 : f32 to vector<8x1xf32>
    %56 = arith.addf %52, %55 : vector<8x1xf32>
    %57 = math.rsqrt %56 : vector<8x1xf32>
    %58 = vector.broadcast %57 : vector<8x1xf32> to vector<8x32xf32>
    %59 = arith.mulf %54, %58 : vector<8x32xf32>
    %c0_26 = arith.constant 0 : index
    %c0_27 = arith.constant 0 : index
    %60 = vector.load %arg21[%c0_26, %c0_27] : memref<1x32xf32, #tpu.memory_space<vmem>>, vector<1x32xf32>
    %61 = vector.broadcast %60 : vector<1x32xf32> to vector<8x32xf32>
    %62 = arith.mulf %59, %61 : vector<8x32xf32>
    %c0_28 = arith.constant 0 : index
    %c0_29 = arith.constant 0 : index
    %63 = vector.load %arg22[%c0_28, %c0_29] : memref<1x32xf32, #tpu.memory_space<vmem>>, vector<1x32xf32>
    %64 = vector.broadcast %63 : vector<1x32xf32> to vector<8x32xf32>
    %65 = arith.addf %62, %64 : vector<8x32xf32>
    %66 = vector.extract_strided_slice %65 {offsets = [0, 0], sizes = [4, 32], strides = [1, 1]} : vector<8x32xf32> to vector<4x32xf32>
    %67 = vector.extract_strided_slice %65 {offsets = [4, 0], sizes = [4, 32], strides = [1, 1]} : vector<8x32xf32> to vector<4x32xf32>
    %68 = arith.truncf %66 : vector<4x32xf32> to vector<4x32xbf16>
    %c0_30 = arith.constant 0 : index
    %c0_31 = arith.constant 0 : index
    %69 = vector.load %arg23[%c0_30, %c0_31] : memref<32x64xbf16, #tpu.memory_space<vmem>>, vector<32x64xbf16>
    %cst_32 = arith.constant dense<0.000000e+00> : vector<4x64xf32>
    %70 = tpu.matmul %68, %69, %cst_32 {dimension_numbers = #tpu.dot_dimension_numbers<[1], [0], [0], [1], [0, 0, 1, 1], [], []>} : vector<4x32xbf16>, vector<32x64xbf16>, vector<4x64xf32> -> vector<4x64xf32>
    %c0_33 = arith.constant 0 : index
    %c0_34 = arith.constant 0 : index
    %71 = vector.load %arg24[%c0_33, %c0_34] : memref<1x64xf32, #tpu.memory_space<vmem>>, vector<1x64xf32>
    %72 = vector.broadcast %71 : vector<1x64xf32> to vector<4x64xf32>
    %73 = arith.addf %70, %72 : vector<4x64xf32>
    %cst_35 = arith.constant 0.000000e+00 : f32
    %74 = vector.broadcast %cst_35 : f32 to vector<4x64xf32>
    %75 = arith.maximumf %73, %74 : vector<4x64xf32>
    %76 = arith.truncf %75 : vector<4x64xf32> to vector<4x64xbf16>
    %c0_36 = arith.constant 0 : index
    %c0_37 = arith.constant 0 : index
    %77 = vector.load %arg25[%c0_36, %c0_37] : memref<64x32xbf16, #tpu.memory_space<vmem>>, vector<64x32xbf16>
    %cst_38 = arith.constant dense<0.000000e+00> : vector<4x32xf32>
    %78 = tpu.matmul %76, %77, %cst_38 {dimension_numbers = #tpu.dot_dimension_numbers<[1], [0], [0], [1], [0, 0, 1, 1], [], []>} : vector<4x64xbf16>, vector<64x32xbf16>, vector<4x32xf32> -> vector<4x32xf32>
    %c0_39 = arith.constant 0 : index
    %c0_40 = arith.constant 0 : index
    %79 = vector.load %arg26[%c0_39, %c0_40] : memref<1x32xf32, #tpu.memory_space<vmem>>, vector<1x32xf32>
    %80 = vector.broadcast %79 : vector<1x32xf32> to vector<4x32xf32>
    %81 = arith.addf %78, %80 : vector<4x32xf32>
    %82 = arith.addf %66, %81 : vector<4x32xf32>
    %cst_41 = arith.constant dense<0.000000e+00> : vector<4xf32>
    %83 = vector.multi_reduction <add>, %82, %cst_41 [1] : vector<4x32xf32> to vector<4xf32>
    %84 = vector.shape_cast %83 : vector<4xf32> to vector<4x1xf32>
    %cst_42 = arith.constant 3.200000e+01 : f32
    %85 = vector.broadcast %cst_42 : f32 to vector<4x1xf32>
    %86 = arith.divf %84, %85 : vector<4x1xf32>
    %87 = vector.broadcast %86 : vector<4x1xf32> to vector<4x32xf32>
    %88 = arith.subf %82, %87 : vector<4x32xf32>
    %89 = arith.mulf %88, %88 : vector<4x32xf32>
    %cst_43 = arith.constant dense<0.000000e+00> : vector<4xf32>
    %90 = vector.multi_reduction <add>, %89, %cst_43 [1] : vector<4x32xf32> to vector<4xf32>
    %91 = vector.shape_cast %90 : vector<4xf32> to vector<4x1xf32>
    %cst_44 = arith.constant 3.200000e+01 : f32
    %92 = vector.broadcast %cst_44 : f32 to vector<4x1xf32>
    %93 = arith.divf %91, %92 : vector<4x1xf32>
    %94 = vector.broadcast %86 : vector<4x1xf32> to vector<4x32xf32>
    %95 = arith.subf %82, %94 : vector<4x32xf32>
    %cst_45 = arith.constant 9.99999974E-6 : f32
    %96 = vector.broadcast %cst_45 : f32 to vector<4x1xf32>
    %97 = arith.addf %93, %96 : vector<4x1xf32>
    %98 = math.rsqrt %97 : vector<4x1xf32>
    %99 = vector.broadcast %98 : vector<4x1xf32> to vector<4x32xf32>
    %100 = arith.mulf %95, %99 : vector<4x32xf32>
    %c0_46 = arith.constant 0 : index
    %c0_47 = arith.constant 0 : index
    %101 = vector.load %arg31[%c0_46, %c0_47] : memref<1x32xf32, #tpu.memory_space<vmem>>, vector<1x32xf32>
    %102 = vector.broadcast %101 : vector<1x32xf32> to vector<4x32xf32>
    %103 = arith.mulf %100, %102 : vector<4x32xf32>
    %c0_48 = arith.constant 0 : index
    %c0_49 = arith.constant 0 : index
    %104 = vector.load %arg32[%c0_48, %c0_49] : memref<1x32xf32, #tpu.memory_space<vmem>>, vector<1x32xf32>
    %105 = vector.broadcast %104 : vector<1x32xf32> to vector<4x32xf32>
    %106 = arith.addf %103, %105 : vector<4x32xf32>
    %107 = arith.truncf %67 : vector<4x32xf32> to vector<4x32xbf16>
    %c0_50 = arith.constant 0 : index
    %c0_51 = arith.constant 0 : index
    %108 = vector.load %arg27[%c0_50, %c0_51] : memref<32x64xbf16, #tpu.memory_space<vmem>>, vector<32x64xbf16>
    %cst_52 = arith.constant dense<0.000000e+00> : vector<4x64xf32>
    %109 = tpu.matmul %107, %108, %cst_52 {dimension_numbers = #tpu.dot_dimension_numbers<[1], [0], [0], [1], [0, 0, 1, 1], [], []>} : vector<4x32xbf16>, vector<32x64xbf16>, vector<4x64xf32> -> vector<4x64xf32>
    %c0_53 = arith.constant 0 : index
    %c0_54 = arith.constant 0 : index
    %110 = vector.load %arg28[%c0_53, %c0_54] : memref<1x64xf32, #tpu.memory_space<vmem>>, vector<1x64xf32>
    %111 = vector.broadcast %110 : vector<1x64xf32> to vector<4x64xf32>
    %112 = arith.addf %109, %111 : vector<4x64xf32>
    %cst_55 = arith.constant 0.000000e+00 : f32
    %113 = vector.broadcast %cst_55 : f32 to vector<4x64xf32>
    %114 = arith.maximumf %112, %113 : vector<4x64xf32>
    %115 = arith.truncf %114 : vector<4x64xf32> to vector<4x64xbf16>
    %c0_56 = arith.constant 0 : index
    %c0_57 = arith.constant 0 : index
    %116 = vector.load %arg29[%c0_56, %c0_57] : memref<64x32xbf16, #tpu.memory_space<vmem>>, vector<64x32xbf16>
    %cst_58 = arith.constant dense<0.000000e+00> : vector<4x32xf32>
    %117 = tpu.matmul %115, %116, %cst_58 {dimension_numbers = #tpu.dot_dimension_numbers<[1], [0], [0], [1], [0, 0, 1, 1], [], []>} : vector<4x64xbf16>, vector<64x32xbf16>, vector<4x32xf32> -> vector<4x32xf32>
    %c0_59 = arith.constant 0 : index
    %c0_60 = arith.constant 0 : index
    %118 = vector.load %arg30[%c0_59, %c0_60] : memref<1x32xf32, #tpu.memory_space<vmem>>, vector<1x32xf32>
    %119 = vector.broadcast %118 : vector<1x32xf32> to vector<4x32xf32>
    %120 = arith.addf %117, %119 : vector<4x32xf32>
    %121 = arith.addf %67, %120 : vector<4x32xf32>
    %cst_61 = arith.constant dense<0.000000e+00> : vector<4xf32>
    %122 = vector.multi_reduction <add>, %121, %cst_61 [1] : vector<4x32xf32> to vector<4xf32>
    %123 = vector.shape_cast %122 : vector<4xf32> to vector<4x1xf32>
    %cst_62 = arith.constant 3.200000e+01 : f32
    %124 = vector.broadcast %cst_62 : f32 to vector<4x1xf32>
    %125 = arith.divf %123, %124 : vector<4x1xf32>
    %126 = vector.broadcast %125 : vector<4x1xf32> to vector<4x32xf32>
    %127 = arith.subf %121, %126 : vector<4x32xf32>
    %128 = arith.mulf %127, %127 : vector<4x32xf32>
    %cst_63 = arith.constant dense<0.000000e+00> : vector<4xf32>
    %129 = vector.multi_reduction <add>, %128, %cst_63 [1] : vector<4x32xf32> to vector<4xf32>
    %130 = vector.shape_cast %129 : vector<4xf32> to vector<4x1xf32>
    %cst_64 = arith.constant 3.200000e+01 : f32
    %131 = vector.broadcast %cst_64 : f32 to vector<4x1xf32>
    %132 = arith.divf %130, %131 : vector<4x1xf32>
    %133 = vector.broadcast %125 : vector<4x1xf32> to vector<4x32xf32>
    %134 = arith.subf %121, %133 : vector<4x32xf32>
    %cst_65 = arith.constant 9.99999974E-6 : f32
    %135 = vector.broadcast %cst_65 : f32 to vector<4x1xf32>
    %136 = arith.addf %132, %135 : vector<4x1xf32>
    %137 = math.rsqrt %136 : vector<4x1xf32>
    %138 = vector.broadcast %137 : vector<4x1xf32> to vector<4x32xf32>
    %139 = arith.mulf %134, %138 : vector<4x32xf32>
    %c0_66 = arith.constant 0 : index
    %c0_67 = arith.constant 0 : index
    %140 = vector.load %arg33[%c0_66, %c0_67] : memref<1x32xf32, #tpu.memory_space<vmem>>, vector<1x32xf32>
    %141 = vector.broadcast %140 : vector<1x32xf32> to vector<4x32xf32>
    %142 = arith.mulf %139, %141 : vector<4x32xf32>
    %c0_68 = arith.constant 0 : index
    %c0_69 = arith.constant 0 : index
    %143 = vector.load %arg34[%c0_68, %c0_69] : memref<1x32xf32, #tpu.memory_space<vmem>>, vector<1x32xf32>
    %144 = vector.broadcast %143 : vector<1x32xf32> to vector<4x32xf32>
    %145 = arith.addf %142, %144 : vector<4x32xf32>
    %c0_70 = arith.constant 0 : index
    %c0_71 = arith.constant 0 : index
    %c0_72 = arith.constant 0 : index
    %146 = vector.load %arg35[%c0_70, %c0_71, %c0_72] : memref<1x8x32xf32, #tpu.memory_space<vmem>>, vector<1x4x32xf32>
    %147 = vector.shape_cast %146 : vector<1x4x32xf32> to vector<4x32xf32>
    %148 = vector.shape_cast %106 : vector<4x32xf32> to vector<1x4x32xf32>
    tpu.vector_store %arg35[%c0_70, %c0_71, %c0_72], %148 {strides = array<i32>} : memref<1x8x32xf32, #tpu.memory_space<vmem>>, vector<1x4x32xf32>,
    %c0_73 = arith.constant 0 : index
    %c4 = arith.constant 4 : index
    %c0_74 = arith.constant 0 : index
    %149 = vector.load %arg35[%c0_73, %c4, %c0_74] : memref<1x8x32xf32, #tpu.memory_space<vmem>>, vector<1x4x32xf32>
    %150 = vector.shape_cast %149 : vector<1x4x32xf32> to vector<4x32xf32>
    %151 = vector.shape_cast %145 : vector<4x32xf32> to vector<1x4x32xf32>
    tpu.vector_store %arg35[%c0_73, %c4, %c0_74], %151 {strides = array<i32>} : memref<1x8x32xf32, #tpu.memory_space<vmem>>, vector<1x4x32xf32>,
    return
  }
  func.func @transform_0(%arg0: i32) -> (i32, i32, i32) {
    %c0_i32 = arith.constant 0 : i32
    %c0_i32_0 = arith.constant 0 : i32
    %c0_i32_1 = arith.constant 0 : i32
    return %arg0, %c0_i32, %c0_i32_0 : i32, i32, i32
  }
  func.func @transform_1(%arg0: i32) -> (i32, i32, i32) {
    %c0_i32 = arith.constant 0 : i32
    %c0_i32_0 = arith.constant 0 : i32
    %c0_i32_1 = arith.constant 0 : i32
    return %arg0, %c0_i32, %c0_i32_0 : i32, i32, i32
  }
  func.func @transform_2(%arg0: i32) -> (i32, i32, i32) {
    %c0_i32 = arith.constant 0 : i32
    %c0_i32_0 = arith.constant 0 : i32
    %c0_i32_1 = arith.constant 0 : i32
    %c0_i32_2 = arith.constant 0 : i32
    return %c0_i32, %c0_i32_0, %c0_i32_1 : i32, i32, i32
  }
  func.func @transform_3(%arg0: i32) -> (i32, i32, i32) {
    %c0_i32 = arith.constant 0 : i32
    %c0_i32_0 = arith.constant 0 : i32
    %c0_i32_1 = arith.constant 0 : i32
    %c0_i32_2 = arith.constant 0 : i32
    return %c0_i32, %c0_i32_0, %c0_i32_1 : i32, i32, i32
  }
  func.func @transform_4(%arg0: i32) -> (i32, i32, i32) {
    %c0_i32 = arith.constant 0 : i32
    %c0_i32_0 = arith.constant 0 : i32
    %c0_i32_1 = arith.constant 0 : i32
    %c0_i32_2 = arith.constant 0 : i32
    return %c0_i32, %c0_i32_0, %c0_i32_1 : i32, i32, i32
  }
  func.func @transform_5(%arg0: i32) -> (i32, i32, i32) {
    %c0_i32 = arith.constant 0 : i32
    %c0_i32_0 = arith.constant 0 : i32
    %c0_i32_1 = arith.constant 0 : i32
    %c0_i32_2 = arith.constant 0 : i32
    return %c0_i32, %c0_i32_0, %c0_i32_1 : i32, i32, i32
  }
  func.func @transform_6(%arg0: i32) -> (i32, i32, i32) {
    %c0_i32 = arith.constant 0 : i32
    %c0_i32_0 = arith.constant 0 : i32
    %c0_i32_1 = arith.constant 0 : i32
    %c0_i32_2 = arith.constant 0 : i32
    return %c0_i32, %c0_i32_0, %c0_i32_1 : i32, i32, i32
  }
  func.func @transform_7(%arg0: i32) -> (i32, i32, i32) {
    %c0_i32 = arith.constant 0 : i32
    %c0_i32_0 = arith.constant 0 : i32
    %c0_i32_1 = arith.constant 0 : i32
    %c0_i32_2 = arith.constant 0 : i32
    return %c0_i32, %c0_i32_0, %c0_i32_1 : i32, i32, i32
  }
  func.func @transform_8(%arg0: i32) -> (i32, i32, i32) {
    %c0_i32 = arith.constant 0 : i32
    %c0_i32_0 = arith.constant 0 : i32
    %c0_i32_1 = arith.constant 0 : i32
    %c0_i32_2 = arith.constant 0 : i32
    return %c0_i32, %c0_i32_0, %c0_i32_1 : i32, i32, i32
  }
  func.func @transform_9(%arg0: i32) -> (i32, i32) {
    %c0_i32 = arith.constant 0 : i32
    %c0_i32_0 = arith.constant 0 : i32
    %c0_i32_1 = arith.constant 0 : i32
    return %c0_i32, %c0_i32_0 : i32, i32
  }
  func.func @transform_10(%arg0: i32) -> (i32, i32, i32) {
    %c0_i32 = arith.constant 0 : i32
    %c0_i32_0 = arith.constant 0 : i32
    %c0_i32_1 = arith.constant 0 : i32
    %c0_i32_2 = arith.constant 0 : i32
    return %c0_i32, %c0_i32_0, %c0_i32_1 : i32, i32, i32
  }
  func.func @transform_11(%arg0: i32) -> (i32, i32, i32) {
    %c0_i32 = arith.constant 0 : i32
    %c0_i32_0 = arith.constant 0 : i32
    %c0_i32_1 = arith.constant 0 : i32
    %c0_i32_2 = arith.constant 0 : i32
    return %c0_i32, %c0_i32_0, %c0_i32_1 : i32, i32, i32
  }
  func.func @transform_12(%arg0: i32) -> (i32, i32, i32) {
    %c0_i32 = arith.constant 0 : i32
    %c0_i32_0 = arith.constant 0 : i32
    %c0_i32_1 = arith.constant 0 : i32
    %c0_i32_2 = arith.constant 0 : i32
    return %c0_i32, %c0_i32_0, %c0_i32_1 : i32, i32, i32
  }
  func.func @transform_13(%arg0: i32) -> (i32, i32, i32) {
    %c0_i32 = arith.constant 0 : i32
    %c0_i32_0 = arith.constant 0 : i32
    %c0_i32_1 = arith.constant 0 : i32
    %c0_i32_2 = arith.constant 0 : i32
    return %c0_i32, %c0_i32_0, %c0_i32_1 : i32, i32, i32
  }
  func.func @transform_14(%arg0: i32) -> (i32, i32, i32) {
    %c0_i32 = arith.constant 0 : i32
    %c0_i32_0 = arith.constant 0 : i32
    %c0_i32_1 = arith.constant 0 : i32
    %c0_i32_2 = arith.constant 0 : i32
    return %c0_i32, %c0_i32_0, %c0_i32_1 : i32, i32, i32
  }
  func.func @transform_15(%arg0: i32) -> (i32, i32, i32) {
    %c0_i32 = arith.constant 0 : i32
    %c0_i32_0 = arith.constant 0 : i32
    %c0_i32_1 = arith.constant 0 : i32
    %c0_i32_2 = arith.constant 0 : i32
    return %c0_i32, %c0_i32_0, %c0_i32_1 : i32, i32, i32
  }
  func.func @transform_16(%arg0: i32) -> (i32, i32, i32) {
    %c0_i32 = arith.constant 0 : i32
    %c0_i32_0 = arith.constant 0 : i32
    %c0_i32_1 = arith.constant 0 : i32
    %c0_i32_2 = arith.constant 0 : i32
    return %c0_i32, %c0_i32_0, %c0_i32_1 : i32, i32, i32
  }
  func.func @transform_17(%arg0: i32) -> (i32, i32) {
    %c0_i32 = arith.constant 0 : i32
    %c0_i32_0 = arith.constant 0 : i32
    %c0_i32_1 = arith.constant 0 : i32
    return %c0_i32, %c0_i32_0 : i32, i32
  }
  func.func @transform_18(%arg0: i32) -> (i32, i32) {
    %c0_i32 = arith.constant 0 : i32
    %c0_i32_0 = arith.constant 0 : i32
    %c0_i32_1 = arith.constant 0 : i32
    return %c0_i32, %c0_i32_0 : i32, i32
  }
  func.func @transform_19(%arg0: i32) -> (i32, i32) {
    %c0_i32 = arith.constant 0 : i32
    %c0_i32_0 = arith.constant 0 : i32
    %c0_i32_1 = arith.constant 0 : i32
    return %c0_i32, %c0_i32_0 : i32, i32
  }
  func.func @transform_20(%arg0: i32) -> (i32, i32) {
    %c0_i32 = arith.constant 0 : i32
    %c0_i32_0 = arith.constant 0 : i32
    %c0_i32_1 = arith.constant 0 : i32
    return %c0_i32, %c0_i32_0 : i32, i32
  }
  func.func @transform_21(%arg0: i32) -> (i32, i32) {
    %c0_i32 = arith.constant 0 : i32
    %c0_i32_0 = arith.constant 0 : i32
    %c0_i32_1 = arith.constant 0 : i32
    return %c0_i32, %c0_i32_0 : i32, i32
  }
  func.func @transform_22(%arg0: i32) -> (i32, i32) {
    %c0_i32 = arith.constant 0 : i32
    %c0_i32_0 = arith.constant 0 : i32
    %c0_i32_1 = arith.constant 0 : i32
    return %c0_i32, %c0_i32_0 : i32, i32
  }
  func.func @transform_23(%arg0: i32) -> (i32, i32) {
    %c0_i32 = arith.constant 0 : i32
    %c0_i32_0 = arith.constant 0 : i32
    %c0_i32_1 = arith.constant 0 : i32
    return %c0_i32, %c0_i32_0 : i32, i32
  }
  func.func @transform_24(%arg0: i32) -> (i32, i32) {
    %c0_i32 = arith.constant 0 : i32
    %c0_i32_0 = arith.constant 0 : i32
    %c0_i32_1 = arith.constant 0 : i32
    return %c0_i32, %c0_i32_0 : i32, i32
  }
  func.func @transform_25(%arg0: i32) -> (i32, i32) {
    %c0_i32 = arith.constant 0 : i32
    %c0_i32_0 = arith.constant 0 : i32
    %c0_i32_1 = arith.constant 0 : i32
    return %c0_i32, %c0_i32_0 : i32, i32
  }
  func.func @transform_26(%arg0: i32) -> (i32, i32) {
    %c0_i32 = arith.constant 0 : i32
    %c0_i32_0 = arith.constant 0 : i32
    %c0_i32_1 = arith.constant 0 : i32
    return %c0_i32, %c0_i32_0 : i32, i32
  }
  func.func @transform_27(%arg0: i32) -> (i32, i32) {
    %c0_i32 = arith.constant 0 : i32
    %c0_i32_0 = arith.constant 0 : i32
    %c0_i32_1 = arith.constant 0 : i32
    return %c0_i32, %c0_i32_0 : i32, i32
  }
  func.func @transform_28(%arg0: i32) -> (i32, i32) {
    %c0_i32 = arith.constant 0 : i32
    %c0_i32_0 = arith.constant 0 : i32
    %c0_i32_1 = arith.constant 0 : i32
    return %c0_i32, %c0_i32_0 : i32, i32
  }
  func.func @transform_29(%arg0: i32) -> (i32, i32) {
    %c0_i32 = arith.constant 0 : i32
    %c0_i32_0 = arith.constant 0 : i32
    %c0_i32_1 = arith.constant 0 : i32
    return %c0_i32, %c0_i32_0 : i32, i32
  }
  func.func @transform_30(%arg0: i32) -> (i32, i32) {
    %c0_i32 = arith.constant 0 : i32
    %c0_i32_0 = arith.constant 0 : i32
    %c0_i32_1 = arith.constant 0 : i32
    return %c0_i32, %c0_i32_0 : i32, i32
  }
  func.func @transform_31(%arg0: i32) -> (i32, i32) {
    %c0_i32 = arith.constant 0 : i32
    %c0_i32_0 = arith.constant 0 : i32
    %c0_i32_1 = arith.constant 0 : i32
    return %c0_i32, %c0_i32_0 : i32, i32
  }
  func.func @transform_32(%arg0: i32) -> (i32, i32) {
    %c0_i32 = arith.constant 0 : i32
    %c0_i32_0 = arith.constant 0 : i32
    %c0_i32_1 = arith.constant 0 : i32
    return %c0_i32, %c0_i32_0 : i32, i32
  }
  func.func @transform_33(%arg0: i32) -> (i32, i32) {
    %c0_i32 = arith.constant 0 : i32
    %c0_i32_0 = arith.constant 0 : i32
    %c0_i32_1 = arith.constant 0 : i32
    return %c0_i32, %c0_i32_0 : i32, i32
  }
  func.func @transform_34(%arg0: i32) -> (i32, i32, i32) {
    %c0_i32 = arith.constant 0 : i32
    %c0_i32_0 = arith.constant 0 : i32
    %c0_i32_1 = arith.constant 0 : i32
    return %arg0, %c0_i32, %c0_i32_0 : i32, i32, i32
  }
}

</mosaic_0001>

<llo_original>
// kernel: decoder_layer_forward.1
$region0: #{decoder_layer_forward.1}
  #allocation0 [shape = 'u32[]', space=smem, size = 0x4, offset = 0x4, fixed_abs, tag = 'smem constant byte address 0x4 - core index']
  #allocation1 [shape = 'u32[144,128]{1,0:T(1,128)}', space=vmem, size = 0x12000, scoped, tag = 'internal scratch']
  %s0 = inlined_call_operand.smem [shape: u32[35], index: -1, kind: input, shape index: {}]
  %s1 = sld [smem:[%s0]]
  %s2 = scalar_lea.smem %s0, 1
  %s3 = sld [smem:[%s2]]
  %s4 = scalar_lea.smem %s0, 2
  %s5 = sld [smem:[%s4]]
  %s6 = scalar_lea.smem %s0, 3
  %s7 = sld [smem:[%s6]]
  %s8 = scalar_lea.smem %s0, 4
  %s9 = sld [smem:[%s8]]
  %s10 = scalar_lea.smem %s0, 5
  %s11 = sld [smem:[%s10]]
  %s12 = scalar_lea.smem %s0, 6
  %s13 = sld [smem:[%s12]]
  %s14 = scalar_lea.smem %s0, 7
  %s15 = sld [smem:[%s14]]
  %s16 = scalar_lea.smem %s0, 8
  %s17 = sld [smem:[%s16]]
  %s18 = scalar_lea.smem %s0, 9
  %s19 = sld [smem:[%s18]]
  %s20 = scalar_lea.smem %s0, 10
  %s21 = sld [smem:[%s20]]
  %s22 = scalar_lea.smem %s0, 11
  %s23 = sld [smem:[%s22]]
  %s24 = scalar_lea.smem %s0, 12
  %s25 = sld [smem:[%s24]]
  %s26 = scalar_lea.smem %s0, 13
  %s27 = sld [smem:[%s26]]
  %s28 = scalar_lea.smem %s0, 14
  %s29 = sld [smem:[%s28]]
  %s30 = scalar_lea.smem %s0, 15
  %s31 = sld [smem:[%s30]]
  %s32 = scalar_lea.smem %s0, 16
  %s33 = sld [smem:[%s32]]
  %s34 = scalar_lea.smem %s0, 17
  %s35 = sld [smem:[%s34]]
  %s36 = scalar_lea.smem %s0, 18
  %s37 = sld [smem:[%s36]]
  %s38 = scalar_lea.smem %s0, 19
  %s39 = sld [smem:[%s38]]
  %s40 = scalar_lea.smem %s0, 20
  %s41 = sld [smem:[%s40]]
  %s42 = scalar_lea.smem %s0, 21
  %s43 = sld [smem:[%s42]]
  %s44 = scalar_lea.smem %s0, 22
  %s45 = sld [smem:[%s44]]
  %s46 = scalar_lea.smem %s0, 23
  %s47 = sld [smem:[%s46]]
  %s48 = scalar_lea.smem %s0, 24
  %s49 = sld [smem:[%s48]]
  %s50 = scalar_lea.smem %s0, 25
  %s51 = sld [smem:[%s50]]
  %s52 = scalar_lea.smem %s0, 26
  %s53 = sld [smem:[%s52]]
  %s54 = scalar_lea.smem %s0, 27
  %s55 = sld [smem:[%s54]]
  %s56 = scalar_lea.smem %s0, 28
  %s57 = sld [smem:[%s56]]
  %s58 = scalar_lea.smem %s0, 29
  %s59 = sld [smem:[%s58]]
  %s60 = scalar_lea.smem %s0, 30
  %s61 = sld [smem:[%s60]]
  %s62 = scalar_lea.smem %s0, 31
  %s63 = sld [smem:[%s62]]
  %s64 = scalar_lea.smem %s0, 32
  %s65 = sld [smem:[%s64]]
  %s66 = scalar_lea.smem %s0, 33
  %s67 = sld [smem:[%s66]]
  %s68 = scalar_lea.smem %s0, 34
  %s69 = sld [smem:[%s68]]
  %s70 = sld [smem:[#allocation0]]
  $region183: #{decoder_layer_forward.1} parent=0
    _
  %s72 = ssub.s32 1, %s70
  %s73 = scalar_select 0, %s72, %s70
  loop: start=0, step=1, limit=4
  $region2: #{decoder_layer_forward.1} parent=0 // loop_pre_header
    _
  $region3: #{decoder_layer_forward.1} parent=0 // loop_header
    %s75 = sphi 0, %s79
    %p76 = scmp.ge.s32.totalorder %s75, 4
    %s85 = sphi 0, %s87
    %s88 = sphi 0, %s85
    %s89 = sphi 0, %s88
    %s105 = sphi 0, %s89
    %s111 = sphi 0, %s113
    %s114 = sphi 0, %s111
    %s115 = sphi 0, %s114
    %s131 = sphi 0, %s115
    %s135 = sphi 0, %s135
    %s137 = sphi 0, %s135
    %s138 = sphi 0, %s137
    %s152 = sphi 0, %s138
    %s156 = sphi 0, %s156
    %s158 = sphi 0, %s156
    %s159 = sphi 0, %s158
    %s173 = sphi 0, %s159
    %s177 = sphi 0, %s177
    %s179 = sphi 0, %s177
    %s180 = sphi 0, %s179
    %s194 = sphi 0, %s180
    %s198 = sphi 0, %s198
    %s200 = sphi 0, %s198
    %s201 = sphi 0, %s200
    %s215 = sphi 0, %s201
    %s219 = sphi 0, %s219
    %s221 = sphi 0, %s219
    %s222 = sphi 0, %s221
    %s236 = sphi 0, %s222
    %s240 = sphi 0, %s240
    %s242 = sphi 0, %s240
    %s243 = sphi 0, %s242
    %s257 = sphi 0, %s243
    %s261 = sphi 0, %s261
    %s263 = sphi 0, %s261
    %s264 = sphi 0, %s263
    %s278 = sphi 0, %s264
    %s282 = sphi 0, %s282
    %s284 = sphi 0, %s282
    %s285 = sphi 0, %s284
    %s299 = sphi 0, %s285
    %s303 = sphi 0, %s303
    %s305 = sphi 0, %s303
    %s306 = sphi 0, %s305
    %s320 = sphi 0, %s306
    %s324 = sphi 0, %s324
    %s326 = sphi 0, %s324
    %s327 = sphi 0, %s326
    %s341 = sphi 0, %s327
    %s345 = sphi 0, %s345
    %s347 = sphi 0, %s345
    %s348 = sphi 0, %s347
    %s362 = sphi 0, %s348
    %s366 = sphi 0, %s366
    %s368 = sphi 0, %s366
    %s369 = sphi 0, %s368
    %s383 = sphi 0, %s369
    %s387 = sphi 0, %s387
    %s389 = sphi 0, %s387
    %s390 = sphi 0, %s389
    %s404 = sphi 0, %s390
    %s408 = sphi 0, %s408
    %s410 = sphi 0, %s408
    %s411 = sphi 0, %s410
    %s425 = sphi 0, %s411
    %s429 = sphi 0, %s429
    %s431 = sphi 0, %s429
    %s432 = sphi 0, %s431
    %s446 = sphi 0, %s432
    %s450 = sphi 0, %s450
    %s452 = sphi 0, %s450
    %s453 = sphi 0, %s452
    %s467 = sphi 0, %s453
    %s471 = sphi 0, %s471
    %s473 = sphi 0, %s471
    %s474 = sphi 0, %s473
    %s488 = sphi 0, %s474
    %s492 = sphi 0, %s492
    %s494 = sphi 0, %s492
    %s495 = sphi 0, %s494
    %s509 = sphi 0, %s495
    %s513 = sphi 0, %s513
    %s515 = sphi 0, %s513
    %s516 = sphi 0, %s515
    %s530 = sphi 0, %s516
    %s534 = sphi 0, %s534
    %s536 = sphi 0, %s534
    %s537 = sphi 0, %s536
    %s551 = sphi 0, %s537
    %s555 = sphi 0, %s555
    %s557 = sphi 0, %s555
    %s558 = sphi 0, %s557
    %s572 = sphi 0, %s558
    %s576 = sphi 0, %s576
    %s578 = sphi 0, %s576
    %s579 = sphi 0, %s578
    %s593 = sphi 0, %s579
    %s597 = sphi 0, %s597
    %s599 = sphi 0, %s597
    %s600 = sphi 0, %s599
    %s614 = sphi 0, %s600
    %s618 = sphi 0, %s618
    %s620 = sphi 0, %s618
    %s621 = sphi 0, %s620
    %s635 = sphi 0, %s621
    %s639 = sphi 0, %s639
    %s641 = sphi 0, %s639
    %s642 = sphi 0, %s641
    %s656 = sphi 0, %s642
    %s660 = sphi 0, %s660
    %s662 = sphi 0, %s660
    %s663 = sphi 0, %s662
    %s677 = sphi 0, %s663
    %s681 = sphi 0, %s681
    %s683 = sphi 0, %s681
    %s684 = sphi 0, %s683
    %s698 = sphi 0, %s684
    %s702 = sphi 0, %s702
    %s704 = sphi 0, %s702
    %s705 = sphi 0, %s704
    %s719 = sphi 0, %s705
    %s723 = sphi 0, %s723
    %s725 = sphi 0, %s723
    %s726 = sphi 0, %s725
    %s740 = sphi 0, %s726
    %s744 = sphi 0, %s744
    %s746 = sphi 0, %s744
    %s747 = sphi 0, %s746
    %s761 = sphi 0, %s747
    %s765 = sphi 0, %s765
    %s767 = sphi 0, %s765
    %s768 = sphi 0, %s767
    %s782 = sphi 0, %s768
    %s786 = sphi 0, %s786
    %s788 = sphi 0, %s786
    %s789 = sphi 0, %s788
    %s803 = sphi 0, %s789
    %s809 = sphi 0, %s811
    %s812 = sphi 0, %s809
    %s813 = sphi 0, %s812
    %s829 = sphi 0, %s813
  $region4: #{decoder_layer_forward.1} parent=0 // loop_header_branch
    %78 = sbr.rel (%p76) target = $region8
  $region5: #{decoder_layer_forward.1} parent=0 // loop_body
    %s80 = ssub.s32 %s75, 1
    %s81 = ssub.s32 %s75, 2
    %s82 = sadd.s32 %s75, 1
    %s83 = ssub.s32 %s75, %s82
    %p84 = scmp.eq.s32.totalorder %s83, 0
    %s86 = sadd.s32 %s85, 1
    %s87 = scalar_select %p84, %s85, %s86
    %p90 = pneg %p84
    %p91 = scmp.eq.s32.totalorder %s75, 1
    %p92 = por %p90, %p91
    %p93 = scmp.ne.s32.totalorder %s85, %s88
    %p94 = scmp.eq.s32.totalorder %s75, 0
    %p95 = por %p93, %p94
    %p96 = scmp.ne.s32.totalorder %s85, %s88
    %p97 = scmp.eq.s32.totalorder %s80, 1
    %p98 = por %p96, %p97
    %p99 = scmp.ne.s32.totalorder %s88, %s89
    %p100 = scmp.eq.s32.totalorder %s80, 0
    %p101 = por %p99, %p100
    %p102 = scmp.ne.s32.totalorder %s88, %s89
    %p103 = scmp.eq.s32.totalorder %s81, 1
    %p104 = por %p102, %p103
    %p106 = scmp.ne.s32.totalorder %s89, %s105
    %p107 = scmp.eq.s32.totalorder %s81, 0
    %p108 = por %p106, %p107
    %s109 = ssub.s32 %s75, %s82
    %p110 = scmp.eq.s32.totalorder %s109, 0
    %s112 = sadd.s32 %s111, 1
    %s113 = scalar_select %p110, %s111, %s112
    %p116 = pneg %p110
    %p117 = scmp.eq.s32.totalorder %s75, 1
    %p118 = por %p116, %p117
    %p119 = scmp.ne.s32.totalorder %s111, %s114
    %p120 = scmp.eq.s32.totalorder %s75, 0
    %p121 = por %p119, %p120
    %p122 = scmp.ne.s32.totalorder %s111, %s114
    %p123 = scmp.eq.s32.totalorder %s80, 1
    %p124 = por %p122, %p123
    %p125 = scmp.ne.s32.totalorder %s114, %s115
    %p126 = scmp.eq.s32.totalorder %s80, 0
    %p127 = por %p125, %p126
    %p128 = scmp.ne.s32.totalorder %s114, %s115
    %p129 = scmp.eq.s32.totalorder %s81, 1
    %p130 = por %p128, %p129
    %p132 = scmp.ne.s32.totalorder %s115, %s131
    %p133 = scmp.eq.s32.totalorder %s81, 0
    %p134 = por %p132, %p133
    %s136 = sadd.s32 %s135, 1
    %p139 = scmp.eq.s32.totalorder %s75, 1
    %p140 = scmp.ne.s32.totalorder %s135, %s137
    %p141 = scmp.eq.s32.totalorder %s75, 0
    %p142 = por %p140, %p141
    %p143 = scmp.ne.s32.totalorder %s135, %s137
    %p144 = scmp.eq.s32.totalorder %s80, 1
    %p145 = por %p143, %p144
    %p146 = scmp.ne.s32.totalorder %s137, %s138
    %p147 = scmp.eq.s32.totalorder %s80, 0
    %p148 = por %p146, %p147
    %p149 = scmp.ne.s32.totalorder %s137, %s138
    %p150 = scmp.eq.s32.totalorder %s81, 1
    %p151 = por %p149, %p150
    %p153 = scmp.ne.s32.totalorder %s138, %s152
    %p154 = scmp.eq.s32.totalorder %s81, 0
    %p155 = por %p153, %p154
    %s157 = sadd.s32 %s156, 1
    %p160 = scmp.eq.s32.totalorder %s75, 1
    %p161 = scmp.ne.s32.totalorder %s156, %s158
    %p162 = scmp.eq.s32.totalorder %s75, 0
    %p163 = por %p161, %p162
    %p164 = scmp.ne.s32.totalorder %s156, %s158
    %p165 = scmp.eq.s32.totalorder %s80, 1
    %p166 = por %p164, %p165
    %p167 = scmp.ne.s32.totalorder %s158, %s159
    %p168 = scmp.eq.s32.totalorder %s80, 0
    %p169 = por %p167, %p168
    %p170 = scmp.ne.s32.totalorder %s158, %s159
    %p171 = scmp.eq.s32.totalorder %s81, 1
    %p172 = por %p170, %p171
    %p174 = scmp.ne.s32.totalorder %s159, %s173
    %p175 = scmp.eq.s32.totalorder %s81, 0
    %p176 = por %p174, %p175
    %s178 = sadd.s32 %s177, 1
    %p181 = scmp.eq.s32.totalorder %s75, 1
    %p182 = scmp.ne.s32.totalorder %s177, %s179
    %p183 = scmp.eq.s32.totalorder %s75, 0
    %p184 = por %p182, %p183
    %p185 = scmp.ne.s32.totalorder %s177, %s179
    %p186 = scmp.eq.s32.totalorder %s80, 1
    %p187 = por %p185, %p186
    %p188 = scmp.ne.s32.totalorder %s179, %s180
    %p189 = scmp.eq.s32.totalorder %s80, 0
    %p190 = por %p188, %p189
    %p191 = scmp.ne.s32.totalorder %s179, %s180
    %p192 = scmp.eq.s32.totalorder %s81, 1
    %p193 = por %p191, %p192
    %p195 = scmp.ne.s32.totalorder %s180, %s194
    %p196 = scmp.eq.s32.totalorder %s81, 0
    %p197 = por %p195, %p196
    %s199 = sadd.s32 %s198, 1
    %p202 = scmp.eq.s32.totalorder %s75, 1
    %p203 = scmp.ne.s32.totalorder %s198, %s200
    %p204 = scmp.eq.s32.totalorder %s75, 0
    %p205 = por %p203, %p204
    %p206 = scmp.ne.s32.totalorder %s198, %s200
    %p207 = scmp.eq.s32.totalorder %s80, 1
    %p208 = por %p206, %p207
    %p209 = scmp.ne.s32.totalorder %s200, %s201
    %p210 = scmp.eq.s32.totalorder %s80, 0
    %p211 = por %p209, %p210
    %p212 = scmp.ne.s32.totalorder %s200, %s201
    %p213 = scmp.eq.s32.totalorder %s81, 1
    %p214 = por %p212, %p213
    %p216 = scmp.ne.s32.totalorder %s201, %s215
    %p217 = scmp.eq.s32.totalorder %s81, 0
    %p218 = por %p216, %p217
    %s220 = sadd.s32 %s219, 1
    %p223 = scmp.eq.s32.totalorder %s75, 1
    %p224 = scmp.ne.s32.totalorder %s219, %s221
    %p225 = scmp.eq.s32.totalorder %s75, 0
    %p226 = por %p224, %p225
    %p227 = scmp.ne.s32.totalorder %s219, %s221
    %p228 = scmp.eq.s32.totalorder %s80, 1
    %p229 = por %p227, %p228
    %p230 = scmp.ne.s32.totalorder %s221, %s222
    %p231 = scmp.eq.s32.totalorder %s80, 0
    %p232 = por %p230, %p231
    %p233 = scmp.ne.s32.totalorder %s221, %s222
    %p234 = scmp.eq.s32.totalorder %s81, 1
    %p235 = por %p233, %p234
    %p237 = scmp.ne.s32.totalorder %s222, %s236
    %p238 = scmp.eq.s32.totalorder %s81, 0
    %p239 = por %p237, %p238
    %s241 = sadd.s32 %s240, 1
    %p244 = scmp.eq.s32.totalorder %s75, 1
    %p245 = scmp.ne.s32.totalorder %s240, %s242
    %p246 = scmp.eq.s32.totalorder %s75, 0
    %p247 = por %p245, %p246
    %p248 = scmp.ne.s32.totalorder %s240, %s242
    %p249 = scmp.eq.s32.totalorder %s80, 1
    %p250 = por %p248, %p249
    %p251 = scmp.ne.s32.totalorder %s242, %s243
    %p252 = scmp.eq.s32.totalorder %s80, 0
    %p253 = por %p251, %p252
    %p254 = scmp.ne.s32.totalorder %s242, %s243
    %p255 = scmp.eq.s32.totalorder %s81, 1
    %p256 = por %p254, %p255
    %p258 = scmp.ne.s32.totalorder %s243, %s257
    %p259 = scmp.eq.s32.totalorder %s81, 0
    %p260 = por %p258, %p259
    %s262 = sadd.s32 %s261, 1
    %p265 = scmp.eq.s32.totalorder %s75, 1
    %p266 = scmp.ne.s32.totalorder %s261, %s263
    %p267 = scmp.eq.s32.totalorder %s75, 0
    %p268 = por %p266, %p267
    %p269 = scmp.ne.s32.totalorder %s261, %s263
    %p270 = scmp.eq.s32.totalorder %s80, 1
    %p271 = por %p269, %p270
    %p272 = scmp.ne.s32.totalorder %s263, %s264
    %p273 = scmp.eq.s32.totalorder %s80, 0
    %p274 = por %p272, %p273
    %p275 = scmp.ne.s32.totalorder %s263, %s264
    %p276 = scmp.eq.s32.totalorder %s81, 1
    %p277 = por %p275, %p276
    %p279 = scmp.ne.s32.totalorder %s264, %s278
    %p280 = scmp.eq.s32.totalorder %s81, 0
    %p281 = por %p279, %p280
    %s283 = sadd.s32 %s282, 1
    %p286 = scmp.eq.s32.totalorder %s75, 1
    %p287 = scmp.ne.s32.totalorder %s282, %s284
    %p288 = scmp.eq.s32.totalorder %s75, 0
    %p289 = por %p287, %p288
    %p290 = scmp.ne.s32.totalorder %s282, %s284
    %p291 = scmp.eq.s32.totalorder %s80, 1
    %p292 = por %p290, %p291
    %p293 = scmp.ne.s32.totalorder %s284, %s285
    %p294 = scmp.eq.s32.totalorder %s80, 0
    %p295 = por %p293, %p294
    %p296 = scmp.ne.s32.totalorder %s284, %s285
    %p297 = scmp.eq.s32.totalorder %s81, 1
    %p298 = por %p296, %p297
    %p300 = scmp.ne.s32.totalorder %s285, %s299
    %p301 = scmp.eq.s32.totalorder %s81, 0
    %p302 = por %p300, %p301
    %s304 = sadd.s32 %s303, 1
    %p307 = scmp.eq.s32.totalorder %s75, 1
    %p308 = scmp.ne.s32.totalorder %s303, %s305
    %p309 = scmp.eq.s32.totalorder %s75, 0
    %p310 = por %p308, %p309
    %p311 = scmp.ne.s32.totalorder %s303, %s305
    %p312 = scmp.eq.s32.totalorder %s80, 1
    %p313 = por %p311, %p312
    %p314 = scmp.ne.s32.totalorder %s305, %s306
    %p315 = scmp.eq.s32.totalorder %s80, 0
    %p316 = por %p314, %p315
    %p317 = scmp.ne.s32.totalorder %s305, %s306
    %p318 = scmp.eq.s32.totalorder %s81, 1
    %p319 = por %p317, %p318
    %p321 = scmp.ne.s32.totalorder %s306, %s320
    %p322 = scmp.eq.s32.totalorder %s81, 0
    %p323 = por %p321, %p322
    %s325 = sadd.s32 %s324, 1
    %p328 = scmp.eq.s32.totalorder %s75, 1
    %p329 = scmp.ne.s32.totalorder %s324, %s326
    %p330 = scmp.eq.s32.totalorder %s75, 0
    %p331 = por %p329, %p330
    %p332 = scmp.ne.s32.totalorder %s324, %s326
    %p333 = scmp.eq.s32.totalorder %s80, 1
    %p334 = por %p332, %p333
    %p335 = scmp.ne.s32.totalorder %s326, %s327
    %p336 = scmp.eq.s32.totalorder %s80, 0
    %p337 = por %p335, %p336
    %p338 = scmp.ne.s32.totalorder %s326, %s327
    %p339 = scmp.eq.s32.totalorder %s81, 1
    %p340 = por %p338, %p339
    %p342 = scmp.ne.s32.totalorder %s327, %s341
    %p343 = scmp.eq.s32.totalorder %s81, 0
    %p344 = por %p342, %p343
    %s346 = sadd.s32 %s345, 1
    %p349 = scmp.eq.s32.totalorder %s75, 1
    %p350 = scmp.ne.s32.totalorder %s345, %s347
    %p351 = scmp.eq.s32.totalorder %s75, 0
    %p352 = por %p350, %p351
    %p353 = scmp.ne.s32.totalorder %s345, %s347
    %p354 = scmp.eq.s32.totalorder %s80, 1
    %p355 = por %p353, %p354
    %p356 = scmp.ne.s32.totalorder %s347, %s348
    %p357 = scmp.eq.s32.totalorder %s80, 0
    %p358 = por %p356, %p357
    %p359 = scmp.ne.s32.totalorder %s347, %s348
    %p360 = scmp.eq.s32.totalorder %s81, 1
    %p361 = por %p359, %p360
    %p363 = scmp.ne.s32.totalorder %s348, %s362
    %p364 = scmp.eq.s32.totalorder %s81, 0
    %p365 = por %p363, %p364
    %s367 = sadd.s32 %s366, 1
    %p370 = scmp.eq.s32.totalorder %s75, 1
    %p371 = scmp.ne.s32.totalorder %s366, %s368
    %p372 = scmp.eq.s32.totalorder %s75, 0
    %p373 = por %p371, %p372
    %p374 = scmp.ne.s32.totalorder %s366, %s368
    %p375 = scmp.eq.s32.totalorder %s80, 1
    %p376 = por %p374, %p375
    %p377 = scmp.ne.s32.totalorder %s368, %s369
    %p378 = scmp.eq.s32.totalorder %s80, 0
    %p379 = por %p377, %p378
    %p380 = scmp.ne.s32.totalorder %s368, %s369
    %p381 = scmp.eq.s32.totalorder %s81, 1
    %p382 = por %p380, %p381
    %p384 = scmp.ne.s32.totalorder %s369, %s383
    %p385 = scmp.eq.s32.totalorder %s81, 0
    %p386 = por %p384, %p385
    %s388 = sadd.s32 %s387, 1
    %p391 = scmp.eq.s32.totalorder %s75, 1
    %p392 = scmp.ne.s32.totalorder %s387, %s389
    %p393 = scmp.eq.s32.totalorder %s75, 0
    %p394 = por %p392, %p393
    %p395 = scmp.ne.s32.totalorder %s387, %s389
    %p396 = scmp.eq.s32.totalorder %s80, 1
    %p397 = por %p395, %p396
    %p398 = scmp.ne.s32.totalorder %s389, %s390
    %p399 = scmp.eq.s32.totalorder %s80, 0
    %p400 = por %p398, %p399
    %p401 = scmp.ne.s32.totalorder %s389, %s390
    %p402 = scmp.eq.s32.totalorder %s81, 1
    %p403 = por %p401, %p402
    %p405 = scmp.ne.s32.totalorder %s390, %s404
    %p406 = scmp.eq.s32.totalorder %s81, 0
    %p407 = por %p405, %p406
    %s409 = sadd.s32 %s408, 1
    %p412 = scmp.eq.s32.totalorder %s75, 1
    %p413 = scmp.ne.s32.totalorder %s408, %s410
    %p414 = scmp.eq.s32.totalorder %s75, 0
    %p415 = por %p413, %p414
    %p416 = scmp.ne.s32.totalorder %s408, %s410
    %p417 = scmp.eq.s32.totalorder %s80, 1
    %p418 = por %p416, %p417
    %p419 = scmp.ne.s32.totalorder %s410, %s411
    %p420 = scmp.eq.s32.totalorder %s80, 0
    %p421 = por %p419, %p420
    %p422 = scmp.ne.s32.totalorder %s410, %s411
    %p423 = scmp.eq.s32.totalorder %s81, 1
    %p424 = por %p422, %p423
    %p426 = scmp.ne.s32.totalorder %s411, %s425
    %p427 = scmp.eq.s32.totalorder %s81, 0
    %p428 = por %p426, %p427
    %s430 = sadd.s32 %s429, 1
    %p433 = scmp.eq.s32.totalorder %s75, 1
    %p434 = scmp.ne.s32.totalorder %s429, %s431
    %p435 = scmp.eq.s32.totalorder %s75, 0
    %p436 = por %p434, %p435
    %p437 = scmp.ne.s32.totalorder %s429, %s431
    %p438 = scmp.eq.s32.totalorder %s80, 1
    %p439 = por %p437, %p438
    %p440 = scmp.ne.s32.totalorder %s431, %s432
    %p441 = scmp.eq.s32.totalorder %s80, 0
    %p442 = por %p440, %p441
    %p443 = scmp.ne.s32.totalorder %s431, %s432
    %p444 = scmp.eq.s32.totalorder %s81, 1
    %p445 = por %p443, %p444
    %p447 = scmp.ne.s32.totalorder %s432, %s446
    %p448 = scmp.eq.s32.totalorder %s81, 0
    %p449 = por %p447, %p448
    %s451 = sadd.s32 %s450, 1
    %p454 = scmp.eq.s32.totalorder %s75, 1
    %p455 = scmp.ne.s32.totalorder %s450, %s452
    %p456 = scmp.eq.s32.totalorder %s75, 0
    %p457 = por %p455, %p456
    %p458 = scmp.ne.s32.totalorder %s450, %s452
    %p459 = scmp.eq.s32.totalorder %s80, 1
    %p460 = por %p458, %p459
    %p461 = scmp.ne.s32.totalorder %s452, %s453
    %p462 = scmp.eq.s32.totalorder %s80, 0
    %p463 = por %p461, %p462
    %p464 = scmp.ne.s32.totalorder %s452, %s453
    %p465 = scmp.eq.s32.totalorder %s81, 1
    %p466 = por %p464, %p465
    %p468 = scmp.ne.s32.totalorder %s453, %s467
    %p469 = scmp.eq.s32.totalorder %s81, 0
    %p470 = por %p468, %p469
    %s472 = sadd.s32 %s471, 1
    %p475 = scmp.eq.s32.totalorder %s75, 1
    %p476 = scmp.ne.s32.totalorder %s471, %s473
    %p477 = scmp.eq.s32.totalorder %s75, 0
    %p478 = por %p476, %p477
    %p479 = scmp.ne.s32.totalorder %s471, %s473
    %p480 = scmp.eq.s32.totalorder %s80, 1
    %p481 = por %p479, %p480
    %p482 = scmp.ne.s32.totalorder %s473, %s474
    %p483 = scmp.eq.s32.totalorder %s80, 0
    %p484 = por %p482, %p483
    %p485 = scmp.ne.s32.totalorder %s473, %s474
    %p486 = scmp.eq.s32.totalorder %s81, 1
    %p487 = por %p485, %p486
    %p489 = scmp.ne.s32.totalorder %s474, %s488
    %p490 = scmp.eq.s32.totalorder %s81, 0
    %p491 = por %p489, %p490
    %s493 = sadd.s32 %s492, 1
    %p496 = scmp.eq.s32.totalorder %s75, 1
    %p497 = scmp.ne.s32.totalorder %s492, %s494
    %p498 = scmp.eq.s32.totalorder %s75, 0
    %p499 = por %p497, %p498
    %p500 = scmp.ne.s32.totalorder %s492, %s494
    %p501 = scmp.eq.s32.totalorder %s80, 1
    %p502 = por %p500, %p501
    %p503 = scmp.ne.s32.totalorder %s494, %s495
    %p504 = scmp.eq.s32.totalorder %s80, 0
    %p505 = por %p503, %p504
    %p506 = scmp.ne.s32.totalorder %s494, %s495
    %p507 = scmp.eq.s32.totalorder %s81, 1
    %p508 = por %p506, %p507
    %p510 = scmp.ne.s32.totalorder %s495, %s509
    %p511 = scmp.eq.s32.totalorder %s81, 0
    %p512 = por %p510, %p511
    %s514 = sadd.s32 %s513, 1
    %p517 = scmp.eq.s32.totalorder %s75, 1
    %p518 = scmp.ne.s32.totalorder %s513, %s515
    %p519 = scmp.eq.s32.totalorder %s75, 0
    %p520 = por %p518, %p519
    %p521 = scmp.ne.s32.totalorder %s513, %s515
    %p522 = scmp.eq.s32.totalorder %s80, 1
    %p523 = por %p521, %p522
    %p524 = scmp.ne.s32.totalorder %s515, %s516
    %p525 = scmp.eq.s32.totalorder %s80, 0
    %p526 = por %p524, %p525
    %p527 = scmp.ne.s32.totalorder %s515, %s516
    %p528 = scmp.eq.s32.totalorder %s81, 1
    %p529 = por %p527, %p528
    %p531 = scmp.ne.s32.totalorder %s516, %s530
    %p532 = scmp.eq.s32.totalorder %s81, 0
    %p533 = por %p531, %p532
    %s535 = sadd.s32 %s534, 1
    %p538 = scmp.eq.s32.totalorder %s75, 1
    %p539 = scmp.ne.s32.totalorder %s534, %s536
    %p540 = scmp.eq.s32.totalorder %s75, 0
    %p541 = por %p539, %p540
    %p542 = scmp.ne.s32.totalorder %s534, %s536
    %p543 = scmp.eq.s32.totalorder %s80, 1
    %p544 = por %p542, %p543
    %p545 = scmp.ne.s32.totalorder %s536, %s537
    %p546 = scmp.eq.s32.totalorder %s80, 0
    %p547 = por %p545, %p546
    %p548 = scmp.ne.s32.totalorder %s536, %s537
    %p549 = scmp.eq.s32.totalorder %s81, 1
    %p550 = por %p548, %p549
    %p552 = scmp.ne.s32.totalorder %s537, %s551
    %p553 = scmp.eq.s32.totalorder %s81, 0
    %p554 = por %p552, %p553
    %s556 = sadd.s32 %s555, 1
    %p559 = scmp.eq.s32.totalorder %s75, 1
    %p560 = scmp.ne.s32.totalorder %s555, %s557
    %p561 = scmp.eq.s32.totalorder %s75, 0
    %p562 = por %p560, %p561
    %p563 = scmp.ne.s32.totalorder %s555, %s557
    %p564 = scmp.eq.s32.totalorder %s80, 1
    %p565 = por %p563, %p564
    %p566 = scmp.ne.s32.totalorder %s557, %s558
    %p567 = scmp.eq.s32.totalorder %s80, 0
    %p568 = por %p566, %p567
    %p569 = scmp.ne.s32.totalorder %s557, %s558
    %p570 = scmp.eq.s32.totalorder %s81, 1
    %p571 = por %p569, %p570
    %p573 = scmp.ne.s32.totalorder %s558, %s572
    %p574 = scmp.eq.s32.totalorder %s81, 0
    %p575 = por %p573, %p574
    %s577 = sadd.s32 %s576, 1
    %p580 = scmp.eq.s32.totalorder %s75, 1
    %p581 = scmp.ne.s32.totalorder %s576, %s578
    %p582 = scmp.eq.s32.totalorder %s75, 0
    %p583 = por %p581, %p582
    %p584 = scmp.ne.s32.totalorder %s576, %s578
    %p585 = scmp.eq.s32.totalorder %s80, 1
    %p586 = por %p584, %p585
    %p587 = scmp.ne.s32.totalorder %s578, %s579
    %p588 = scmp.eq.s32.totalorder %s80, 0
    %p589 = por %p587, %p588
    %p590 = scmp.ne.s32.totalorder %s578, %s579
    %p591 = scmp.eq.s32.totalorder %s81, 1
    %p592 = por %p590, %p591
    %p594 = scmp.ne.s32.totalorder %s579, %s593
    %p595 = scmp.eq.s32.totalorder %s81, 0
    %p596 = por %p594, %p595
    %s598 = sadd.s32 %s597, 1
    %p601 = scmp.eq.s32.totalorder %s75, 1
    %p602 = scmp.ne.s32.totalorder %s597, %s599
    %p603 = scmp.eq.s32.totalorder %s75, 0
    %p604 = por %p602, %p603
    %p605 = scmp.ne.s32.totalorder %s597, %s599
    %p606 = scmp.eq.s32.totalorder %s80, 1
    %p607 = por %p605, %p606
    %p608 = scmp.ne.s32.totalorder %s599, %s600
    %p609 = scmp.eq.s32.totalorder %s80, 0
    %p610 = por %p608, %p609
    %p611 = scmp.ne.s32.totalorder %s599, %s600
    %p612 = scmp.eq.s32.totalorder %s81, 1
    %p613 = por %p611, %p612
    %p615 = scmp.ne.s32.totalorder %s600, %s614
    %p616 = scmp.eq.s32.totalorder %s81, 0
    %p617 = por %p615, %p616
    %s619 = sadd.s32 %s618, 1
    %p622 = scmp.eq.s32.totalorder %s75, 1
    %p623 = scmp.ne.s32.totalorder %s618, %s620
    %p624 = scmp.eq.s32.totalorder %s75, 0
    %p625 = por %p623, %p624
    %p626 = scmp.ne.s32.totalorder %s618, %s620
    %p627 = scmp.eq.s32.totalorder %s80, 1
    %p628 = por %p626, %p627
    %p629 = scmp.ne.s32.totalorder %s620, %s621
    %p630 = scmp.eq.s32.totalorder %s80, 0
    %p631 = por %p629, %p630
    %p632 = scmp.ne.s32.totalorder %s620, %s621
    %p633 = scmp.eq.s32.totalorder %s81, 1
    %p634 = por %p632, %p633
    %p636 = scmp.ne.s32.totalorder %s621, %s635
    %p637 = scmp.eq.s32.totalorder %s81, 0
    %p638 = por %p636, %p637
    %s640 = sadd.s32 %s639, 1
    %p643 = scmp.eq.s32.totalorder %s75, 1
    %p644 = scmp.ne.s32.totalorder %s639, %s641
    %p645 = scmp.eq.s32.totalorder %s75, 0
    %p646 = por %p644, %p645
    %p647 = scmp.ne.s32.totalorder %s639, %s641
    %p648 = scmp.eq.s32.totalorder %s80, 1
    %p649 = por %p647, %p648
    %p650 = scmp.ne.s32.totalorder %s641, %s642
    %p651 = scmp.eq.s32.totalorder %s80, 0
    %p652 = por %p650, %p651
    %p653 = scmp.ne.s32.totalorder %s641, %s642
    %p654 = scmp.eq.s32.totalorder %s81, 1
    %p655 = por %p653, %p654
    %p657 = scmp.ne.s32.totalorder %s642, %s656
    %p658 = scmp.eq.s32.totalorder %s81, 0
    %p659 = por %p657, %p658
    %s661 = sadd.s32 %s660, 1
    %p664 = scmp.eq.s32.totalorder %s75, 1
    %p665 = scmp.ne.s32.totalorder %s660, %s662
    %p666 = scmp.eq.s32.totalorder %s75, 0
    %p667 = por %p665, %p666
    %p668 = scmp.ne.s32.totalorder %s660, %s662
    %p669 = scmp.eq.s32.totalorder %s80, 1
    %p670 = por %p668, %p669
    %p671 = scmp.ne.s32.totalorder %s662, %s663
    %p672 = scmp.eq.s32.totalorder %s80, 0
    %p673 = por %p671, %p672
    %p674 = scmp.ne.s32.totalorder %s662, %s663
    %p675 = scmp.eq.s32.totalorder %s81, 1
    %p676 = por %p674, %p675
    %p678 = scmp.ne.s32.totalorder %s663, %s677
    %p679 = scmp.eq.s32.totalorder %s81, 0
    %p680 = por %p678, %p679
    %s682 = sadd.s32 %s681, 1
    %p685 = scmp.eq.s32.totalorder %s75, 1
    %p686 = scmp.ne.s32.totalorder %s681, %s683
    %p687 = scmp.eq.s32.totalorder %s75, 0
    %p688 = por %p686, %p687
    %p689 = scmp.ne.s32.totalorder %s681, %s683
    %p690 = scmp.eq.s32.totalorder %s80, 1
    %p691 = por %p689, %p690
    %p692 = scmp.ne.s32.totalorder %s683, %s684
    %p693 = scmp.eq.s32.totalorder %s80, 0
    %p694 = por %p692, %p693
    %p695 = scmp.ne.s32.totalorder %s683, %s684
    %p696 = scmp.eq.s32.totalorder %s81, 1
    %p697 = por %p695, %p696
    %p699 = scmp.ne.s32.totalorder %s684, %s698
    %p700 = scmp.eq.s32.totalorder %s81, 0
    %p701 = por %p699, %p700
    %s703 = sadd.s32 %s702, 1
    %p706 = scmp.eq.s32.totalorder %s75, 1
    %p707 = scmp.ne.s32.totalorder %s702, %s704
    %p708 = scmp.eq.s32.totalorder %s75, 0
    %p709 = por %p707, %p708
    %p710 = scmp.ne.s32.totalorder %s702, %s704
    %p711 = scmp.eq.s32.totalorder %s80, 1
    %p712 = por %p710, %p711
    %p713 = scmp.ne.s32.totalorder %s704, %s705
    %p714 = scmp.eq.s32.totalorder %s80, 0
    %p715 = por %p713, %p714
    %p716 = scmp.ne.s32.totalorder %s704, %s705
    %p717 = scmp.eq.s32.totalorder %s81, 1
    %p718 = por %p716, %p717
    %p720 = scmp.ne.s32.totalorder %s705, %s719
    %p721 = scmp.eq.s32.totalorder %s81, 0
    %p722 = por %p720, %p721
    %s724 = sadd.s32 %s723, 1
    %p727 = scmp.eq.s32.totalorder %s75, 1
    %p728 = scmp.ne.s32.totalorder %s723, %s725
    %p729 = scmp.eq.s32.totalorder %s75, 0
    %p730 = por %p728, %p729
    %p731 = scmp.ne.s32.totalorder %s723, %s725
    %p732 = scmp.eq.s32.totalorder %s80, 1
    %p733 = por %p731, %p732
    %p734 = scmp.ne.s32.totalorder %s725, %s726
    %p735 = scmp.eq.s32.totalorder %s80, 0
    %p736 = por %p734, %p735
    %p737 = scmp.ne.s32.totalorder %s725, %s726
    %p738 = scmp.eq.s32.totalorder %s81, 1
    %p739 = por %p737, %p738
    %p741 = scmp.ne.s32.totalorder %s726, %s740
    %p742 = scmp.eq.s32.totalorder %s81, 0
    %p743 = por %p741, %p742
    %s745 = sadd.s32 %s744, 1
    %p748 = scmp.eq.s32.totalorder %s75, 1
    %p749 = scmp.ne.s32.totalorder %s744, %s746
    %p750 = scmp.eq.s32.totalorder %s75, 0
    %p751 = por %p749, %p750
    %p752 = scmp.ne.s32.totalorder %s744, %s746
    %p753 = scmp.eq.s32.totalorder %s80, 1
    %p754 = por %p752, %p753
    %p755 = scmp.ne.s32.totalorder %s746, %s747
    %p756 = scmp.eq.s32.totalorder %s80, 0
    %p757 = por %p755, %p756
    %p758 = scmp.ne.s32.totalorder %s746, %s747
    %p759 = scmp.eq.s32.totalorder %s81, 1
    %p760 = por %p758, %p759
    %p762 = scmp.ne.s32.totalorder %s747, %s761
    %p763 = scmp.eq.s32.totalorder %s81, 0
    %p764 = por %p762, %p763
    %s766 = sadd.s32 %s765, 1
    %p769 = scmp.eq.s32.totalorder %s75, 1
    %p770 = scmp.ne.s32.totalorder %s765, %s767
    %p771 = scmp.eq.s32.totalorder %s75, 0
    %p772 = por %p770, %p771
    %p773 = scmp.ne.s32.totalorder %s765, %s767
    %p774 = scmp.eq.s32.totalorder %s80, 1
    %p775 = por %p773, %p774
    %p776 = scmp.ne.s32.totalorder %s767, %s768
    %p777 = scmp.eq.s32.totalorder %s80, 0
    %p778 = por %p776, %p777
    %p779 = scmp.ne.s32.totalorder %s767, %s768
    %p780 = scmp.eq.s32.totalorder %s81, 1
    %p781 = por %p779, %p780
    %p783 = scmp.ne.s32.totalorder %s768, %s782
    %p784 = scmp.eq.s32.totalorder %s81, 0
    %p785 = por %p783, %p784
    %s787 = sadd.s32 %s786, 1
    %p790 = scmp.eq.s32.totalorder %s75, 1
    %p791 = scmp.ne.s32.totalorder %s786, %s788
    %p792 = scmp.eq.s32.totalorder %s75, 0
    %p793 = por %p791, %p792
    %p794 = scmp.ne.s32.totalorder %s786, %s788
    %p795 = scmp.eq.s32.totalorder %s80, 1
    %p796 = por %p794, %p795
    %p797 = scmp.ne.s32.totalorder %s788, %s789
    %p798 = scmp.eq.s32.totalorder %s80, 0
    %p799 = por %p797, %p798
    %p800 = scmp.ne.s32.totalorder %s788, %s789
    %p801 = scmp.eq.s32.totalorder %s81, 1
    %p802 = por %p800, %p801
    %p804 = scmp.ne.s32.totalorder %s789, %s803
    %p805 = scmp.eq.s32.totalorder %s81, 0
    %p806 = por %p804, %p805
    %s807 = ssub.s32 %s75, %s82
    %p808 = scmp.eq.s32.totalorder %s807, 0
    %s810 = sadd.s32 %s809, 1
    %s811 = scalar_select %p808, %s809, %s810
    %p814 = pneg %p808
    %p815 = scmp.eq.s32.totalorder %s75, 1
    %p816 = por %p814, %p815
    %p817 = scmp.ne.s32.totalorder %s809, %s812
    %p818 = scmp.eq.s32.totalorder %s75, 0
    %p819 = por %p817, %p818
    %p820 = scmp.ne.s32.totalorder %s809, %s812
    %p821 = scmp.eq.s32.totalorder %s80, 1
    %p822 = por %p820, %p821
    %p823 = scmp.ne.s32.totalorder %s812, %s813
    %p824 = scmp.eq.s32.totalorder %s80, 0
    %p825 = por %p823, %p824
    %p826 = scmp.ne.s32.totalorder %s812, %s813
    %p827 = scmp.eq.s32.totalorder %s81, 1
    %p828 = por %p826, %p827
    %p830 = scmp.ne.s32.totalorder %s813, %s829
    %p831 = scmp.eq.s32.totalorder %s81, 0
    %p832 = por %p830, %p831
    %p833 = scmp.le.s32.totalorder 1, %s75
    %p834 = scmp.lt.s32.totalorder %s75, 3
    %p835 = pnand %p833, %p834
    %p836 = pneg %p835
    // Predicated region
    $region9: #{decoder_layer_forward.1} parent=5 // pred_check
      _
    $region10: #{decoder_layer_forward.1} parent=5 // pred_check_branch
      %838 = sbr.rel (%p835) target = $region12
    $region11: #{decoder_layer_forward.1} parent=5 // pred_region
      %s839 = ssub.s32 %s75, 1
      // Predicated region
      $region13: #{decoder_layer_forward.1} parent=11 // pred_check
        %p840 = pneg %p148
      $region14: #{decoder_layer_forward.1} parent=11 // pred_check_branch
        %842 = sbr.rel (%p840) target = $region16
      $region15: #{decoder_layer_forward.1} parent=11 // pred_region
        _
      $region16: #{decoder_layer_forward.1} parent=11 // pred_fallthru
        _
      // Predicated region
      $region17: #{decoder_layer_forward.1} parent=11 // pred_check
        %p843 = pneg %p169
      $region18: #{decoder_layer_forward.1} parent=11 // pred_check_branch
        %845 = sbr.rel (%p843) target = $region20
      $region19: #{decoder_layer_forward.1} parent=11 // pred_region
        _
      $region20: #{decoder_layer_forward.1} parent=11 // pred_fallthru
        _
      // Predicated region
      $region21: #{decoder_layer_forward.1} parent=11 // pred_check
        %p846 = pneg %p190
      $region22: #{decoder_layer_forward.1} parent=11 // pred_check_branch
        %848 = sbr.rel (%p846) target = $region24
      $region23: #{decoder_layer_forward.1} parent=11 // pred_region
        _
      $region24: #{decoder_layer_forward.1} parent=11 // pred_fallthru
        _
      // Predicated region
      $region25: #{decoder_layer_forward.1} parent=11 // pred_check
        %p849 = pneg %p211
      $region26: #{decoder_layer_forward.1} parent=11 // pred_check_branch
        %851 = sbr.rel (%p849) target = $region28
      $region27: #{decoder_layer_forward.1} parent=11 // pred_region
        _
      $region28: #{decoder_layer_forward.1} parent=11 // pred_fallthru
        _
      // Predicated region
      $region29: #{decoder_layer_forward.1} parent=11 // pred_check
        %p852 = pneg %p232
      $region30: #{decoder_layer_forward.1} parent=11 // pred_check_branch
        %854 = sbr.rel (%p852) target = $region32
      $region31: #{decoder_layer_forward.1} parent=11 // pred_region
        _
      $region32: #{decoder_layer_forward.1} parent=11 // pred_fallthru
        _
      // Predicated region
      $region33: #{decoder_layer_forward.1} parent=11 // pred_check
        %p855 = pneg %p253
      $region34: #{decoder_layer_forward.1} parent=11 // pred_check_branch
        %857 = sbr.rel (%p855) target = $region36
      $region35: #{decoder_layer_forward.1} parent=11 // pred_region
        _
      $region36: #{decoder_layer_forward.1} parent=11 // pred_fallthru
        _
      // Predicated region
      $region37: #{decoder_layer_forward.1} parent=11 // pred_check
        %p858 = pneg %p274
      $region38: #{decoder_layer_forward.1} parent=11 // pred_check_branch
        %860 = sbr.rel (%p858) target = $region40
      $region39: #{decoder_layer_forward.1} parent=11 // pred_region
        _
      $region40: #{decoder_layer_forward.1} parent=11 // pred_fallthru
        _
      // Predicated region
      $region41: #{decoder_layer_forward.1} parent=11 // pred_check
        %p861 = pneg %p295
      $region42: #{decoder_layer_forward.1} parent=11 // pred_check_branch
        %863 = sbr.rel (%p861) target = $region44
      $region43: #{decoder_layer_forward.1} parent=11 // pred_region
        _
      $region44: #{decoder_layer_forward.1} parent=11 // pred_fallthru
        _
      // Predicated region
      $region45: #{decoder_layer_forward.1} parent=11 // pred_check
        %p864 = pneg %p316
      $region46: #{decoder_layer_forward.1} parent=11 // pred_check_branch
        %866 = sbr.rel (%p864) target = $region48
      $region47: #{decoder_layer_forward.1} parent=11 // pred_region
        _
      $region48: #{decoder_layer_forward.1} parent=11 // pred_fallthru
        _
      // Predicated region
      $region49: #{decoder_layer_forward.1} parent=11 // pred_check
        %p867 = pneg %p337
      $region50: #{decoder_layer_forward.1} parent=11 // pred_check_branch
        %869 = sbr.rel (%p867) target = $region52
      $region51: #{decoder_layer_forward.1} parent=11 // pred_region
        _
      $region52: #{decoder_layer_forward.1} parent=11 // pred_fallthru
        _
      // Predicated region
      $region53: #{decoder_layer_forward.1} parent=11 // pred_check
        %p870 = pneg %p358
      $region54: #{decoder_layer_forward.1} parent=11 // pred_check_branch
        %872 = sbr.rel (%p870) target = $region56
      $region55: #{decoder_layer_forward.1} parent=11 // pred_region
        _
      $region56: #{decoder_layer_forward.1} parent=11 // pred_fallthru
        _
      // Predicated region
      $region57: #{decoder_layer_forward.1} parent=11 // pred_check
        %p873 = pneg %p379
      $region58: #{decoder_layer_forward.1} parent=11 // pred_check_branch
        %875 = sbr.rel (%p873) target = $region60
      $region59: #{decoder_layer_forward.1} parent=11 // pred_region
        _
      $region60: #{decoder_layer_forward.1} parent=11 // pred_fallthru
        _
      // Predicated region
      $region61: #{decoder_layer_forward.1} parent=11 // pred_check
        %p876 = pneg %p400
      $region62: #{decoder_layer_forward.1} parent=11 // pred_check_branch
        %878 = sbr.rel (%p876) target = $region64
      $region63: #{decoder_layer_forward.1} parent=11 // pred_region
        _
      $region64: #{decoder_layer_forward.1} parent=11 // pred_fallthru
        _
      // Predicated region
      $region65: #{decoder_layer_forward.1} parent=11 // pred_check
        %p879 = pneg %p421
      $region66: #{decoder_layer_forward.1} parent=11 // pred_check_branch
        %881 = sbr.rel (%p879) target = $region68
      $region67: #{decoder_layer_forward.1} parent=11 // pred_region
        _
      $region68: #{decoder_layer_forward.1} parent=11 // pred_fallthru
        _
      // Predicated region
      $region69: #{decoder_layer_forward.1} parent=11 // pred_check
        %p882 = pneg %p442
      $region70: #{decoder_layer_forward.1} parent=11 // pred_check_branch
        %884 = sbr.rel (%p882) target = $region72
      $region71: #{decoder_layer_forward.1} parent=11 // pred_region
        _
      $region72: #{decoder_layer_forward.1} parent=11 // pred_fallthru
        _
      // Predicated region
      $region73: #{decoder_layer_forward.1} parent=11 // pred_check
        %p885 = pneg %p463
      $region74: #{decoder_layer_forward.1} parent=11 // pred_check_branch
        %887 = sbr.rel (%p885) target = $region76
      $region75: #{decoder_layer_forward.1} parent=11 // pred_region
        _
      $region76: #{decoder_layer_forward.1} parent=11 // pred_fallthru
        _
      // Predicated region
      $region77: #{decoder_layer_forward.1} parent=11 // pred_check
        %p888 = pneg %p484
      $region78: #{decoder_layer_forward.1} parent=11 // pred_check_branch
        %890 = sbr.rel (%p888) target = $region80
      $region79: #{decoder_layer_forward.1} parent=11 // pred_region
        _
      $region80: #{decoder_layer_forward.1} parent=11 // pred_fallthru
        _
      // Predicated region
      $region81: #{decoder_layer_forward.1} parent=11 // pred_check
        %p891 = pneg %p505
      $region82: #{decoder_layer_forward.1} parent=11 // pred_check_branch
        %893 = sbr.rel (%p891) target = $region84
      $region83: #{decoder_layer_forward.1} parent=11 // pred_region
        _
      $region84: #{decoder_layer_forward.1} parent=11 // pred_fallthru
        _
      // Predicated region
      $region85: #{decoder_layer_forward.1} parent=11 // pred_check
        %p894 = pneg %p526
      $region86: #{decoder_layer_forward.1} parent=11 // pred_check_branch
        %896 = sbr.rel (%p894) target = $region88
      $region87: #{decoder_layer_forward.1} parent=11 // pred_region
        _
      $region88: #{decoder_layer_forward.1} parent=11 // pred_fallthru
        _
      // Predicated region
      $region89: #{decoder_layer_forward.1} parent=11 // pred_check
        %p897 = pneg %p547
      $region90: #{decoder_layer_forward.1} parent=11 // pred_check_branch
        %899 = sbr.rel (%p897) target = $region92
      $region91: #{decoder_layer_forward.1} parent=11 // pred_region
        _
      $region92: #{decoder_layer_forward.1} parent=11 // pred_fallthru
        _
      // Predicated region
      $region93: #{decoder_layer_forward.1} parent=11 // pred_check
        %p900 = pneg %p568
      $region94: #{decoder_layer_forward.1} parent=11 // pred_check_branch
        %902 = sbr.rel (%p900) target = $region96
      $region95: #{decoder_layer_forward.1} parent=11 // pred_region
        _
      $region96: #{decoder_layer_forward.1} parent=11 // pred_fallthru
        _
      // Predicated region
      $region97: #{decoder_layer_forward.1} parent=11 // pred_check
        %p903 = pneg %p589
      $region98: #{decoder_layer_forward.1} parent=11 // pred_check_branch
        %905 = sbr.rel (%p903) target = $region100
      $region99: #{decoder_layer_forward.1} parent=11 // pred_region
        _
      $region100: #{decoder_layer_forward.1} parent=11 // pred_fallthru
        _
      // Predicated region
      $region101: #{decoder_layer_forward.1} parent=11 // pred_check
        %p906 = pneg %p610
      $region102: #{decoder_layer_forward.1} parent=11 // pred_check_branch
        %908 = sbr.rel (%p906) target = $region104
      $region103: #{decoder_layer_forward.1} parent=11 // pred_region
        _
      $region104: #{decoder_layer_forward.1} parent=11 // pred_fallthru
        _
      // Predicated region
      $region105: #{decoder_layer_forward.1} parent=11 // pred_check
        %p909 = pneg %p631
      $region106: #{decoder_layer_forward.1} parent=11 // pred_check_branch
        %911 = sbr.rel (%p909) target = $region108
      $region107: #{decoder_layer_forward.1} parent=11 // pred_region
        _
      $region108: #{decoder_layer_forward.1} parent=11 // pred_fallthru
        _
      // Predicated region
      $region109: #{decoder_layer_forward.1} parent=11 // pred_check
        %p912 = pneg %p652
      $region110: #{decoder_layer_forward.1} parent=11 // pred_check_branch
        %914 = sbr.rel (%p912) target = $region112
      $region111: #{decoder_layer_forward.1} parent=11 // pred_region
        _
      $region112: #{decoder_layer_forward.1} parent=11 // pred_fallthru
        _
      // Predicated region
      $region113: #{decoder_layer_forward.1} parent=11 // pred_check
        %p915 = pneg %p673
      $region114: #{decoder_layer_forward.1} parent=11 // pred_check_branch
        %917 = sbr.rel (%p915) target = $region116
      $region115: #{decoder_layer_forward.1} parent=11 // pred_region
        _
      $region116: #{decoder_layer_forward.1} parent=11 // pred_fallthru
        _
      // Predicated region
      $region117: #{decoder_layer_forward.1} parent=11 // pred_check
        %p918 = pneg %p694
      $region118: #{decoder_layer_forward.1} parent=11 // pred_check_branch
        %920 = sbr.rel (%p918) target = $region120
      $region119: #{decoder_layer_forward.1} parent=11 // pred_region
        _
      $region120: #{decoder_layer_forward.1} parent=11 // pred_fallthru
        _
      // Predicated region
      $region121: #{decoder_layer_forward.1} parent=11 // pred_check
        %p921 = pneg %p715
      $region122: #{decoder_layer_forward.1} parent=11 // pred_check_branch
        %923 = sbr.rel (%p921) target = $region124
      $region123: #{decoder_layer_forward.1} parent=11 // pred_region
        _
      $region124: #{decoder_layer_forward.1} parent=11 // pred_fallthru
        _
      // Predicated region
      $region125: #{decoder_layer_forward.1} parent=11 // pred_check
        %p924 = pneg %p736
      $region126: #{decoder_layer_forward.1} parent=11 // pred_check_branch
        %926 = sbr.rel (%p924) target = $region128
      $region127: #{decoder_layer_forward.1} parent=11 // pred_region
        _
      $region128: #{decoder_layer_forward.1} parent=11 // pred_fallthru
        _
      // Predicated region
      $region129: #{decoder_layer_forward.1} parent=11 // pred_check
        %p927 = pneg %p757
      $region130: #{decoder_layer_forward.1} parent=11 // pred_check_branch
        %929 = sbr.rel (%p927) target = $region132
      $region131: #{decoder_layer_forward.1} parent=11 // pred_region
        _
      $region132: #{decoder_layer_forward.1} parent=11 // pred_fallthru
        _
      // Predicated region
      $region133: #{decoder_layer_forward.1} parent=11 // pred_check
        %p930 = pneg %p778
      $region134: #{decoder_layer_forward.1} parent=11 // pred_check_branch
        %932 = sbr.rel (%p930) target = $region136
      $region135: #{decoder_layer_forward.1} parent=11 // pred_region
        _
      $region136: #{decoder_layer_forward.1} parent=11 // pred_fallthru
        _
      // Predicated region
      $region137: #{decoder_layer_forward.1} parent=11 // pred_check
        %p933 = pneg %p799
      $region138: #{decoder_layer_forward.1} parent=11 // pred_check_branch
        %935 = sbr.rel (%p933) target = $region140
      $region139: #{decoder_layer_forward.1} parent=11 // pred_region
        _
      $region140: #{decoder_layer_forward.1} parent=11 // pred_fallthru
        _
    $region12: #{decoder_layer_forward.1} parent=5 // pred_fallthru
      _
    %p936 = scmp.lt.s32.totalorder %s75, 2
    // Predicated region
    $region141: #{decoder_layer_forward.1} parent=5 // pred_check
      %p937 = pneg %p936
    $region142: #{decoder_layer_forward.1} parent=5 // pred_check_branch
      %939 = sbr.rel (%p937) target = $region144
    $region143: #{decoder_layer_forward.1} parent=5 // pred_region
      // Predicated region
      $region145: #{decoder_layer_forward.1} parent=143 // pred_check
        %p940 = pneg %p95
      $region146: #{decoder_layer_forward.1} parent=143 // pred_check_branch
        %942 = sbr.rel (%p940) target = $region148
      $region147: #{decoder_layer_forward.1} parent=143 // pred_region
        %p943 = scmp.lt.s32.totalorder %s75, 1
        %s944 = scalar_select %p943, %s75, 1
        %s945 = smul.addr %s944, 8
        %s946 = scalar_lea.vmem %s1, %s945
      $region148: #{decoder_layer_forward.1} parent=143 // pred_fallthru
        _
      // Predicated region
      $region149: #{decoder_layer_forward.1} parent=143 // pred_check
        %p947 = pneg %p121
      $region150: #{decoder_layer_forward.1} parent=143 // pred_check_branch
        %949 = sbr.rel (%p947) target = $region152
      $region151: #{decoder_layer_forward.1} parent=143 // pred_region
        %s950 = smul.u32 4, %s75
        %p951 = scmp.lt.s32.totalorder %s950, 7
        %s952 = scalar_select %p951, %s950, 7
        %s953 = smul.addr %s952, 4
        %s954 = scalar_lea.vmem %s3, %s953
        %s955 = smul.u32 4, %s75
      $region152: #{decoder_layer_forward.1} parent=143 // pred_fallthru
        _
    $region144: #{decoder_layer_forward.1} parent=5 // pred_fallthru
      _
    %p956 = scmp.le.s32.totalorder 1, %s75
    %p957 = scmp.lt.s32.totalorder %s75, 3
    %p958 = pnand %p956, %p957
    %p959 = pneg %p958
    // Predicated region
    $region153: #{decoder_layer_forward.1} parent=5 // pred_check
      _
    $region154: #{decoder_layer_forward.1} parent=5 // pred_check_branch
      %961 = sbr.rel (%p958) target = $region156
    $region155: #{decoder_layer_forward.1} parent=5 // pred_region
      %s962 = ssub.s32 %s75, 1
      %p963 = scmp.lt.s32.totalorder %s80, 1
      %s964 = scalar_select %p963, %s80, 1
      %s965 = smul.addr %s964, 8
      %s966 = scalar_lea.vmem %s1, %s965
      %p967 = pneg %p101
      %p968 = pneg %p98
      %s969 = smul.u32 4, %s80
      %p970 = scmp.lt.s32.totalorder %s969, 7
      %s971 = scalar_select %p970, %s969, 7
      %s972 = smul.addr %s971, 4
      %s973 = scalar_lea.vmem %s3, %s972
      %p974 = pneg %p127
      %p975 = pneg %p124
      %p976 = pneg %p148
      %p977 = pneg %p145
      %p978 = pneg %p169
      %p979 = pneg %p166
      %p980 = pneg %p190
      %p981 = pneg %p187
      %p982 = pneg %p211
      %p983 = pneg %p208
      %p984 = pneg %p232
      %p985 = pneg %p229
      %p986 = pneg %p253
      %p987 = pneg %p250
      %p988 = pneg %p274
      %p989 = pneg %p271
      %p990 = pneg %p295
      %p991 = pneg %p292
      %p992 = pneg %p316
      %p993 = pneg %p313
      %p994 = pneg %p337
      %p995 = pneg %p334
      %p996 = pneg %p358
      %p997 = pneg %p355
      %p998 = pneg %p379
      %p999 = pneg %p376
      %p1000 = pneg %p400
      %p1001 = pneg %p397
      %p1002 = pneg %p421
      %p1003 = pneg %p418
      %p1004 = pneg %p442
      %p1005 = pneg %p439
      %p1006 = pneg %p463
      %p1007 = pneg %p460
      %p1008 = pneg %p484
      %p1009 = pneg %p481
      %p1010 = pneg %p505
      %p1011 = pneg %p502
      %p1012 = pneg %p526
      %p1013 = pneg %p523
      %p1014 = pneg %p547
      %p1015 = pneg %p544
      %p1016 = pneg %p568
      %p1017 = pneg %p565
      %p1018 = pneg %p589
      %p1019 = pneg %p586
      %p1020 = pneg %p610
      %p1021 = pneg %p607
      %p1022 = pneg %p631
      %p1023 = pneg %p628
      %p1024 = pneg %p652
      %p1025 = pneg %p649
      %p1026 = pneg %p673
      %p1027 = pneg %p670
      %p1028 = pneg %p694
      %p1029 = pneg %p691
      %p1030 = pneg %p715
      %p1031 = pneg %p712
      %p1032 = pneg %p736
      %p1033 = pneg %p733
      %p1034 = pneg %p757
      %p1035 = pneg %p754
      %p1036 = pneg %p778
      %p1037 = pneg %p775
      %p1038 = pneg %p799
      %p1039 = pneg %p796
      %p1040 = pneg %p825
      %p1041 = pneg %p822
      %p1042 = scmp.lt.s32.totalorder %s80, 1
      %s1043 = scalar_select %p1042, %s80, 1
      %s1044 = smul.addr %s1043, 8
      %s1045 = scalar_lea.vmem %s69, %s1044
      %p1046 = scmp.lt.s32.totalorder %s80, 1
      %s1047 = scalar_select %p1046, %s80, 1
      %s1048 = smul.addr %s1047, 8
      %s1049 = scalar_lea.vmem %s1, %s1048
      %s1050 = smul.u32 4, %s80
      %p1051 = scmp.lt.s32.totalorder %s1050, 7
      %s1052 = scalar_select %p1051, %s1050, 7
      %s1053 = smul.addr %s1052, 4
      %s1054 = scalar_lea.vmem %s3, %s1053
      %s1055 = smul.u32 4, %s80
      %p1056 = scmp.lt.s32.totalorder %s80, 1
      %s1057 = scalar_select %p1056, %s80, 1
      %s1058 = smul.addr %s1057, 8
      %s1059 = scalar_lea.vmem %s69, %s1058
      %v1061 = vld [vmem:[%s1049] sm:$0xff]
      %v1062 = vpack.c.bf16 %v1061, %v1061
      loop: start=0, step=1, limit=4
      $region157: #{decoder_layer_forward.1} parent=155 // loop_pre_header
        _
      $region158: #{decoder_layer_forward.1} parent=155 // loop_header
        %s1064 = sphi 0, %s1068
        %p1065 = scmp.ge.s32.totalorder %s1064, 4
        %v1069 = vphi 0.0, %v1436
      $region159: #{decoder_layer_forward.1} parent=155 // loop_header_branch
        %1067 = sbr.rel (%p1065) target = $region163
      $region160: #{decoder_layer_forward.1} parent=155 // loop_body
        %s1070 = smul.u32 %s1064, 4
        %s1071 = smul.addr %s1070, 4
        %s1072 = scalar_lea.vmem %s5, %s1071
        %v1073 = vld [vmem:[%s1072] sm:$0xf]
        %v1074 = vld [vmem:[%s1072 + $0x4] sm:$0xf]
        %v1075 = vld [vmem:[%s1072 + $0x8] sm:$0xf]
        %v1076 = vld [vmem:[%s1072 + $0xc] sm:$0xf]
        %s1077 = scalar_lea.vmem %s11, %s1064
        %v1078 = vld [vmem:[%s1077] sm:$0x1]
        %v1080 = vlaneseq
        %v1081 = vshrl.u32 %v1080, 7
        %v1082 = vsub.s32 0, %v1081
        %v1083 = vrot.slane %v1078, %v1082
        %v1089 = vunpack.c.l.b16 %v1073
        %v1090 = vunpack.c.l.b16 %v1074
        %v1091 = vunpack.c.l.b16 %v1075
        %v1092 = vunpack.c.l.b16 %v1076
        %v1093 = vpack.c.b16 %v1090, %v1089
        %v1094 = vpack.c.b16 %v1092, %v1091
        %vm1097 = vcmask 261120
        %v1099 = vsel %vm1097, %v1062, 0
        %1101 = vmatprep.subr.bf16.mxu0 0
        %1102 = vmatpush1.bf16.msra.mxu0 %v1093
        %1103 = vmatprep.subr.bf16.mxu0 0
        %1104 = vmatpush1.bf16.msra.mxu0 %v1094
        %1105 = vmatprep.subr.bf16.mxu0 0
        %1106 = vmatpush1.bf16.msra.mxu0 0
        %1107 = vmatprep.subr.bf16.mxu0 0
        %1108 = vmatpush1.bf16.msra.mxu0 0
        %1109 = vmatprep.subr.bf16.mxu0 0
        %1110 = vmatpush1.bf16.msra.mxu0 0
        %1111 = vmatprep.subr.bf16.mxu0 0
        %1112 = vmatpush1.bf16.msra.mxu0 0
        %1113 = vmatprep.subr.bf16.mxu0 0
        %1114 = vmatpush1.bf16.msra.mxu0 0
        %1115 = vmatprep.subr.bf16.mxu0 0
        %1116 = vmatpush1.bf16.msra.mxu0 0
        %1117 = vmatprep.subr.bf16.mxu0 0
        %1118 = vmatpush1.bf16.msra.mxu0 0
        %1119 = vmatprep.subr.bf16.mxu0 0
        %1120 = vmatpush1.bf16.msra.mxu0 0
        %1121 = vmatprep.subr.bf16.mxu0 0
        %1122 = vmatpush1.bf16.msra.mxu0 0
        %1123 = vmatprep.subr.bf16.mxu0 0
        %1124 = vmatpush1.bf16.msra.mxu0 0
        %1125 = vmatprep.subr.bf16.mxu0 0
        %1126 = vmatpush1.bf16.msra.mxu0 0
        %1127 = vmatprep.subr.bf16.mxu0 0
        %1128 = vmatpush1.bf16.msra.mxu0 0
        %1129 = vmatprep.subr.bf16.mxu0 0
        %1130 = vmatpush1.bf16.msra.mxu0 0
        %1131 = vmatprep.subr.bf16.mxu0 0
        %1132 = vmatpush1.bf16.msra.mxu0 0
        %1133 = vmatprep.mubr.bf16.mxu0 0
        %1134 = vmatmul.mubr.bf16.gmra.mrb[0].mxu0 %v1099
        %v1135 = vpop.f32.mrb[0].mxu0
        %v1136 = vadd.f32 %v1083, %v1135
        %v1137 = vpop.f32.mrb[0].mxu0
        %v1138 = vpop.f32.mrb[0].mxu0
        %v1139 = vpop.f32.mrb[0].mxu0
        %1140 = vdwg.mxu0
        %s1141 = smul.addr %s1070, 4
        %s1142 = scalar_lea.vmem %s7, %s1141
        %v1143 = vld [vmem:[%s1142] sm:$0xf]
        %v1144 = vld [vmem:[%s1142 + $0x4] sm:$0xf]
        %v1145 = vld [vmem:[%s1142 + $0x8] sm:$0xf]
        %v1146 = vld [vmem:[%s1142 + $0xc] sm:$0xf]
        %s1147 = scalar_lea.vmem %s13, %s1064
        %v1148 = vld [vmem:[%s1147] sm:$0x1]
        %v1150 = vlaneseq
        %v1151 = vshrl.u32 %v1150, 7
        %v1152 = vsub.s32 0, %v1151
        %v1153 = vrot.slane %v1148, %v1152
        %v1159 = vunpack.c.l.b16 %v1143
        %v1160 = vunpack.c.l.b16 %v1144
        %v1161 = vunpack.c.l.b16 %v1145
        %v1162 = vunpack.c.l.b16 %v1146
        %v1163 = vpack.c.b16 %v1160, %v1159
        %v1164 = vpack.c.b16 %v1162, %v1161
        %1167 = vmatprep.subr.bf16.mxu0 0
        %1168 = vmatpush1.bf16.msra.mxu0 %v1163
        %1169 = vmatprep.subr.bf16.mxu0 0
        %1170 = vmatpush1.bf16.msra.mxu0 %v1164
        %1171 = vmatprep.subr.bf16.mxu0 0
        %1172 = vmatpush1.bf16.msra.mxu0 0
        %1173 = vmatprep.subr.bf16.mxu0 0
        %1174 = vmatpush1.bf16.msra.mxu0 0
        %1175 = vmatprep.subr.bf16.mxu0 0
        %1176 = vmatpush1.bf16.msra.mxu0 0
        %1177 = vmatprep.subr.bf16.mxu0 0
        %1178 = vmatpush1.bf16.msra.mxu0 0
        %1179 = vmatprep.subr.bf16.mxu0 0
        %1180 = vmatpush1.bf16.msra.mxu0 0
        %1181 = vmatprep.subr.bf16.mxu0 0
        %1182 = vmatpush1.bf16.msra.mxu0 0
        %1183 = vmatprep.subr.bf16.mxu0 0
        %1184 = vmatpush1.bf16.msra.mxu0 0
        %1185 = vmatprep.subr.bf16.mxu0 0
        %1186 = vmatpush1.bf16.msra.mxu0 0
        %1187 = vmatprep.subr.bf16.mxu0 0
        %1188 = vmatpush1.bf16.msra.mxu0 0
        %1189 = vmatprep.subr.bf16.mxu0 0
        %1190 = vmatpush1.bf16.msra.mxu0 0
        %1191 = vmatprep.subr.bf16.mxu0 0
        %1192 = vmatpush1.bf16.msra.mxu0 0
        %1193 = vmatprep.subr.bf16.mxu0 0
        %1194 = vmatpush1.bf16.msra.mxu0 0
        %1195 = vmatprep.subr.bf16.mxu0 0
        %1196 = vmatpush1.bf16.msra.mxu0 0
        %1197 = vmatprep.subr.bf16.mxu0 0
        %1198 = vmatpush1.bf16.msra.mxu0 0
        %1199 = vmatprep.mubr.bf16.mxu0 0
        %1200 = vmatmul.mubr.bf16.gmra.mrb[0].mxu0 %v1099
        %v1201 = vpop.f32.mrb[0].mxu0
        %v1202 = vadd.f32 %v1153, %v1201
        %v1203 = vpop.f32.mrb[0].mxu0
        %v1204 = vpop.f32.mrb[0].mxu0
        %v1205 = vpop.f32.mrb[0].mxu0
        %1206 = vdwg.mxu0
        %s1207 = smul.addr %s1070, 4
        %s1208 = scalar_lea.vmem %s9, %s1207
        %v1209 = vld [vmem:[%s1208] sm:$0xf]
        %v1210 = vld [vmem:[%s1208 + $0x4] sm:$0xf]
        %v1211 = vld [vmem:[%s1208 + $0x8] sm:$0xf]
        %v1212 = vld [vmem:[%s1208 + $0xc] sm:$0xf]
        %s1213 = scalar_lea.vmem %s15, %s1064
        %v1214 = vld [vmem:[%s1213] sm:$0x1]
        %v1216 = vlaneseq
        %v1217 = vshrl.u32 %v1216, 7
        %v1218 = vsub.s32 0, %v1217
        %v1219 = vrot.slane %v1214, %v1218
        %v1225 = vunpack.c.l.b16 %v1209
        %v1226 = vunpack.c.l.b16 %v1210
        %v1227 = vunpack.c.l.b16 %v1211
        %v1228 = vunpack.c.l.b16 %v1212
        %v1229 = vpack.c.b16 %v1226, %v1225
        %v1230 = vpack.c.b16 %v1228, %v1227
        %1233 = vmatprep.subr.bf16.mxu0 0
        %1234 = vmatpush1.bf16.msra.mxu0 %v1229
        %1235 = vmatprep.subr.bf16.mxu0 0
        %1236 = vmatpush1.bf16.msra.mxu0 %v1230
        %1237 = vmatprep.subr.bf16.mxu0 0
        %1238 = vmatpush1.bf16.msra.mxu0 0
        %1239 = vmatprep.subr.bf16.mxu0 0
        %1240 = vmatpush1.bf16.msra.mxu0 0
        %1241 = vmatprep.subr.bf16.mxu0 0
        %1242 = vmatpush1.bf16.msra.mxu0 0
        %1243 = vmatprep.subr.bf16.mxu0 0
        %1244 = vmatpush1.bf16.msra.mxu0 0
        %1245 = vmatprep.subr.bf16.mxu0 0
        %1246 = vmatpush1.bf16.msra.mxu0 0
        %1247 = vmatprep.subr.bf16.mxu0 0
        %1248 = vmatpush1.bf16.msra.mxu0 0
        %1249 = vmatprep.subr.bf16.mxu0 0
        %1250 = vmatpush1.bf16.msra.mxu0 0
        %1251 = vmatprep.subr.bf16.mxu0 0
        %1252 = vmatpush1.bf16.msra.mxu0 0
        %1253 = vmatprep.subr.bf16.mxu0 0
        %1254 = vmatpush1.bf16.msra.mxu0 0
        %1255 = vmatprep.subr.bf16.mxu0 0
        %1256 = vmatpush1.bf16.msra.mxu0 0
        %1257 = vmatprep.subr.bf16.mxu0 0
        %1258 = vmatpush1.bf16.msra.mxu0 0
        %1259 = vmatprep.subr.bf16.mxu0 0
        %1260 = vmatpush1.bf16.msra.mxu0 0
        %1261 = vmatprep.subr.bf16.mxu0 0
        %1262 = vmatpush1.bf16.msra.mxu0 0
        %1263 = vmatprep.subr.bf16.mxu0 0
        %1264 = vmatpush1.bf16.msra.mxu0 0
        %1265 = vmatprep.mubr.bf16.mxu0 0
        %1266 = vmatmul.mubr.bf16.gmra.mrb[0].mxu0 %v1099
        %v1267 = vpop.f32.mrb[0].mxu0
        %v1268 = vadd.f32 %v1219, %v1267
        %v1269 = vpop.f32.mrb[0].mxu0
        %v1270 = vpop.f32.mrb[0].mxu0
        %v1271 = vpop.f32.mrb[0].mxu0
        %1272 = vdwg.mxu0
        %v1273 = vpack.c.bf16 %v1136, %v1136
        %v1274 = vpack.c.bf16 %v1202, %v1202
        %s1275 = smul.addr %s1064, 4
        %s1276 = scalar_lea.vmem %s1054, %s1275
        %v1277 = vld [vmem:[%s1276] sm:$0xf]
        %v1278 = vunpack.c.l.bf16 %v1277
        %vm1279 = vcmask 64512
        %v1281 = vsel %vm1279, %v1273, 0
        %v1284 = vsel %vm1279, %v1274, 0
        %1286 = vmatprep.subr.bf16.mxu0 0
        %1287 = vmatpush1.bf16.xpose.msra.mxu0 %v1284
        %1288 = vmatprep.subr.bf16.mxu0 0
        %1289 = vmatpush1.bf16.xpose.msra.mxu0 0
        %1290 = vmatprep.subr.bf16.mxu0 0
        %1291 = vmatpush1.bf16.xpose.msra.mxu0 0
        %1292 = vmatprep.subr.bf16.mxu0 0
        %1293 = vmatpush1.bf16.xpose.msra.mxu0 0
        %1294 = vmatprep.subr.bf16.mxu0 0
        %1295 = vmatpush1.bf16.xpose.msra.mxu0 0
        %1296 = vmatprep.subr.bf16.mxu0 0
        %1297 = vmatpush1.bf16.xpose.msra.mxu0 0
        %1298 = vmatprep.subr.bf16.mxu0 0
        %1299 = vmatpush1.bf16.xpose.msra.mxu0 0
        %1300 = vmatprep.subr.bf16.mxu0 0
        %1301 = vmatpush1.bf16.xpose.msra.mxu0 0
        %1302 = vmatprep.subr.bf16.mxu0 0
        %1303 = vmatpush1.bf16.xpose.msra.mxu0 0
        %1304 = vmatprep.subr.bf16.mxu0 0
        %1305 = vmatpush1.bf16.xpose.msra.mxu0 0
        %1306 = vmatprep.subr.bf16.mxu0 0
        %1307 = vmatpush1.bf16.xpose.msra.mxu0 0
        %1308 = vmatprep.subr.bf16.mxu0 0
        %1309 = vmatpush1.bf16.xpose.msra.mxu0 0
        %1310 = vmatprep.subr.bf16.mxu0 0
        %1311 = vmatpush1.bf16.xpose.msra.mxu0 0
        %1312 = vmatprep.subr.bf16.mxu0 0
        %1313 = vmatpush1.bf16.xpose.msra.mxu0 0
        %1314 = vmatprep.subr.bf16.mxu0 0
        %1315 = vmatpush1.bf16.xpose.msra.mxu0 0
        %1316 = vmatprep.subr.bf16.mxu0 0
        %1317 = vmatpush1.bf16.xpose.msra.mxu0 0
        %1318 = vmatprep.mubr.bf16.mxu0 0
        %1319 = vmatmul.mubr.bf16.gmra.mrb[0].mxu0 %v1281
        %v1320 = vpop.f32.mrb[0].mxu0
        %v1321 = vadd.f32 %v1278, %v1320
        %v1322 = vpop.f32.mrb[0].mxu0
        %v1323 = vpop.f32.mrb[0].mxu0
        %v1324 = vpop.f32.mrb[0].mxu0
        %1325 = vdwg.mxu0
        %v1326 = vsel %vm1279, %v1321, -inf
        %1327 = vmax.xlane.f32.xlu0 %v1326
        %v1328 = vpop.xlane.xlu0 %1327
        %v1329 = vsub.f32 %v1321, %v1328
        %v1330 = vmul.f32 %v1329, 1.442695
        %v1331 = vpow.pop %v1330
        %v1332 = vsel %vm1279, %v1331, 0.0
        %1333 = vadd.xlane.f32.xlu0 %v1332
        %v1334 = vpop.xlane.xlu0 %1333
        %v1335 = vrcp.pop %v1334
        %v1336 = vmul.f32 %v1331, %v1335
        %v1337 = vpack.c.bf16 %v1336, %v1336
        %v1338 = vpack.c.bf16 %v1268, %v1268
        %v1340 = vsel %vm1279, %v1337, 0
        %vm1342 = vcmask 1043456
        %v1344 = vsel %vm1342, %v1338, 0
        %1346 = vmatprep.subr.bf16.mxu0 0
        %1347 = vmatpush1.bf16.msra.mxu0 %v1344
        %1348 = vmatprep.subr.bf16.mxu0 0
        %1349 = vmatpush1.bf16.msra.mxu0 0
        %1350 = vmatprep.subr.bf16.mxu0 0
        %1351 = vmatpush1.bf16.msra.mxu0 0
        %1352 = vmatprep.subr.bf16.mxu0 0
        %1353 = vmatpush1.bf16.msra.mxu0 0
        %1354 = vmatprep.subr.bf16.mxu0 0
        %1355 = vmatpush1.bf16.msra.mxu0 0
        %1356 = vmatprep.subr.bf16.mxu0 0
        %1357 = vmatpush1.bf16.msra.mxu0 0
        %1358 = vmatprep.subr.bf16.mxu0 0
        %1359 = vmatpush1.bf16.msra.mxu0 0
        %1360 = vmatprep.subr.bf16.mxu0 0
        %1361 = vmatpush1.bf16.msra.mxu0 0
        %1362 = vmatprep.subr.bf16.mxu0 0
        %1363 = vmatpush1.bf16.msra.mxu0 0
        %1364 = vmatprep.subr.bf16.mxu0 0
        %1365 = vmatpush1.bf16.msra.mxu0 0
        %1366 = vmatprep.subr.bf16.mxu0 0
        %1367 = vmatpush1.bf16.msra.mxu0 0
        %1368 = vmatprep.subr.bf16.mxu0 0
        %1369 = vmatpush1.bf16.msra.mxu0 0
        %1370 = vmatprep.subr.bf16.mxu0 0
        %1371 = vmatpush1.bf16.msra.mxu0 0
        %1372 = vmatprep.subr.bf16.mxu0 0
        %1373 = vmatpush1.bf16.msra.mxu0 0
        %1374 = vmatprep.subr.bf16.mxu0 0
        %1375 = vmatpush1.bf16.msra.mxu0 0
        %1376 = vmatprep.subr.bf16.mxu0 0
        %1377 = vmatpush1.bf16.msra.mxu0 0
        %1378 = vmatprep.mubr.bf16.mxu0 0
        %1379 = vmatmul.mubr.bf16.gmra.mrb[0].mxu0 %v1340
        %v1380 = vpop.f32.mrb[0].mxu0
        %v1381 = vadd.f32 0.0, %v1380
        %v1382 = vpop.f32.mrb[0].mxu0
        %v1383 = vpop.f32.mrb[0].mxu0
        %v1384 = vpop.f32.mrb[0].mxu0
        %1385 = vdwg.mxu0
        %v1386 = vpack.c.bf16 %v1381, %v1381
        %s1387 = smul.addr %s1064, 4
        %s1388 = scalar_lea.vmem %s17, %s1387
        %v1389 = vld [vmem:[%s1388] sm:$0xf]
        %v1391 = vsel %vm1279, %v1386, 0
        %v1394 = vsel %vm1342, %v1389, 0
        %1396 = vmatprep.subr.bf16.mxu0 0
        %1397 = vmatpush1.bf16.msra.mxu0 %v1394
        %1398 = vmatprep.subr.bf16.mxu0 0
        %1399 = vmatpush1.bf16.msra.mxu0 0
        %1400 = vmatprep.subr.bf16.mxu0 0
        %1401 = vmatpush1.bf16.msra.mxu0 0
        %1402 = vmatprep.subr.bf16.mxu0 0
        %1403 = vmatpush1.bf16.msra.mxu0 0
        %1404 = vmatprep.subr.bf16.mxu0 0
        %1405 = vmatpush1.bf16.msra.mxu0 0
        %1406 = vmatprep.subr.bf16.mxu0 0
        %1407 = vmatpush1.bf16.msra.mxu0 0
        %1408 = vmatprep.subr.bf16.mxu0 0
        %1409 = vmatpush1.bf16.msra.mxu0 0
        %1410 = vmatprep.subr.bf16.mxu0 0
        %1411 = vmatpush1.bf16.msra.mxu0 0
        %1412 = vmatprep.subr.bf16.mxu0 0
        %1413 = vmatpush1.bf16.msra.mxu0 0
        %1414 = vmatprep.subr.bf16.mxu0 0
        %1415 = vmatpush1.bf16.msra.mxu0 0
        %1416 = vmatprep.subr.bf16.mxu0 0
        %1417 = vmatpush1.bf16.msra.mxu0 0
        %1418 = vmatprep.subr.bf16.mxu0 0
        %1419 = vmatpush1.bf16.msra.mxu0 0
        %1420 = vmatprep.subr.bf16.mxu0 0
        %1421 = vmatpush1.bf16.msra.mxu0 0
        %1422 = vmatprep.subr.bf16.mxu0 0
        %1423 = vmatpush1.bf16.msra.mxu0 0
        %1424 = vmatprep.subr.bf16.mxu0 0
        %1425 = vmatpush1.bf16.msra.mxu0 0
        %1426 = vmatprep.subr.bf16.mxu0 0
        %1427 = vmatpush1.bf16.msra.mxu0 0
        %1428 = vmatprep.mubr.bf16.mxu0 0
        %1429 = vmatmul.mubr.bf16.gmra.mrb[0].mxu0 %v1391
        %v1430 = vpop.f32.mrb[0].mxu0
        %v1431 = vadd.f32 0.0, %v1430
        %v1432 = vpop.f32.mrb[0].mxu0
        %v1433 = vpop.f32.mrb[0].mxu0
        %v1434 = vpop.f32.mrb[0].mxu0
        %1435 = vdwg.mxu0
        %v1436 = vadd.f32 %v1069, %v1431
      $region161: #{decoder_layer_forward.1} parent=155 // loop_footer
        %s1068 = sadd.s32 1, %s1064
      $region162: #{decoder_layer_forward.1} parent=155 // loop_footer_branch
        %1063 = sbr.rel target = $region158
      $region163: #{decoder_layer_forward.1} parent=155 // loop_exit
        _
      %v1437 = vld [vmem:[%s19] sm:$0x1]
      %v1439 = vlaneseq
      %v1440 = vshrl.u32 %v1439, 7
      %v1441 = vsub.s32 0, %v1440
      %v1442 = vrot.slane %v1437, %v1441
      %v1444 = vadd.f32 %v1069, %v1442
      %v1445 = vadd.f32 %v1061, %v1444
      %vm1446 = vcmask 261120
      %v1447 = vsel %vm1446, %v1445, 0.0
      %1448 = vadd.xlane.f32.xlu0 %v1447
      %v1449 = vpop.xlane.xlu0 %1448
      %v1450 = vrcp.pop 32.0
      %v1451 = vmul.f32 %v1449, %v1450
      %v1452 = vsub.f32 %v1445, %v1451
      %v1453 = vmul.f32 %v1452, %v1452
      %v1454 = vsel %vm1446, %v1453, 0.0
      %1455 = vadd.xlane.f32.xlu0 %v1454
      %v1456 = vpop.xlane.xlu0 %1455
      %v1457 = vmul.f32 %v1456, %v1450
      %v1458 = vadd.f32 %v1457, 1e-05
      %v1459 = vrsqrt.pop %v1458
      %v1460 = vmul.f32 %v1452, %v1459
      %v1461 = vld [vmem:[%s37] sm:$0x1]
      %v1463 = vlaneseq
      %v1464 = vshrl.u32 %v1463, 7
      %v1465 = vsub.s32 0, %v1464
      %v1466 = vrot.slane %v1461, %v1465
      %v1468 = vmul.f32 %v1460, %v1466
      %v1469 = vld [vmem:[%s39] sm:$0x1]
      %v1471 = vlaneseq
      %v1472 = vshrl.u32 %v1471, 7
      %v1473 = vsub.s32 0, %v1472
      %v1474 = vrot.slane %v1469, %v1473
      %v1476 = vadd.f32 %v1468, %v1474
      %v1477 = vpack.c.bf16 %v1476, %v1476
      loop: start=0, step=1, limit=4
      $region164: #{decoder_layer_forward.1} parent=155 // loop_pre_header
        _
      $region165: #{decoder_layer_forward.1} parent=155 // loop_header
        %s1479 = sphi 0, %s1483
        %p1480 = scmp.ge.s32.totalorder %s1479, 4
        %v1484 = vphi 0.0, %v1846
      $region166: #{decoder_layer_forward.1} parent=155 // loop_header_branch
        %1482 = sbr.rel (%p1480) target = $region170
      $region167: #{decoder_layer_forward.1} parent=155 // loop_body
        %s1485 = smul.u32 %s1479, 4
        %s1486 = smul.addr %s1485, 4
        %s1487 = scalar_lea.vmem %s21, %s1486
        %v1488 = vld [vmem:[%s1487] sm:$0xf]
        %v1489 = vld [vmem:[%s1487 + $0x4] sm:$0xf]
        %v1490 = vld [vmem:[%s1487 + $0x8] sm:$0xf]
        %v1491 = vld [vmem:[%s1487 + $0xc] sm:$0xf]
        %s1492 = scalar_lea.vmem %s27, %s1479
        %v1493 = vld [vmem:[%s1492] sm:$0x1]
        %v1495 = vlaneseq
        %v1496 = vshrl.u32 %v1495, 7
        %v1497 = vsub.s32 0, %v1496
        %v1498 = vrot.slane %v1493, %v1497
        %v1504 = vunpack.c.l.b16 %v1488
        %v1505 = vunpack.c.l.b16 %v1489
        %v1506 = vunpack.c.l.b16 %v1490
        %v1507 = vunpack.c.l.b16 %v1491
        %v1508 = vpack.c.b16 %v1505, %v1504
        %v1509 = vpack.c.b16 %v1507, %v1506
        %v1513 = vsel %vm1446, %v1477, 0
        %1515 = vmatprep.subr.bf16.mxu0 0
        %1516 = vmatpush1.bf16.msra.mxu0 %v1508
        %1517 = vmatprep.subr.bf16.mxu0 0
        %1518 = vmatpush1.bf16.msra.mxu0 %v1509
        %1519 = vmatprep.subr.bf16.mxu0 0
        %1520 = vmatpush1.bf16.msra.mxu0 0
        %1521 = vmatprep.subr.bf16.mxu0 0
        %1522 = vmatpush1.bf16.msra.mxu0 0
        %1523 = vmatprep.subr.bf16.mxu0 0
        %1524 = vmatpush1.bf16.msra.mxu0 0
        %1525 = vmatprep.subr.bf16.mxu0 0
        %1526 = vmatpush1.bf16.msra.mxu0 0
        %1527 = vmatprep.subr.bf16.mxu0 0
        %1528 = vmatpush1.bf16.msra.mxu0 0
        %1529 = vmatprep.subr.bf16.mxu0 0
        %1530 = vmatpush1.bf16.msra.mxu0 0
        %1531 = vmatprep.subr.bf16.mxu0 0
        %1532 = vmatpush1.bf16.msra.mxu0 0
        %1533 = vmatprep.subr.bf16.mxu0 0
        %1534 = vmatpush1.bf16.msra.mxu0 0
        %1535 = vmatprep.subr.bf16.mxu0 0
        %1536 = vmatpush1.bf16.msra.mxu0 0
        %1537 = vmatprep.subr.bf16.mxu0 0
        %1538 = vmatpush1.bf16.msra.mxu0 0
        %1539 = vmatprep.subr.bf16.mxu0 0
        %1540 = vmatpush1.bf16.msra.mxu0 0
        %1541 = vmatprep.subr.bf16.mxu0 0
        %1542 = vmatpush1.bf16.msra.mxu0 0
        %1543 = vmatprep.subr.bf16.mxu0 0
        %1544 = vmatpush1.bf16.msra.mxu0 0
        %1545 = vmatprep.subr.bf16.mxu0 0
        %1546 = vmatpush1.bf16.msra.mxu0 0
        %1547 = vmatprep.mubr.bf16.mxu0 0
        %1548 = vmatmul.mubr.bf16.gmra.mrb[0].mxu0 %v1513
        %v1549 = vpop.f32.mrb[0].mxu0
        %v1550 = vadd.f32 %v1498, %v1549
        %v1551 = vpop.f32.mrb[0].mxu0
        %v1552 = vpop.f32.mrb[0].mxu0
        %v1553 = vpop.f32.mrb[0].mxu0
        %1554 = vdwg.mxu0
        %s1555 = smul.addr %s1485, 4
        %s1556 = scalar_lea.vmem %s23, %s1555
        %v1557 = vld [vmem:[%s1556] sm:$0xf]
        %v1558 = vld [vmem:[%s1556 + $0x4] sm:$0xf]
        %v1559 = vld [vmem:[%s1556 + $0x8] sm:$0xf]
        %v1560 = vld [vmem:[%s1556 + $0xc] sm:$0xf]
        %s1561 = scalar_lea.vmem %s29, %s1479
        %v1562 = vld [vmem:[%s1561] sm:$0x1]
        %v1564 = vlaneseq
        %v1565 = vshrl.u32 %v1564, 7
        %v1566 = vsub.s32 0, %v1565
        %v1567 = vrot.slane %v1562, %v1566
        %v1573 = vunpack.c.l.b16 %v1557
        %v1574 = vunpack.c.l.b16 %v1558
        %v1575 = vunpack.c.l.b16 %v1559
        %v1576 = vunpack.c.l.b16 %v1560
        %v1577 = vpack.c.b16 %v1574, %v1573
        %v1578 = vpack.c.b16 %v1576, %v1575
        %1581 = vmatprep.subr.bf16.mxu0 0
        %1582 = vmatpush1.bf16.msra.mxu0 %v1577
        %1583 = vmatprep.subr.bf16.mxu0 0
        %1584 = vmatpush1.bf16.msra.mxu0 %v1578
        %1585 = vmatprep.subr.bf16.mxu0 0
        %1586 = vmatpush1.bf16.msra.mxu0 0
        %1587 = vmatprep.subr.bf16.mxu0 0
        %1588 = vmatpush1.bf16.msra.mxu0 0
        %1589 = vmatprep.subr.bf16.mxu0 0
        %1590 = vmatpush1.bf16.msra.mxu0 0
        %1591 = vmatprep.subr.bf16.mxu0 0
        %1592 = vmatpush1.bf16.msra.mxu0 0
        %1593 = vmatprep.subr.bf16.mxu0 0
        %1594 = vmatpush1.bf16.msra.mxu0 0
        %1595 = vmatprep.subr.bf16.mxu0 0
        %1596 = vmatpush1.bf16.msra.mxu0 0
        %1597 = vmatprep.subr.bf16.mxu0 0
        %1598 = vmatpush1.bf16.msra.mxu0 0
        %1599 = vmatprep.subr.bf16.mxu0 0
        %1600 = vmatpush1.bf16.msra.mxu0 0
        %1601 = vmatprep.subr.bf16.mxu0 0
        %1602 = vmatpush1.bf16.msra.mxu0 0
        %1603 = vmatprep.subr.bf16.mxu0 0
        %1604 = vmatpush1.bf16.msra.mxu0 0
        %1605 = vmatprep.subr.bf16.mxu0 0
        %1606 = vmatpush1.bf16.msra.mxu0 0
        %1607 = vmatprep.subr.bf16.mxu0 0
        %1608 = vmatpush1.bf16.msra.mxu0 0
        %1609 = vmatprep.subr.bf16.mxu0 0
        %1610 = vmatpush1.bf16.msra.mxu0 0
        %1611 = vmatprep.subr.bf16.mxu0 0
        %1612 = vmatpush1.bf16.msra.mxu0 0
        %1613 = vmatprep.mubr.bf16.mxu0 0
        %1614 = vmatmul.mubr.bf16.gmra.mrb[0].mxu0 %v1513
        %v1615 = vpop.f32.mrb[0].mxu0
        %v1616 = vadd.f32 %v1567, %v1615
        %v1617 = vpop.f32.mrb[0].mxu0
        %v1618 = vpop.f32.mrb[0].mxu0
        %v1619 = vpop.f32.mrb[0].mxu0
        %1620 = vdwg.mxu0
        %s1621 = smul.addr %s1485, 4
        %s1622 = scalar_lea.vmem %s25, %s1621
        %v1623 = vld [vmem:[%s1622] sm:$0xf]
        %v1624 = vld [vmem:[%s1622 + $0x4] sm:$0xf]
        %v1625 = vld [vmem:[%s1622 + $0x8] sm:$0xf]
        %v1626 = vld [vmem:[%s1622 + $0xc] sm:$0xf]
        %s1627 = scalar_lea.vmem %s31, %s1479
        %v1628 = vld [vmem:[%s1627] sm:$0x1]
        %v1630 = vlaneseq
        %v1631 = vshrl.u32 %v1630, 7
        %v1632 = vsub.s32 0, %v1631
        %v1633 = vrot.slane %v1628, %v1632
        %v1639 = vunpack.c.l.b16 %v1623
        %v1640 = vunpack.c.l.b16 %v1624
        %v1641 = vunpack.c.l.b16 %v1625
        %v1642 = vunpack.c.l.b16 %v1626
        %v1643 = vpack.c.b16 %v1640, %v1639
        %v1644 = vpack.c.b16 %v1642, %v1641
        %1647 = vmatprep.subr.bf16.mxu0 0
        %1648 = vmatpush1.bf16.msra.mxu0 %v1643
        %1649 = vmatprep.subr.bf16.mxu0 0
        %1650 = vmatpush1.bf16.msra.mxu0 %v1644
        %1651 = vmatprep.subr.bf16.mxu0 0
        %1652 = vmatpush1.bf16.msra.mxu0 0
        %1653 = vmatprep.subr.bf16.mxu0 0
        %1654 = vmatpush1.bf16.msra.mxu0 0
        %1655 = vmatprep.subr.bf16.mxu0 0
        %1656 = vmatpush1.bf16.msra.mxu0 0
        %1657 = vmatprep.subr.bf16.mxu0 0
        %1658 = vmatpush1.bf16.msra.mxu0 0
        %1659 = vmatprep.subr.bf16.mxu0 0
        %1660 = vmatpush1.bf16.msra.mxu0 0
        %1661 = vmatprep.subr.bf16.mxu0 0
        %1662 = vmatpush1.bf16.msra.mxu0 0
        %1663 = vmatprep.subr.bf16.mxu0 0
        %1664 = vmatpush1.bf16.msra.mxu0 0
        %1665 = vmatprep.subr.bf16.mxu0 0
        %1666 = vmatpush1.bf16.msra.mxu0 0
        %1667 = vmatprep.subr.bf16.mxu0 0
        %1668 = vmatpush1.bf16.msra.mxu0 0
        %1669 = vmatprep.subr.bf16.mxu0 0
        %1670 = vmatpush1.bf16.msra.mxu0 0
        %1671 = vmatprep.subr.bf16.mxu0 0
        %1672 = vmatpush1.bf16.msra.mxu0 0
        %1673 = vmatprep.subr.bf16.mxu0 0
        %1674 = vmatpush1.bf16.msra.mxu0 0
        %1675 = vmatprep.subr.bf16.mxu0 0
        %1676 = vmatpush1.bf16.msra.mxu0 0
        %1677 = vmatprep.subr.bf16.mxu0 0
        %1678 = vmatpush1.bf16.msra.mxu0 0
        %1679 = vmatprep.mubr.bf16.mxu0 0
        %1680 = vmatmul.mubr.bf16.gmra.mrb[0].mxu0 %v1513
        %v1681 = vpop.f32.mrb[0].mxu0
        %v1682 = vadd.f32 %v1633, %v1681
        %v1683 = vpop.f32.mrb[0].mxu0
        %v1684 = vpop.f32.mrb[0].mxu0
        %v1685 = vpop.f32.mrb[0].mxu0
        %1686 = vdwg.mxu0
        %v1687 = vpack.c.bf16 %v1550, %v1550
        %v1688 = vpack.c.bf16 %v1616, %v1616
        %vm1689 = vcmask 64512
        %v1691 = vsel %vm1689, %v1687, 0
        %v1694 = vsel %vm1689, %v1688, 0
        %1696 = vmatprep.subr.bf16.mxu0 0
        %1697 = vmatpush1.bf16.xpose.msra.mxu0 %v1694
        %1698 = vmatprep.subr.bf16.mxu0 0
        %1699 = vmatpush1.bf16.xpose.msra.mxu0 0
        %1700 = vmatprep.subr.bf16.mxu0 0
        %1701 = vmatpush1.bf16.xpose.msra.mxu0 0
        %1702 = vmatprep.subr.bf16.mxu0 0
        %1703 = vmatpush1.bf16.xpose.msra.mxu0 0
        %1704 = vmatprep.subr.bf16.mxu0 0
        %1705 = vmatpush1.bf16.xpose.msra.mxu0 0
        %1706 = vmatprep.subr.bf16.mxu0 0
        %1707 = vmatpush1.bf16.xpose.msra.mxu0 0
        %1708 = vmatprep.subr.bf16.mxu0 0
        %1709 = vmatpush1.bf16.xpose.msra.mxu0 0
        %1710 = vmatprep.subr.bf16.mxu0 0
        %1711 = vmatpush1.bf16.xpose.msra.mxu0 0
        %1712 = vmatprep.subr.bf16.mxu0 0
        %1713 = vmatpush1.bf16.xpose.msra.mxu0 0
        %1714 = vmatprep.subr.bf16.mxu0 0
        %1715 = vmatpush1.bf16.xpose.msra.mxu0 0
        %1716 = vmatprep.subr.bf16.mxu0 0
        %1717 = vmatpush1.bf16.xpose.msra.mxu0 0
        %1718 = vmatprep.subr.bf16.mxu0 0
        %1719 = vmatpush1.bf16.xpose.msra.mxu0 0
        %1720 = vmatprep.subr.bf16.mxu0 0
        %1721 = vmatpush1.bf16.xpose.msra.mxu0 0
        %1722 = vmatprep.subr.bf16.mxu0 0
        %1723 = vmatpush1.bf16.xpose.msra.mxu0 0
        %1724 = vmatprep.subr.bf16.mxu0 0
        %1725 = vmatpush1.bf16.xpose.msra.mxu0 0
        %1726 = vmatprep.subr.bf16.mxu0 0
        %1727 = vmatpush1.bf16.xpose.msra.mxu0 0
        %1728 = vmatprep.mubr.bf16.mxu0 0
        %1729 = vmatmul.mubr.bf16.gmra.mrb[0].mxu0 %v1691
        %v1730 = vpop.f32.mrb[0].mxu0
        %v1731 = vadd.f32 0.0, %v1730
        %v1732 = vpop.f32.mrb[0].mxu0
        %v1733 = vpop.f32.mrb[0].mxu0
        %v1734 = vpop.f32.mrb[0].mxu0
        %1735 = vdwg.mxu0
        %v1736 = vsel %vm1689, %v1731, -inf
        %1737 = vmax.xlane.f32.xlu0 %v1736
        %v1738 = vpop.xlane.xlu0 %1737
        %v1739 = vsub.f32 %v1731, %v1738
        %v1740 = vmul.f32 %v1739, 1.442695
        %v1741 = vpow.pop %v1740
        %v1742 = vsel %vm1689, %v1741, 0.0
        %1743 = vadd.xlane.f32.xlu0 %v1742
        %v1744 = vpop.xlane.xlu0 %1743
        %v1745 = vrcp.pop %v1744
        %v1746 = vmul.f32 %v1741, %v1745
        %v1747 = vpack.c.bf16 %v1746, %v1746
        %v1748 = vpack.c.bf16 %v1682, %v1682
        %v1750 = vsel %vm1689, %v1747, 0
        %vm1752 = vcmask 1043456
        %v1754 = vsel %vm1752, %v1748, 0
        %1756 = vmatprep.subr.bf16.mxu0 0
        %1757 = vmatpush1.bf16.msra.mxu0 %v1754
        %1758 = vmatprep.subr.bf16.mxu0 0
        %1759 = vmatpush1.bf16.msra.mxu0 0
        %1760 = vmatprep.subr.bf16.mxu0 0
        %1761 = vmatpush1.bf16.msra.mxu0 0
        %1762 = vmatprep.subr.bf16.mxu0 0
        %1763 = vmatpush1.bf16.msra.mxu0 0
        %1764 = vmatprep.subr.bf16.mxu0 0
        %1765 = vmatpush1.bf16.msra.mxu0 0
        %1766 = vmatprep.subr.bf16.mxu0 0
        %1767 = vmatpush1.bf16.msra.mxu0 0
        %1768 = vmatprep.subr.bf16.mxu0 0
        %1769 = vmatpush1.bf16.msra.mxu0 0
        %1770 = vmatprep.subr.bf16.mxu0 0
        %1771 = vmatpush1.bf16.msra.mxu0 0
        %1772 = vmatprep.subr.bf16.mxu0 0
        %1773 = vmatpush1.bf16.msra.mxu0 0
        %1774 = vmatprep.subr.bf16.mxu0 0
        %1775 = vmatpush1.bf16.msra.mxu0 0
        %1776 = vmatprep.subr.bf16.mxu0 0
        %1777 = vmatpush1.bf16.msra.mxu0 0
        %1778 = vmatprep.subr.bf16.mxu0 0
        %1779 = vmatpush1.bf16.msra.mxu0 0
        %1780 = vmatprep.subr.bf16.mxu0 0
        %1781 = vmatpush1.bf16.msra.mxu0 0
        %1782 = vmatprep.subr.bf16.mxu0 0
        %1783 = vmatpush1.bf16.msra.mxu0 0
        %1784 = vmatprep.subr.bf16.mxu0 0
        %1785 = vmatpush1.bf16.msra.mxu0 0
        %1786 = vmatprep.subr.bf16.mxu0 0
        %1787 = vmatpush1.bf16.msra.mxu0 0
        %1788 = vmatprep.mubr.bf16.mxu0 0
        %1789 = vmatmul.mubr.bf16.gmra.mrb[0].mxu0 %v1750
        %v1790 = vpop.f32.mrb[0].mxu0
        %v1791 = vadd.f32 0.0, %v1790
        %v1792 = vpop.f32.mrb[0].mxu0
        %v1793 = vpop.f32.mrb[0].mxu0
        %v1794 = vpop.f32.mrb[0].mxu0
        %1795 = vdwg.mxu0
        %v1796 = vpack.c.bf16 %v1791, %v1791
        %s1797 = smul.addr %s1479, 4
        %s1798 = scalar_lea.vmem %s33, %s1797
        %v1799 = vld [vmem:[%s1798] sm:$0xf]
        %v1801 = vsel %vm1689, %v1796, 0
        %v1804 = vsel %vm1752, %v1799, 0
        %1806 = vmatprep.subr.bf16.mxu0 0
        %1807 = vmatpush1.bf16.msra.mxu0 %v1804
        %1808 = vmatprep.subr.bf16.mxu0 0
        %1809 = vmatpush1.bf16.msra.mxu0 0
        %1810 = vmatprep.subr.bf16.mxu0 0
        %1811 = vmatpush1.bf16.msra.mxu0 0
        %1812 = vmatprep.subr.bf16.mxu0 0
        %1813 = vmatpush1.bf16.msra.mxu0 0
        %1814 = vmatprep.subr.bf16.mxu0 0
        %1815 = vmatpush1.bf16.msra.mxu0 0
        %1816 = vmatprep.subr.bf16.mxu0 0
        %1817 = vmatpush1.bf16.msra.mxu0 0
        %1818 = vmatprep.subr.bf16.mxu0 0
        %1819 = vmatpush1.bf16.msra.mxu0 0
        %1820 = vmatprep.subr.bf16.mxu0 0
        %1821 = vmatpush1.bf16.msra.mxu0 0
        %1822 = vmatprep.subr.bf16.mxu0 0
        %1823 = vmatpush1.bf16.msra.mxu0 0
        %1824 = vmatprep.subr.bf16.mxu0 0
        %1825 = vmatpush1.bf16.msra.mxu0 0
        %1826 = vmatprep.subr.bf16.mxu0 0
        %1827 = vmatpush1.bf16.msra.mxu0 0
        %1828 = vmatprep.subr.bf16.mxu0 0
        %1829 = vmatpush1.bf16.msra.mxu0 0
        %1830 = vmatprep.subr.bf16.mxu0 0
        %1831 = vmatpush1.bf16.msra.mxu0 0
        %1832 = vmatprep.subr.bf16.mxu0 0
        %1833 = vmatpush1.bf16.msra.mxu0 0
        %1834 = vmatprep.subr.bf16.mxu0 0
        %1835 = vmatpush1.bf16.msra.mxu0 0
        %1836 = vmatprep.subr.bf16.mxu0 0
        %1837 = vmatpush1.bf16.msra.mxu0 0
        %1838 = vmatprep.mubr.bf16.mxu0 0
        %1839 = vmatmul.mubr.bf16.gmra.mrb[0].mxu0 %v1801
        %v1840 = vpop.f32.mrb[0].mxu0
        %v1841 = vadd.f32 0.0, %v1840
        %v1842 = vpop.f32.mrb[0].mxu0
        %v1843 = vpop.f32.mrb[0].mxu0
        %v1844 = vpop.f32.mrb[0].mxu0
        %1845 = vdwg.mxu0
        %v1846 = vadd.f32 %v1484, %v1841
      $region168: #{decoder_layer_forward.1} parent=155 // loop_footer
        %s1483 = sadd.s32 1, %s1479
      $region169: #{decoder_layer_forward.1} parent=155 // loop_footer_branch
        %1478 = sbr.rel target = $region165
      $region170: #{decoder_layer_forward.1} parent=155 // loop_exit
        _
      %v1847 = vld [vmem:[%s35] sm:$0x1]
      %v1849 = vlaneseq
      %v1850 = vshrl.u32 %v1849, 7
      %v1851 = vsub.s32 0, %v1850
      %v1852 = vrot.slane %v1847, %v1851
      %v1854 = vadd.f32 %v1484, %v1852
      %v1855 = vadd.f32 %v1476, %v1854
      %v1856 = vsel %vm1446, %v1855, 0.0
      %1857 = vadd.xlane.f32.xlu0 %v1856
      %v1858 = vpop.xlane.xlu0 %1857
      %v1859 = vmul.f32 %v1858, %v1450
      %v1860 = vsub.f32 %v1855, %v1859
      %v1861 = vmul.f32 %v1860, %v1860
      %v1862 = vsel %vm1446, %v1861, 0.0
      %1863 = vadd.xlane.f32.xlu0 %v1862
      %v1864 = vpop.xlane.xlu0 %1863
      %v1865 = vmul.f32 %v1864, %v1450
      %v1866 = vadd.f32 %v1865, 1e-05
      %v1867 = vrsqrt.pop %v1866
      %v1868 = vmul.f32 %v1860, %v1867
      %v1869 = vld [vmem:[%s41] sm:$0x1]
      %v1871 = vlaneseq
      %v1872 = vshrl.u32 %v1871, 7
      %v1873 = vsub.s32 0, %v1872
      %v1874 = vrot.slane %v1869, %v1873
      %v1876 = vmul.f32 %v1868, %v1874
      %v1877 = vld [vmem:[%s43] sm:$0x1]
      %v1879 = vlaneseq
      %v1880 = vshrl.u32 %v1879, 7
      %v1881 = vsub.s32 0, %v1880
      %v1882 = vrot.slane %v1877, %v1881
      %v1884 = vadd.f32 %v1876, %v1882
      %v1885 = vpack.c.bf16 %v1884, %v1884
      %v1886 = vld [vmem:[%s45] sm:$0xf]
      %v1887 = vld [vmem:[%s45 + $0x4] sm:$0xf]
      %v1888 = vld [vmem:[%s45 + $0x8] sm:$0xf]
      %v1889 = vld [vmem:[%s45 + $0xc] sm:$0xf]
      %v1890 = vld [vmem:[%s47] sm:$0x1]
      %v1892 = vlaneseq
      %v1893 = vshrl.u32 %v1892, 7
      %v1894 = vsub.s32 0, %v1893
      %v1895 = vrot.slane %v1890, %v1894
      %v1901 = vunpack.c.l.b16 %v1886
      %v1902 = vunpack.c.l.b16 %v1887
      %v1903 = vunpack.c.l.b16 %v1888
      %v1904 = vunpack.c.l.b16 %v1889
      %v1905 = vpack.c.b16 %v1902, %v1901
      %v1906 = vpack.c.b16 %v1904, %v1903
      %v1910 = vsel %vm1446, %v1885, 0
      %1912 = vmatprep.subr.bf16.mxu0 0
      %1913 = vmatpush1.bf16.msra.mxu0 %v1905
      %1914 = vmatprep.subr.bf16.mxu0 0
      %1915 = vmatpush1.bf16.msra.mxu0 %v1906
      %1916 = vmatprep.subr.bf16.mxu0 0
      %1917 = vmatpush1.bf16.msra.mxu0 0
      %1918 = vmatprep.subr.bf16.mxu0 0
      %1919 = vmatpush1.bf16.msra.mxu0 0
      %1920 = vmatprep.subr.bf16.mxu0 0
      %1921 = vmatpush1.bf16.msra.mxu0 0
      %1922 = vmatprep.subr.bf16.mxu0 0
      %1923 = vmatpush1.bf16.msra.mxu0 0
      %1924 = vmatprep.subr.bf16.mxu0 0
      %1925 = vmatpush1.bf16.msra.mxu0 0
      %1926 = vmatprep.subr.bf16.mxu0 0
      %1927 = vmatpush1.bf16.msra.mxu0 0
      %1928 = vmatprep.subr.bf16.mxu0 0
      %1929 = vmatpush1.bf16.msra.mxu0 0
      %1930 = vmatprep.subr.bf16.mxu0 0
      %1931 = vmatpush1.bf16.msra.mxu0 0
      %1932 = vmatprep.subr.bf16.mxu0 0
      %1933 = vmatpush1.bf16.msra.mxu0 0
      %1934 = vmatprep.subr.bf16.mxu0 0
      %1935 = vmatpush1.bf16.msra.mxu0 0
      %1936 = vmatprep.subr.bf16.mxu0 0
      %1937 = vmatpush1.bf16.msra.mxu0 0
      %1938 = vmatprep.subr.bf16.mxu0 0
      %1939 = vmatpush1.bf16.msra.mxu0 0
      %1940 = vmatprep.subr.bf16.mxu0 0
      %1941 = vmatpush1.bf16.msra.mxu0 0
      %1942 = vmatprep.subr.bf16.mxu0 0
      %1943 = vmatpush1.bf16.msra.mxu0 0
      %1944 = vmatprep.mubr.bf16.mxu0 0
      %1945 = vmatmul.mubr.bf16.gmra.mrb[0].mxu0 %v1910
      %v1946 = vpop.f32.mrb[0].mxu0
      %v1947 = vadd.f32 %v1895, %v1946
      %v1948 = vpop.f32.mrb[0].mxu0
      %v1949 = vpop.f32.mrb[0].mxu0
      %v1950 = vpop.f32.mrb[0].mxu0
      %1951 = vdwg.mxu0
      %v1952 = vmax.f32 %v1947, 0.0
      %v1953 = vpack.c.bf16 %v1952, %v1952
      %v1954 = vld [vmem:[%s49] sm:$0xf]
      %v1955 = vld [vmem:[%s49 + $0x4] sm:$0xf]
      %v1956 = vld [vmem:[%s49 + $0x8] sm:$0xf]
      %v1957 = vld [vmem:[%s49 + $0xc] sm:$0xf]
      %v1958 = vld [vmem:[%s49 + $0x10] sm:$0xf]
      %v1959 = vld [vmem:[%s49 + $0x14] sm:$0xf]
      %v1960 = vld [vmem:[%s49 + $0x18] sm:$0xf]
      %v1961 = vld [vmem:[%s49 + $0x1c] sm:$0xf]
      %v1962 = vld [vmem:[%s51] sm:$0x1]
      %v1964 = vlaneseq
      %v1965 = vshrl.u32 %v1964, 7
      %v1966 = vsub.s32 0, %v1965
      %v1967 = vrot.slane %v1962, %v1966
      %v1977 = vunpack.c.l.b16 %v1954
      %v1978 = vunpack.c.l.b16 %v1955
      %v1979 = vunpack.c.l.b16 %v1956
      %v1980 = vunpack.c.l.b16 %v1957
      %v1981 = vunpack.c.l.b16 %v1958
      %v1982 = vunpack.c.l.b16 %v1959
      %v1983 = vunpack.c.l.b16 %v1960
      %v1984 = vunpack.c.l.b16 %v1961
      %v1985 = vpack.c.b16 %v1978, %v1977
      %v1986 = vpack.c.b16 %v1980, %v1979
      %v1987 = vpack.c.b16 %v1982, %v1981
      %v1988 = vpack.c.b16 %v1984, %v1983
      %vm1993 = vcmask 523264
      %v1995 = vsel %vm1993, %v1953, 0
      %1997 = vmatprep.subr.bf16.mxu0 0
      %1998 = vmatpush1.bf16.msra.mxu0 %v1985
      %1999 = vmatprep.subr.bf16.mxu0 0
      %2000 = vmatpush1.bf16.msra.mxu0 %v1986
      %2001 = vmatprep.subr.bf16.mxu0 0
      %2002 = vmatpush1.bf16.msra.mxu0 %v1987
      %2003 = vmatprep.subr.bf16.mxu0 0
      %2004 = vmatpush1.bf16.msra.mxu0 %v1988
      %2005 = vmatprep.subr.bf16.mxu0 0
      %2006 = vmatpush1.bf16.msra.mxu0 0
      %2007 = vmatprep.subr.bf16.mxu0 0
      %2008 = vmatpush1.bf16.msra.mxu0 0
      %2009 = vmatprep.subr.bf16.mxu0 0
      %2010 = vmatpush1.bf16.msra.mxu0 0
      %2011 = vmatprep.subr.bf16.mxu0 0
      %2012 = vmatpush1.bf16.msra.mxu0 0
      %2013 = vmatprep.subr.bf16.mxu0 0
      %2014 = vmatpush1.bf16.msra.mxu0 0
      %2015 = vmatprep.subr.bf16.mxu0 0
      %2016 = vmatpush1.bf16.msra.mxu0 0
      %2017 = vmatprep.subr.bf16.mxu0 0
      %2018 = vmatpush1.bf16.msra.mxu0 0
      %2019 = vmatprep.subr.bf16.mxu0 0
      %2020 = vmatpush1.bf16.msra.mxu0 0
      %2021 = vmatprep.subr.bf16.mxu0 0
      %2022 = vmatpush1.bf16.msra.mxu0 0
      %2023 = vmatprep.subr.bf16.mxu0 0
      %2024 = vmatpush1.bf16.msra.mxu0 0
      %2025 = vmatprep.subr.bf16.mxu0 0
      %2026 = vmatpush1.bf16.msra.mxu0 0
      %2027 = vmatprep.subr.bf16.mxu0 0
      %2028 = vmatpush1.bf16.msra.mxu0 0
      %2029 = vmatprep.mubr.bf16.mxu0 0
      %2030 = vmatmul.mubr.bf16.gmra.mrb[0].mxu0 %v1995
      %v2031 = vpop.f32.mrb[0].mxu0
      %v2032 = vadd.f32 %v1967, %v2031
      %v2033 = vpop.f32.mrb[0].mxu0
      %v2034 = vpop.f32.mrb[0].mxu0
      %v2035 = vpop.f32.mrb[0].mxu0
      %2036 = vdwg.mxu0
      %v2037 = vadd.f32 %v1884, %v2032
      %vm2038 = vcmask 257024
      %v2039 = vsel %vm2038, %v2037, 0.0
      %2040 = vadd.xlane.f32.xlu0 %v2039
      %v2041 = vpop.xlane.xlu0 %2040
      %v2042 = vmul.f32 %v2041, %v1450
      %v2043 = vsub.f32 %v2037, %v2042
      %v2044 = vmul.f32 %v2043, %v2043
      %v2045 = vsel %vm2038, %v2044, 0.0
      %2046 = vadd.xlane.f32.xlu0 %v2045
      %v2047 = vpop.xlane.xlu0 %2046
      %v2048 = vmul.f32 %v2047, %v1450
      %v2049 = vadd.f32 %v2048, 1e-05
      %v2050 = vrsqrt.pop %v2049
      %v2051 = vmul.f32 %v2043, %v2050
      %v2052 = vld [vmem:[%s61] sm:$0x1]
      %v2054 = vlaneseq
      %v2055 = vshrl.u32 %v2054, 7
      %v2056 = vsub.s32 0, %v2055
      %v2057 = vrot.slane %v2052, %v2056
      %v2059 = vmul.f32 %v2051, %v2057
      %v2060 = vld [vmem:[%s63] sm:$0x1]
      %v2062 = vlaneseq
      %v2063 = vshrl.u32 %v2062, 7
      %v2064 = vsub.s32 0, %v2063
      %v2065 = vrot.slane %v2060, %v2064
      %v2067 = vadd.f32 %v2059, %v2065
      %v2068 = vld [vmem:[%s53] sm:$0xf]
      %v2069 = vld [vmem:[%s53 + $0x4] sm:$0xf]
      %v2070 = vld [vmem:[%s53 + $0x8] sm:$0xf]
      %v2071 = vld [vmem:[%s53 + $0xc] sm:$0xf]
      %v2072 = vld [vmem:[%s55] sm:$0x1]
      %v2074 = vlaneseq
      %v2075 = vshrl.u32 %v2074, 7
      %v2076 = vsub.s32 0, %v2075
      %v2077 = vrot.slane %v2072, %v2076
      %v2080 = vrot.slane %v1885, 2
      %v2085 = vunpack.c.l.b16 %v2068
      %v2086 = vunpack.c.l.b16 %v2069
      %v2087 = vunpack.c.l.b16 %v2070
      %v2088 = vunpack.c.l.b16 %v2071
      %v2089 = vpack.c.b16 %v2086, %v2085
      %v2090 = vpack.c.b16 %v2088, %v2087
      %v2094 = vsel %vm1446, %v2080, 0
      %2096 = vmatprep.subr.bf16.mxu0 0
      %2097 = vmatpush1.bf16.msra.mxu0 %v2089
      %2098 = vmatprep.subr.bf16.mxu0 0
      %2099 = vmatpush1.bf16.msra.mxu0 %v2090
      %2100 = vmatprep.subr.bf16.mxu0 0
      %2101 = vmatpush1.bf16.msra.mxu0 0
      %2102 = vmatprep.subr.bf16.mxu0 0
      %2103 = vmatpush1.bf16.msra.mxu0 0
      %2104 = vmatprep.subr.bf16.mxu0 0
      %2105 = vmatpush1.bf16.msra.mxu0 0
      %2106 = vmatprep.subr.bf16.mxu0 0
      %2107 = vmatpush1.bf16.msra.mxu0 0
      %2108 = vmatprep.subr.bf16.mxu0 0
      %2109 = vmatpush1.bf16.msra.mxu0 0
      %2110 = vmatprep.subr.bf16.mxu0 0
      %2111 = vmatpush1.bf16.msra.mxu0 0
      %2112 = vmatprep.subr.bf16.mxu0 0
      %2113 = vmatpush1.bf16.msra.mxu0 0
      %2114 = vmatprep.subr.bf16.mxu0 0
      %2115 = vmatpush1.bf16.msra.mxu0 0
      %2116 = vmatprep.subr.bf16.mxu0 0
      %2117 = vmatpush1.bf16.msra.mxu0 0
      %2118 = vmatprep.subr.bf16.mxu0 0
      %2119 = vmatpush1.bf16.msra.mxu0 0
      %2120 = vmatprep.subr.bf16.mxu0 0
      %2121 = vmatpush1.bf16.msra.mxu0 0
      %2122 = vmatprep.subr.bf16.mxu0 0
      %2123 = vmatpush1.bf16.msra.mxu0 0
      %2124 = vmatprep.subr.bf16.mxu0 0
      %2125 = vmatpush1.bf16.msra.mxu0 0
      %2126 = vmatprep.subr.bf16.mxu0 0
      %2127 = vmatpush1.bf16.msra.mxu0 0
      %2128 = vmatprep.mubr.bf16.mxu0 0
      %2129 = vmatmul.mubr.bf16.gmra.mrb[0].mxu0 %v2094
      %v2130 = vpop.f32.mrb[0].mxu0
      %v2131 = vadd.f32 %v2077, %v2130
      %v2132 = vpop.f32.mrb[0].mxu0
      %v2133 = vpop.f32.mrb[0].mxu0
      %v2134 = vpop.f32.mrb[0].mxu0
      %2135 = vdwg.mxu0
      %v2136 = vmax.f32 %v2131, 0.0
      %v2137 = vpack.c.bf16 %v2136, %v2136
      %v2138 = vld [vmem:[%s57] sm:$0xf]
      %v2139 = vld [vmem:[%s57 + $0x4] sm:$0xf]
      %v2140 = vld [vmem:[%s57 + $0x8] sm:$0xf]
      %v2141 = vld [vmem:[%s57 + $0xc] sm:$0xf]
      %v2142 = vld [vmem:[%s57 + $0x10] sm:$0xf]
      %v2143 = vld [vmem:[%s57 + $0x14] sm:$0xf]
      %v2144 = vld [vmem:[%s57 + $0x18] sm:$0xf]
      %v2145 = vld [vmem:[%s57 + $0x1c] sm:$0xf]
      %v2146 = vld [vmem:[%s59] sm:$0x1]
      %v2148 = vlaneseq
      %v2149 = vshrl.u32 %v2148, 7
      %v2150 = vsub.s32 0, %v2149
      %v2151 = vrot.slane %v2146, %v2150
      %v2161 = vunpack.c.l.b16 %v2138
      %v2162 = vunpack.c.l.b16 %v2139
      %v2163 = vunpack.c.l.b16 %v2140
      %v2164 = vunpack.c.l.b16 %v2141
      %v2165 = vunpack.c.l.b16 %v2142
      %v2166 = vunpack.c.l.b16 %v2143
      %v2167 = vunpack.c.l.b16 %v2144
      %v2168 = vunpack.c.l.b16 %v2145
      %v2169 = vpack.c.b16 %v2162, %v2161
      %v2170 = vpack.c.b16 %v2164, %v2163
      %v2171 = vpack.c.b16 %v2166, %v2165
      %v2172 = vpack.c.b16 %v2168, %v2167
      %v2178 = vsel %vm1993, %v2137, 0
      %2180 = vmatprep.subr.bf16.mxu0 0
      %2181 = vmatpush1.bf16.msra.mxu0 %v2169
      %2182 = vmatprep.subr.bf16.mxu0 0
      %2183 = vmatpush1.bf16.msra.mxu0 %v2170
      %2184 = vmatprep.subr.bf16.mxu0 0
      %2185 = vmatpush1.bf16.msra.mxu0 %v2171
      %2186 = vmatprep.subr.bf16.mxu0 0
      %2187 = vmatpush1.bf16.msra.mxu0 %v2172
      %2188 = vmatprep.subr.bf16.mxu0 0
      %2189 = vmatpush1.bf16.msra.mxu0 0
      %2190 = vmatprep.subr.bf16.mxu0 0
      %2191 = vmatpush1.bf16.msra.mxu0 0
      %2192 = vmatprep.subr.bf16.mxu0 0
      %2193 = vmatpush1.bf16.msra.mxu0 0
      %2194 = vmatprep.subr.bf16.mxu0 0
      %2195 = vmatpush1.bf16.msra.mxu0 0
      %2196 = vmatprep.subr.bf16.mxu0 0
      %2197 = vmatpush1.bf16.msra.mxu0 0
      %2198 = vmatprep.subr.bf16.mxu0 0
      %2199 = vmatpush1.bf16.msra.mxu0 0
      %2200 = vmatprep.subr.bf16.mxu0 0
      %2201 = vmatpush1.bf16.msra.mxu0 0
      %2202 = vmatprep.subr.bf16.mxu0 0
      %2203 = vmatpush1.bf16.msra.mxu0 0
      %2204 = vmatprep.subr.bf16.mxu0 0
      %2205 = vmatpush1.bf16.msra.mxu0 0
      %2206 = vmatprep.subr.bf16.mxu0 0
      %2207 = vmatpush1.bf16.msra.mxu0 0
      %2208 = vmatprep.subr.bf16.mxu0 0
      %2209 = vmatpush1.bf16.msra.mxu0 0
      %2210 = vmatprep.subr.bf16.mxu0 0
      %2211 = vmatpush1.bf16.msra.mxu0 0
      %2212 = vmatprep.mubr.bf16.mxu0 0
      %2213 = vmatmul.mubr.bf16.gmra.mrb[0].mxu0 %v2178
      %v2214 = vpop.f32.mrb[0].mxu0
      %v2215 = vadd.f32 %v2151, %v2214
      %v2216 = vpop.f32.mrb[0].mxu0
      %v2217 = vpop.f32.mrb[0].mxu0
      %v2218 = vpop.f32.mrb[0].mxu0
      %2219 = vdwg.mxu0
      %v2221 = vrot.slane %v2215, 4
      %v2223 = vadd.f32 %v1884, %v2221
      %vm2224 = vcmask 261124
      %v2225 = vsel %vm2224, %v2223, 0.0
      %2226 = vadd.xlane.f32.xlu0 %v2225
      %v2227 = vpop.xlane.xlu0 %2226
      %v2228 = vmul.f32 %v2227, %v1450
      %v2229 = vsub.f32 %v2223, %v2228
      %v2230 = vmul.f32 %v2229, %v2229
      %v2231 = vsel %vm2224, %v2230, 0.0
      %2232 = vadd.xlane.f32.xlu0 %v2231
      %v2233 = vpop.xlane.xlu0 %2232
      %v2234 = vmul.f32 %v2233, %v1450
      %v2235 = vadd.f32 %v2234, 1e-05
      %v2236 = vrsqrt.pop %v2235
      %v2237 = vmul.f32 %v2229, %v2236
      %v2238 = vld [vmem:[%s65] sm:$0x1]
      %v2240 = vlaneseq
      %v2241 = vshrl.u32 %v2240, 7
      %v2242 = vsub.s32 0, %v2241
      %v2243 = vrot.slane %v2238, %v2242
      %v2245 = vmul.f32 %v2237, %v2243
      %v2246 = vld [vmem:[%s67] sm:$0x1]
      %v2248 = vlaneseq
      %v2249 = vshrl.u32 %v2248, 7
      %v2250 = vsub.s32 0, %v2249
      %v2251 = vrot.slane %v2246, %v2250
      %v2253 = vadd.f32 %v2245, %v2251
      %2254 = vst.msk [vmem:[%s1059] sm:$0xf] %vm2038, %v2067
      %2255 = vst.msk [vmem:[%s1059] sm:$0xf0] %vm2224, %v2253
      %p2256 = scmp.lt.s32.totalorder %s80, 1
      %s2257 = scalar_select %p2256, %s80, 1
      %s2258 = smul.addr %s2257, 8
      %s2259 = scalar_lea.vmem %s69, %s2258
      // Predicated region
      $region171: #{decoder_layer_forward.1} parent=155 // pred_check
        %p2260 = pneg %p822
      $region172: #{decoder_layer_forward.1} parent=155 // pred_check_branch
        %2262 = sbr.rel (%p2260) target = $region174
      $region173: #{decoder_layer_forward.1} parent=155 // pred_region
        _
      $region174: #{decoder_layer_forward.1} parent=155 // pred_fallthru
        _
    $region156: #{decoder_layer_forward.1} parent=5 // pred_fallthru
      _
    %p2263 = scmp.le.s32.totalorder 2, %s75
    // Predicated region
    $region175: #{decoder_layer_forward.1} parent=5 // pred_check
      %p2264 = pneg %p2263
    $region176: #{decoder_layer_forward.1} parent=5 // pred_check_branch
      %2266 = sbr.rel (%p2264) target = $region178
    $region177: #{decoder_layer_forward.1} parent=5 // pred_region
      %s2267 = ssub.s32 %s75, 2
      // Predicated region
      $region179: #{decoder_layer_forward.1} parent=177 // pred_check
        %p2268 = pneg %p828
      $region180: #{decoder_layer_forward.1} parent=177 // pred_check_branch
        %2270 = sbr.rel (%p2268) target = $region182
      $region181: #{decoder_layer_forward.1} parent=177 // pred_region
        %p2271 = scmp.lt.s32.totalorder %s81, 1
        %s2272 = scalar_select %p2271, %s81, 1
        %s2273 = smul.addr %s2272, 8
        %s2274 = scalar_lea.vmem %s69, %s2273
      $region182: #{decoder_layer_forward.1} parent=177 // pred_fallthru
        _
    $region178: #{decoder_layer_forward.1} parent=5 // pred_fallthru
      _
  $region6: #{decoder_layer_forward.1} parent=0 // loop_footer
    %s79 = sadd.s32 1, %s75
  $region7: #{decoder_layer_forward.1} parent=0 // loop_footer_branch
    %74 = sbr.rel target = $region3
  $region8: #{decoder_layer_forward.1} parent=0 // loop_exit
    _

// kernel: decoder_layer_forward.1
$region0: #{decoder_layer_forward.1}
  #allocation0 [shape = 'u32[]', space=smem, size = 0x4, offset = 0x4, fixed_abs, tag = 'smem constant byte address 0x4 - core index']
  #allocation1 [shape = 'u32[144,128]{1,0:T(1,128)}', space=vmem, size = 0x12000, scoped, tag = 'internal scratch']
  %s0 = inlined_call_operand.smem [shape: u32[35], index: -1, kind: input, shape index: {}]
  %s1 = sld [smem:[%s0]]
  %s2 = scalar_lea.smem %s0, 1
  %s3 = sld [smem:[%s2]]
  %s4 = scalar_lea.smem %s0, 2
  %s5 = sld [smem:[%s4]]
  %s6 = scalar_lea.smem %s0, 3
  %s7 = sld [smem:[%s6]]
  %s8 = scalar_lea.smem %s0, 4
  %s9 = sld [smem:[%s8]]
  %s10 = scalar_lea.smem %s0, 5
  %s11 = sld [smem:[%s10]]
  %s12 = scalar_lea.smem %s0, 6
  %s13 = sld [smem:[%s12]]
  %s14 = scalar_lea.smem %s0, 7
  %s15 = sld [smem:[%s14]]
  %s16 = scalar_lea.smem %s0, 8
  %s17 = sld [smem:[%s16]]
  %s18 = scalar_lea.smem %s0, 9
  %s19 = sld [smem:[%s18]]
  %s20 = scalar_lea.smem %s0, 10
  %s21 = sld [smem:[%s20]]
  %s22 = scalar_lea.smem %s0, 11
  %s23 = sld [smem:[%s22]]
  %s24 = scalar_lea.smem %s0, 12
  %s25 = sld [smem:[%s24]]
  %s26 = scalar_lea.smem %s0, 13
  %s27 = sld [smem:[%s26]]
  %s28 = scalar_lea.smem %s0, 14
  %s29 = sld [smem:[%s28]]
  %s30 = scalar_lea.smem %s0, 15
  %s31 = sld [smem:[%s30]]
  %s32 = scalar_lea.smem %s0, 16
  %s33 = sld [smem:[%s32]]
  %s34 = scalar_lea.smem %s0, 17
  %s35 = sld [smem:[%s34]]
  %s36 = scalar_lea.smem %s0, 18
  %s37 = sld [smem:[%s36]]
  %s38 = scalar_lea.smem %s0, 19
  %s39 = sld [smem:[%s38]]
  %s40 = scalar_lea.smem %s0, 20
  %s41 = sld [smem:[%s40]]
  %s42 = scalar_lea.smem %s0, 21
  %s43 = sld [smem:[%s42]]
  %s44 = scalar_lea.smem %s0, 22
  %s45 = sld [smem:[%s44]]
  %s46 = scalar_lea.smem %s0, 23
  %s47 = sld [smem:[%s46]]
  %s48 = scalar_lea.smem %s0, 24
  %s49 = sld [smem:[%s48]]
  %s50 = scalar_lea.smem %s0, 25
  %s51 = sld [smem:[%s50]]
  %s52 = scalar_lea.smem %s0, 26
  %s53 = sld [smem:[%s52]]
  %s54 = scalar_lea.smem %s0, 27
  %s55 = sld [smem:[%s54]]
  %s56 = scalar_lea.smem %s0, 28
  %s57 = sld [smem:[%s56]]
  %s58 = scalar_lea.smem %s0, 29
  %s59 = sld [smem:[%s58]]
  %s60 = scalar_lea.smem %s0, 30
  %s61 = sld [smem:[%s60]]
  %s62 = scalar_lea.smem %s0, 31
  %s63 = sld [smem:[%s62]]
  %s64 = scalar_lea.smem %s0, 32
  %s65 = sld [smem:[%s64]]
  %s66 = scalar_lea.smem %s0, 33
  %s67 = sld [smem:[%s66]]
  %s68 = scalar_lea.smem %s0, 34
  %s69 = sld [smem:[%s68]]
  %s70 = sld [smem:[#allocation0]]
  $region183: #{decoder_layer_forward.1} parent=0
    _
  %s72 = ssub.s32 1, %s70
  %s73 = scalar_select 0, %s72, %s70
  loop: start=0, step=1, limit=4
  $region2: #{decoder_layer_forward.1} parent=0 // loop_pre_header
    _
  $region3: #{decoder_layer_forward.1} parent=0 // loop_header
    %s75 = sphi 0, %s79
    %p76 = scmp.ge.s32.totalorder %s75, 4
    %s85 = sphi 0, %s87
    %s88 = sphi 0, %s85
    %s89 = sphi 0, %s88
    %s105 = sphi 0, %s89
    %s111 = sphi 0, %s113
    %s114 = sphi 0, %s111
    %s115 = sphi 0, %s114
    %s131 = sphi 0, %s115
    %s135 = sphi 0, %s135
    %s137 = sphi 0, %s135
    %s138 = sphi 0, %s137
    %s152 = sphi 0, %s138
    %s156 = sphi 0, %s156
    %s158 = sphi 0, %s156
    %s159 = sphi 0, %s158
    %s173 = sphi 0, %s159
    %s177 = sphi 0, %s177
    %s179 = sphi 0, %s177
    %s180 = sphi 0, %s179
    %s194 = sphi 0, %s180
    %s198 = sphi 0, %s198
    %s200 = sphi 0, %s198
    %s201 = sphi 0, %s200
    %s215 = sphi 0, %s201
    %s219 = sphi 0, %s219
    %s221 = sphi 0, %s219
    %s222 = sphi 0, %s221
    %s236 = sphi 0, %s222
    %s240 = sphi 0, %s240
    %s242 = sphi 0, %s240
    %s243 = sphi 0, %s242
    %s257 = sphi 0, %s243
    %s261 = sphi 0, %s261
    %s263 = sphi 0, %s261
    %s264 = sphi 0, %s263
    %s278 = sphi 0, %s264
    %s282 = sphi 0, %s282
    %s284 = sphi 0, %s282
    %s285 = sphi 0, %s284
    %s299 = sphi 0, %s285
    %s303 = sphi 0, %s303
    %s305 = sphi 0, %s303
    %s306 = sphi 0, %s305
    %s320 = sphi 0, %s306
    %s324 = sphi 0, %s324
    %s326 = sphi 0, %s324
    %s327 = sphi 0, %s326
    %s341 = sphi 0, %s327
    %s345 = sphi 0, %s345
    %s347 = sphi 0, %s345
    %s348 = sphi 0, %s347
    %s362 = sphi 0, %s348
    %s366 = sphi 0, %s366
    %s368 = sphi 0, %s366
    %s369 = sphi 0, %s368
    %s383 = sphi 0, %s369
    %s387 = sphi 0, %s387
    %s389 = sphi 0, %s387
    %s390 = sphi 0, %s389
    %s404 = sphi 0, %s390
    %s408 = sphi 0, %s408
    %s410 = sphi 0, %s408
    %s411 = sphi 0, %s410
    %s425 = sphi 0, %s411
    %s429 = sphi 0, %s429
    %s431 = sphi 0, %s429
    %s432 = sphi 0, %s431
    %s446 = sphi 0, %s432
    %s450 = sphi 0, %s450
    %s452 = sphi 0, %s450
    %s453 = sphi 0, %s452
    %s467 = sphi 0, %s453
    %s471 = sphi 0, %s471
    %s473 = sphi 0, %s471
    %s474 = sphi 0, %s473
    %s488 = sphi 0, %s474
    %s492 = sphi 0, %s492
    %s494 = sphi 0, %s492
    %s495 = sphi 0, %s494
    %s509 = sphi 0, %s495
    %s513 = sphi 0, %s513
    %s515 = sphi 0, %s513
    %s516 = sphi 0, %s515
    %s530 = sphi 0, %s516
    %s534 = sphi 0, %s534
    %s536 = sphi 0, %s534
    %s537 = sphi 0, %s536
    %s551 = sphi 0, %s537
    %s555 = sphi 0, %s555
    %s557 = sphi 0, %s555
    %s558 = sphi 0, %s557
    %s572 = sphi 0, %s558
    %s576 = sphi 0, %s576
    %s578 = sphi 0, %s576
    %s579 = sphi 0, %s578
    %s593 = sphi 0, %s579
    %s597 = sphi 0, %s597
    %s599 = sphi 0, %s597
    %s600 = sphi 0, %s599
    %s614 = sphi 0, %s600
    %s618 = sphi 0, %s618
    %s620 = sphi 0, %s618
    %s621 = sphi 0, %s620
    %s635 = sphi 0, %s621
    %s639 = sphi 0, %s639
    %s641 = sphi 0, %s639
    %s642 = sphi 0, %s641
    %s656 = sphi 0, %s642
    %s660 = sphi 0, %s660
    %s662 = sphi 0, %s660
    %s663 = sphi 0, %s662
    %s677 = sphi 0, %s663
    %s681 = sphi 0, %s681
    %s683 = sphi 0, %s681
    %s684 = sphi 0, %s683
    %s698 = sphi 0, %s684
    %s702 = sphi 0, %s702
    %s704 = sphi 0, %s702
    %s705 = sphi 0, %s704
    %s719 = sphi 0, %s705
    %s723 = sphi 0, %s723
    %s725 = sphi 0, %s723
    %s726 = sphi 0, %s725
    %s740 = sphi 0, %s726
    %s744 = sphi 0, %s744
    %s746 = sphi 0, %s744
    %s747 = sphi 0, %s746
    %s761 = sphi 0, %s747
    %s765 = sphi 0, %s765
    %s767 = sphi 0, %s765
    %s768 = sphi 0, %s767
    %s782 = sphi 0, %s768
    %s786 = sphi 0, %s786
    %s788 = sphi 0, %s786
    %s789 = sphi 0, %s788
    %s803 = sphi 0, %s789
    %s809 = sphi 0, %s811
    %s812 = sphi 0, %s809
    %s813 = sphi 0, %s812
    %s829 = sphi 0, %s813
  $region4: #{decoder_layer_forward.1} parent=0 // loop_header_branch
    %78 = sbr.rel (%p76) target = $region8
  $region5: #{decoder_layer_forward.1} parent=0 // loop_body
    %s80 = ssub.s32 %s75, 1
    %s81 = ssub.s32 %s75, 2
    %s82 = sadd.s32 %s75, 1
    %s83 = ssub.s32 %s75, %s82
    %p84 = scmp.eq.s32.totalorder %s83, 0
    %s86 = sadd.s32 %s85, 1
    %s87 = scalar_select %p84, %s85, %s86
    %p90 = pneg %p84
    %p91 = scmp.eq.s32.totalorder %s75, 1
    %p92 = por %p90, %p91
    %p93 = scmp.ne.s32.totalorder %s85, %s88
    %p94 = scmp.eq.s32.totalorder %s75, 0
    %p95 = por %p93, %p94
    %p96 = scmp.ne.s32.totalorder %s85, %s88
    %p97 = scmp.eq.s32.totalorder %s80, 1
    %p98 = por %p96, %p97
    %p99 = scmp.ne.s32.totalorder %s88, %s89
    %p100 = scmp.eq.s32.totalorder %s80, 0
    %p101 = por %p99, %p100
    %p102 = scmp.ne.s32.totalorder %s88, %s89
    %p103 = scmp.eq.s32.totalorder %s81, 1
    %p104 = por %p102, %p103
    %p106 = scmp.ne.s32.totalorder %s89, %s105
    %p107 = scmp.eq.s32.totalorder %s81, 0
    %p108 = por %p106, %p107
    %s109 = ssub.s32 %s75, %s82
    %p110 = scmp.eq.s32.totalorder %s109, 0
    %s112 = sadd.s32 %s111, 1
    %s113 = scalar_select %p110, %s111, %s112
    %p116 = pneg %p110
    %p117 = scmp.eq.s32.totalorder %s75, 1
    %p118 = por %p116, %p117
    %p119 = scmp.ne.s32.totalorder %s111, %s114
    %p120 = scmp.eq.s32.totalorder %s75, 0
    %p121 = por %p119, %p120
    %p122 = scmp.ne.s32.totalorder %s111, %s114
    %p123 = scmp.eq.s32.totalorder %s80, 1
    %p124 = por %p122, %p123
    %p125 = scmp.ne.s32.totalorder %s114, %s115
    %p126 = scmp.eq.s32.totalorder %s80, 0
    %p127 = por %p125, %p126
    %p128 = scmp.ne.s32.totalorder %s114, %s115
    %p129 = scmp.eq.s32.totalorder %s81, 1
    %p130 = por %p128, %p129
    %p132 = scmp.ne.s32.totalorder %s115, %s131
    %p133 = scmp.eq.s32.totalorder %s81, 0
    %p134 = por %p132, %p133
    %s136 = sadd.s32 %s135, 1
    %p139 = scmp.eq.s32.totalorder %s75, 1
    %p140 = scmp.ne.s32.totalorder %s135, %s137
    %p141 = scmp.eq.s32.totalorder %s75, 0
    %p142 = por %p140, %p141
    %p143 = scmp.ne.s32.totalorder %s135, %s137
    %p144 = scmp.eq.s32.totalorder %s80, 1
    %p145 = por %p143, %p144
    %p146 = scmp.ne.s32.totalorder %s137, %s138
    %p147 = scmp.eq.s32.totalorder %s80, 0
    %p148 = por %p146, %p147
    %p149 = scmp.ne.s32.totalorder %s137, %s138
    %p150 = scmp.eq.s32.totalorder %s81, 1
    %p151 = por %p149, %p150
    %p153 = scmp.ne.s32.totalorder %s138, %s152
    %p154 = scmp.eq.s32.totalorder %s81, 0
    %p155 = por %p153, %p154
    %s157 = sadd.s32 %s156, 1
    %p160 = scmp.eq.s32.totalorder %s75, 1
    %p161 = scmp.ne.s32.totalorder %s156, %s158
    %p162 = scmp.eq.s32.totalorder %s75, 0
    %p163 = por %p161, %p162
    %p164 = scmp.ne.s32.totalorder %s156, %s158
    %p165 = scmp.eq.s32.totalorder %s80, 1
    %p166 = por %p164, %p165
    %p167 = scmp.ne.s32.totalorder %s158, %s159
    %p168 = scmp.eq.s32.totalorder %s80, 0
    %p169 = por %p167, %p168
    %p170 = scmp.ne.s32.totalorder %s158, %s159
    %p171 = scmp.eq.s32.totalorder %s81, 1
    %p172 = por %p170, %p171
    %p174 = scmp.ne.s32.totalorder %s159, %s173
    %p175 = scmp.eq.s32.totalorder %s81, 0
    %p176 = por %p174, %p175
    %s178 = sadd.s32 %s177, 1
    %p181 = scmp.eq.s32.totalorder %s75, 1
    %p182 = scmp.ne.s32.totalorder %s177, %s179
    %p183 = scmp.eq.s32.totalorder %s75, 0
    %p184 = por %p182, %p183
    %p185 = scmp.ne.s32.totalorder %s177, %s179
    %p186 = scmp.eq.s32.totalorder %s80, 1
    %p187 = por %p185, %p186
    %p188 = scmp.ne.s32.totalorder %s179, %s180
    %p189 = scmp.eq.s32.totalorder %s80, 0
    %p190 = por %p188, %p189
    %p191 = scmp.ne.s32.totalorder %s179, %s180
    %p192 = scmp.eq.s32.totalorder %s81, 1
    %p193 = por %p191, %p192
    %p195 = scmp.ne.s32.totalorder %s180, %s194
    %p196 = scmp.eq.s32.totalorder %s81, 0
    %p197 = por %p195, %p196
    %s199 = sadd.s32 %s198, 1
    %p202 = scmp.eq.s32.totalorder %s75, 1
    %p203 = scmp.ne.s32.totalorder %s198, %s200
    %p204 = scmp.eq.s32.totalorder %s75, 0
    %p205 = por %p203, %p204
    %p206 = scmp.ne.s32.totalorder %s198, %s200
    %p207 = scmp.eq.s32.totalorder %s80, 1
    %p208 = por %p206, %p207
    %p209 = scmp.ne.s32.totalorder %s200, %s201
    %p210 = scmp.eq.s32.totalorder %s80, 0
    %p211 = por %p209, %p210
    %p212 = scmp.ne.s32.totalorder %s200, %s201
    %p213 = scmp.eq.s32.totalorder %s81, 1
    %p214 = por %p212, %p213
    %p216 = scmp.ne.s32.totalorder %s201, %s215
    %p217 = scmp.eq.s32.totalorder %s81, 0
    %p218 = por %p216, %p217
    %s220 = sadd.s32 %s219, 1
    %p223 = scmp.eq.s32.totalorder %s75, 1
    %p224 = scmp.ne.s32.totalorder %s219, %s221
    %p225 = scmp.eq.s32.totalorder %s75, 0
    %p226 = por %p224, %p225
    %p227 = scmp.ne.s32.totalorder %s219, %s221
    %p228 = scmp.eq.s32.totalorder %s80, 1
    %p229 = por %p227, %p228
    %p230 = scmp.ne.s32.totalorder %s221, %s222
    %p231 = scmp.eq.s32.totalorder %s80, 0
    %p232 = por %p230, %p231
    %p233 = scmp.ne.s32.totalorder %s221, %s222
    %p234 = scmp.eq.s32.totalorder %s81, 1
    %p235 = por %p233, %p234
    %p237 = scmp.ne.s32.totalorder %s222, %s236
    %p238 = scmp.eq.s32.totalorder %s81, 0
    %p239 = por %p237, %p238
    %s241 = sadd.s32 %s240, 1
    %p244 = scmp.eq.s32.totalorder %s75, 1
    %p245 = scmp.ne.s32.totalorder %s240, %s242
    %p246 = scmp.eq.s32.totalorder %s75, 0
    %p247 = por %p245, %p246
    %p248 = scmp.ne.s32.totalorder %s240, %s242
    %p249 = scmp.eq.s32.totalorder %s80, 1
    %p250 = por %p248, %p249
    %p251 = scmp.ne.s32.totalorder %s242, %s243
    %p252 = scmp.eq.s32.totalorder %s80, 0
    %p253 = por %p251, %p252
    %p254 = scmp.ne.s32.totalorder %s242, %s243
    %p255 = scmp.eq.s32.totalorder %s81, 1
    %p256 = por %p254, %p255
    %p258 = scmp.ne.s32.totalorder %s243, %s257
    %p259 = scmp.eq.s32.totalorder %s81, 0
    %p260 = por %p258, %p259
    %s262 = sadd.s32 %s261, 1
    %p265 = scmp.eq.s32.totalorder %s75, 1
    %p266 = scmp.ne.s32.totalorder %s261, %s263
    %p267 = scmp.eq.s32.totalorder %s75, 0
    %p268 = por %p266, %p267
    %p269 = scmp.ne.s32.totalorder %s261, %s263
    %p270 = scmp.eq.s32.totalorder %s80, 1
    %p271 = por %p269, %p270
    %p272 = scmp.ne.s32.totalorder %s263, %s264
    %p273 = scmp.eq.s32.totalorder %s80, 0
    %p274 = por %p272, %p273
    %p275 = scmp.ne.s32.totalorder %s263, %s264
    %p276 = scmp.eq.s32.totalorder %s81, 1
    %p277 = por %p275, %p276
    %p279 = scmp.ne.s32.totalorder %s264, %s278
    %p280 = scmp.eq.s32.totalorder %s81, 0
    %p281 = por %p279, %p280
    %s283 = sadd.s32 %s282, 1
    %p286 = scmp.eq.s32.totalorder %s75, 1
    %p287 = scmp.ne.s32.totalorder %s282, %s284
    %p288 = scmp.eq.s32.totalorder %s75, 0
    %p289 = por %p287, %p288
    %p290 = scmp.ne.s32.totalorder %s282, %s284
    %p291 = scmp.eq.s32.totalorder %s80, 1
    %p292 = por %p290, %p291
    %p293 = scmp.ne.s32.totalorder %s284, %s285
    %p294 = scmp.eq.s32.totalorder %s80, 0
    %p295 = por %p293, %p294
    %p296 = scmp.ne.s32.totalorder %s284, %s285
    %p297 = scmp.eq.s32.totalorder %s81, 1
    %p298 = por %p296, %p297
    %p300 = scmp.ne.s32.totalorder %s285, %s299
    %p301 = scmp.eq.s32.totalorder %s81, 0
    %p302 = por %p300, %p301
    %s304 = sadd.s32 %s303, 1
    %p307 = scmp.eq.s32.totalorder %s75, 1
    %p308 = scmp.ne.s32.totalorder %s303, %s305
    %p309 = scmp.eq.s32.totalorder %s75, 0
    %p310 = por %p308, %p309
    %p311 = scmp.ne.s32.totalorder %s303, %s305
    %p312 = scmp.eq.s32.totalorder %s80, 1
    %p313 = por %p311, %p312
    %p314 = scmp.ne.s32.totalorder %s305, %s306
    %p315 = scmp.eq.s32.totalorder %s80, 0
    %p316 = por %p314, %p315
    %p317 = scmp.ne.s32.totalorder %s305, %s306
    %p318 = scmp.eq.s32.totalorder %s81, 1
    %p319 = por %p317, %p318
    %p321 = scmp.ne.s32.totalorder %s306, %s320
    %p322 = scmp.eq.s32.totalorder %s81, 0
    %p323 = por %p321, %p322
    %s325 = sadd.s32 %s324, 1
    %p328 = scmp.eq.s32.totalorder %s75, 1
    %p329 = scmp.ne.s32.totalorder %s324, %s326
    %p330 = scmp.eq.s32.totalorder %s75, 0
    %p331 = por %p329, %p330
    %p332 = scmp.ne.s32.totalorder %s324, %s326
    %p333 = scmp.eq.s32.totalorder %s80, 1
    %p334 = por %p332, %p333
    %p335 = scmp.ne.s32.totalorder %s326, %s327
    %p336 = scmp.eq.s32.totalorder %s80, 0
    %p337 = por %p335, %p336
    %p338 = scmp.ne.s32.totalorder %s326, %s327
    %p339 = scmp.eq.s32.totalorder %s81, 1
    %p340 = por %p338, %p339
    %p342 = scmp.ne.s32.totalorder %s327, %s341
    %p343 = scmp.eq.s32.totalorder %s81, 0
    %p344 = por %p342, %p343
    %s346 = sadd.s32 %s345, 1
    %p349 = scmp.eq.s32.totalorder %s75, 1
    %p350 = scmp.ne.s32.totalorder %s345, %s347
    %p351 = scmp.eq.s32.totalorder %s75, 0
    %p352 = por %p350, %p351
    %p353 = scmp.ne.s32.totalorder %s345, %s347
    %p354 = scmp.eq.s32.totalorder %s80, 1
    %p355 = por %p353, %p354
    %p356 = scmp.ne.s32.totalorder %s347, %s348
    %p357 = scmp.eq.s32.totalorder %s80, 0
    %p358 = por %p356, %p357
    %p359 = scmp.ne.s32.totalorder %s347, %s348
    %p360 = scmp.eq.s32.totalorder %s81, 1
    %p361 = por %p359, %p360
    %p363 = scmp.ne.s32.totalorder %s348, %s362
    %p364 = scmp.eq.s32.totalorder %s81, 0
    %p365 = por %p363, %p364
    %s367 = sadd.s32 %s366, 1
    %p370 = scmp.eq.s32.totalorder %s75, 1
    %p371 = scmp.ne.s32.totalorder %s366, %s368
    %p372 = scmp.eq.s32.totalorder %s75, 0
    %p373 = por %p371, %p372
    %p374 = scmp.ne.s32.totalorder %s366, %s368
    %p375 = scmp.eq.s32.totalorder %s80, 1
    %p376 = por %p374, %p375
    %p377 = scmp.ne.s32.totalorder %s368, %s369
    %p378 = scmp.eq.s32.totalorder %s80, 0
    %p379 = por %p377, %p378
    %p380 = scmp.ne.s32.totalorder %s368, %s369
    %p381 = scmp.eq.s32.totalorder %s81, 1
    %p382 = por %p380, %p381
    %p384 = scmp.ne.s32.totalorder %s369, %s383
    %p385 = scmp.eq.s32.totalorder %s81, 0
    %p386 = por %p384, %p385
    %s388 = sadd.s32 %s387, 1
    %p391 = scmp.eq.s32.totalorder %s75, 1
    %p392 = scmp.ne.s32.totalorder %s387, %s389
    %p393 = scmp.eq.s32.totalorder %s75, 0
    %p394 = por %p392, %p393
    %p395 = scmp.ne.s32.totalorder %s387, %s389
    %p396 = scmp.eq.s32.totalorder %s80, 1
    %p397 = por %p395, %p396
    %p398 = scmp.ne.s32.totalorder %s389, %s390
    %p399 = scmp.eq.s32.totalorder %s80, 0
    %p400 = por %p398, %p399
    %p401 = scmp.ne.s32.totalorder %s389, %s390
    %p402 = scmp.eq.s32.totalorder %s81, 1
    %p403 = por %p401, %p402
    %p405 = scmp.ne.s32.totalorder %s390, %s404
    %p406 = scmp.eq.s32.totalorder %s81, 0
    %p407 = por %p405, %p406
    %s409 = sadd.s32 %s408, 1
    %p412 = scmp.eq.s32.totalorder %s75, 1
    %p413 = scmp.ne.s32.totalorder %s408, %s410
    %p414 = scmp.eq.s32.totalorder %s75, 0
    %p415 = por %p413, %p414
    %p416 = scmp.ne.s32.totalorder %s408, %s410
    %p417 = scmp.eq.s32.totalorder %s80, 1
    %p418 = por %p416, %p417
    %p419 = scmp.ne.s32.totalorder %s410, %s411
    %p420 = scmp.eq.s32.totalorder %s80, 0
    %p421 = por %p419, %p420
    %p422 = scmp.ne.s32.totalorder %s410, %s411
    %p423 = scmp.eq.s32.totalorder %s81, 1
    %p424 = por %p422, %p423
    %p426 = scmp.ne.s32.totalorder %s411, %s425
    %p427 = scmp.eq.s32.totalorder %s81, 0
    %p428 = por %p426, %p427
    %s430 = sadd.s32 %s429, 1
    %p433 = scmp.eq.s32.totalorder %s75, 1
    %p434 = scmp.ne.s32.totalorder %s429, %s431
    %p435 = scmp.eq.s32.totalorder %s75, 0
    %p436 = por %p434, %p435
    %p437 = scmp.ne.s32.totalorder %s429, %s431
    %p438 = scmp.eq.s32.totalorder %s80, 1
    %p439 = por %p437, %p438
    %p440 = scmp.ne.s32.totalorder %s431, %s432
    %p441 = scmp.eq.s32.totalorder %s80, 0
    %p442 = por %p440, %p441
    %p443 = scmp.ne.s32.totalorder %s431, %s432
    %p444 = scmp.eq.s32.totalorder %s81, 1
    %p445 = por %p443, %p444
    %p447 = scmp.ne.s32.totalorder %s432, %s446
    %p448 = scmp.eq.s32.totalorder %s81, 0
    %p449 = por %p447, %p448
    %s451 = sadd.s32 %s450, 1
    %p454 = scmp.eq.s32.totalorder %s75, 1
    %p455 = scmp.ne.s32.totalorder %s450, %s452
    %p456 = scmp.eq.s32.totalorder %s75, 0
    %p457 = por %p455, %p456
    %p458 = scmp.ne.s32.totalorder %s450, %s452
    %p459 = scmp.eq.s32.totalorder %s80, 1
    %p460 = por %p458, %p459
    %p461 = scmp.ne.s32.totalorder %s452, %s453
    %p462 = scmp.eq.s32.totalorder %s80, 0
    %p463 = por %p461, %p462
    %p464 = scmp.ne.s32.totalorder %s452, %s453
    %p465 = scmp.eq.s32.totalorder %s81, 1
    %p466 = por %p464, %p465
    %p468 = scmp.ne.s32.totalorder %s453, %s467
    %p469 = scmp.eq.s32.totalorder %s81, 0
    %p470 = por %p468, %p469
    %s472 = sadd.s32 %s471, 1
    %p475 = scmp.eq.s32.totalorder %s75, 1
    %p476 = scmp.ne.s32.totalorder %s471, %s473
    %p477 = scmp.eq.s32.totalorder %s75, 0
    %p478 = por %p476, %p477
    %p479 = scmp.ne.s32.totalorder %s471, %s473
    %p480 = scmp.eq.s32.totalorder %s80, 1
    %p481 = por %p479, %p480
    %p482 = scmp.ne.s32.totalorder %s473, %s474
    %p483 = scmp.eq.s32.totalorder %s80, 0
    %p484 = por %p482, %p483
    %p485 = scmp.ne.s32.totalorder %s473, %s474
    %p486 = scmp.eq.s32.totalorder %s81, 1
    %p487 = por %p485, %p486
    %p489 = scmp.ne.s32.totalorder %s474, %s488
    %p490 = scmp.eq.s32.totalorder %s81, 0
    %p491 = por %p489, %p490
    %s493 = sadd.s32 %s492, 1
    %p496 = scmp.eq.s32.totalorder %s75, 1
    %p497 = scmp.ne.s32.totalorder %s492, %s494
    %p498 = scmp.eq.s32.totalorder %s75, 0
    %p499 = por %p497, %p498
    %p500 = scmp.ne.s32.totalorder %s492, %s494
    %p501 = scmp.eq.s32.totalorder %s80, 1
    %p502 = por %p500, %p501
    %p503 = scmp.ne.s32.totalorder %s494, %s495
    %p504 = scmp.eq.s32.totalorder %s80, 0
    %p505 = por %p503, %p504
    %p506 = scmp.ne.s32.totalorder %s494, %s495
    %p507 = scmp.eq.s32.totalorder %s81, 1
    %p508 = por %p506, %p507
    %p510 = scmp.ne.s32.totalorder %s495, %s509
    %p511 = scmp.eq.s32.totalorder %s81, 0
    %p512 = por %p510, %p511
    %s514 = sadd.s32 %s513, 1
    %p517 = scmp.eq.s32.totalorder %s75, 1
    %p518 = scmp.ne.s32.totalorder %s513, %s515
    %p519 = scmp.eq.s32.totalorder %s75, 0
    %p520 = por %p518, %p519
    %p521 = scmp.ne.s32.totalorder %s513, %s515
    %p522 = scmp.eq.s32.totalorder %s80, 1
    %p523 = por %p521, %p522
    %p524 = scmp.ne.s32.totalorder %s515, %s516
    %p525 = scmp.eq.s32.totalorder %s80, 0
    %p526 = por %p524, %p525
    %p527 = scmp.ne.s32.totalorder %s515, %s516
    %p528 = scmp.eq.s32.totalorder %s81, 1
    %p529 = por %p527, %p528
    %p531 = scmp.ne.s32.totalorder %s516, %s530
    %p532 = scmp.eq.s32.totalorder %s81, 0
    %p533 = por %p531, %p532
    %s535 = sadd.s32 %s534, 1
    %p538 = scmp.eq.s32.totalorder %s75, 1
    %p539 = scmp.ne.s32.totalorder %s534, %s536
    %p540 = scmp.eq.s32.totalorder %s75, 0
    %p541 = por %p539, %p540
    %p542 = scmp.ne.s32.totalorder %s534, %s536
    %p543 = scmp.eq.s32.totalorder %s80, 1
    %p544 = por %p542, %p543
    %p545 = scmp.ne.s32.totalorder %s536, %s537
    %p546 = scmp.eq.s32.totalorder %s80, 0
    %p547 = por %p545, %p546
    %p548 = scmp.ne.s32.totalorder %s536, %s537
    %p549 = scmp.eq.s32.totalorder %s81, 1
    %p550 = por %p548, %p549
    %p552 = scmp.ne.s32.totalorder %s537, %s551
    %p553 = scmp.eq.s32.totalorder %s81, 0
    %p554 = por %p552, %p553
    %s556 = sadd.s32 %s555, 1
    %p559 = scmp.eq.s32.totalorder %s75, 1
    %p560 = scmp.ne.s32.totalorder %s555, %s557
    %p561 = scmp.eq.s32.totalorder %s75, 0
    %p562 = por %p560, %p561
    %p563 = scmp.ne.s32.totalorder %s555, %s557
    %p564 = scmp.eq.s32.totalorder %s80, 1
    %p565 = por %p563, %p564
    %p566 = scmp.ne.s32.totalorder %s557, %s558
    %p567 = scmp.eq.s32.totalorder %s80, 0
    %p568 = por %p566, %p567
    %p569 = scmp.ne.s32.totalorder %s557, %s558
    %p570 = scmp.eq.s32.totalorder %s81, 1
    %p571 = por %p569, %p570
    %p573 = scmp.ne.s32.totalorder %s558, %s572
    %p574 = scmp.eq.s32.totalorder %s81, 0
    %p575 = por %p573, %p574
    %s577 = sadd.s32 %s576, 1
    %p580 = scmp.eq.s32.totalorder %s75, 1
    %p581 = scmp.ne.s32.totalorder %s576, %s578
    %p582 = scmp.eq.s32.totalorder %s75, 0
    %p583 = por %p581, %p582
    %p584 = scmp.ne.s32.totalorder %s576, %s578
    %p585 = scmp.eq.s32.totalorder %s80, 1
    %p586 = por %p584, %p585
    %p587 = scmp.ne.s32.totalorder %s578, %s579
    %p588 = scmp.eq.s32.totalorder %s80, 0
    %p589 = por %p587, %p588
    %p590 = scmp.ne.s32.totalorder %s578, %s579
    %p591 = scmp.eq.s32.totalorder %s81, 1
    %p592 = por %p590, %p591
    %p594 = scmp.ne.s32.totalorder %s579, %s593
    %p595 = scmp.eq.s32.totalorder %s81, 0
    %p596 = por %p594, %p595
    %s598 = sadd.s32 %s597, 1
    %p601 = scmp.eq.s32.totalorder %s75, 1
    %p602 = scmp.ne.s32.totalorder %s597, %s599
    %p603 = scmp.eq.s32.totalorder %s75, 0
    %p604 = por %p602, %p603
    %p605 = scmp.ne.s32.totalorder %s597, %s599
    %p606 = scmp.eq.s32.totalorder %s80, 1
    %p607 = por %p605, %p606
    %p608 = scmp.ne.s32.totalorder %s599, %s600
    %p609 = scmp.eq.s32.totalorder %s80, 0
    %p610 = por %p608, %p609
    %p611 = scmp.ne.s32.totalorder %s599, %s600
    %p612 = scmp.eq.s32.totalorder %s81, 1
    %p613 = por %p611, %p612
    %p615 = scmp.ne.s32.totalorder %s600, %s614
    %p616 = scmp.eq.s32.totalorder %s81, 0
    %p617 = por %p615, %p616
    %s619 = sadd.s32 %s618, 1
    %p622 = scmp.eq.s32.totalorder %s75, 1
    %p623 = scmp.ne.s32.totalorder %s618, %s620
    %p624 = scmp.eq.s32.totalorder %s75, 0
    %p625 = por %p623, %p624
    %p626 = scmp.ne.s32.totalorder %s618, %s620
    %p627 = scmp.eq.s32.totalorder %s80, 1
    %p628 = por %p626, %p627
    %p629 = scmp.ne.s32.totalorder %s620, %s621
    %p630 = scmp.eq.s32.totalorder %s80, 0
    %p631 = por %p629, %p630
    %p632 = scmp.ne.s32.totalorder %s620, %s621
    %p633 = scmp.eq.s32.totalorder %s81, 1
    %p634 = por %p632, %p633
    %p636 = scmp.ne.s32.totalorder %s621, %s635
    %p637 = scmp.eq.s32.totalorder %s81, 0
    %p638 = por %p636, %p637
    %s640 = sadd.s32 %s639, 1
    %p643 = scmp.eq.s32.totalorder %s75, 1
    %p644 = scmp.ne.s32.totalorder %s639, %s641
    %p645 = scmp.eq.s32.totalorder %s75, 0
    %p646 = por %p644, %p645
    %p647 = scmp.ne.s32.totalorder %s639, %s641
    %p648 = scmp.eq.s32.totalorder %s80, 1
    %p649 = por %p647, %p648
    %p650 = scmp.ne.s32.totalorder %s641, %s642
    %p651 = scmp.eq.s32.totalorder %s80, 0
    %p652 = por %p650, %p651
    %p653 = scmp.ne.s32.totalorder %s641, %s642
    %p654 = scmp.eq.s32.totalorder %s81, 1
    %p655 = por %p653, %p654
    %p657 = scmp.ne.s32.totalorder %s642, %s656
    %p658 = scmp.eq.s32.totalorder %s81, 0
    %p659 = por %p657, %p658
    %s661 = sadd.s32 %s660, 1
    %p664 = scmp.eq.s32.totalorder %s75, 1
    %p665 = scmp.ne.s32.totalorder %s660, %s662
    %p666 = scmp.eq.s32.totalorder %s75, 0
    %p667 = por %p665, %p666
    %p668 = scmp.ne.s32.totalorder %s660, %s662
    %p669 = scmp.eq.s32.totalorder %s80, 1
    %p670 = por %p668, %p669
    %p671 = scmp.ne.s32.totalorder %s662, %s663
    %p672 = scmp.eq.s32.totalorder %s80, 0
    %p673 = por %p671, %p672
    %p674 = scmp.ne.s32.totalorder %s662, %s663
    %p675 = scmp.eq.s32.totalorder %s81, 1
    %p676 = por %p674, %p675
    %p678 = scmp.ne.s32.totalorder %s663, %s677
    %p679 = scmp.eq.s32.totalorder %s81, 0
    %p680 = por %p678, %p679
    %s682 = sadd.s32 %s681, 1
    %p685 = scmp.eq.s32.totalorder %s75, 1
    %p686 = scmp.ne.s32.totalorder %s681, %s683
    %p687 = scmp.eq.s32.totalorder %s75, 0
    %p688 = por %p686, %p687
    %p689 = scmp.ne.s32.totalorder %s681, %s683
    %p690 = scmp.eq.s32.totalorder %s80, 1
    %p691 = por %p689, %p690
    %p692 = scmp.ne.s32.totalorder %s683, %s684
    %p693 = scmp.eq.s32.totalorder %s80, 0
    %p694 = por %p692, %p693
    %p695 = scmp.ne.s32.totalorder %s683, %s684
    %p696 = scmp.eq.s32.totalorder %s81, 1
    %p697 = por %p695, %p696
    %p699 = scmp.ne.s32.totalorder %s684, %s698
    %p700 = scmp.eq.s32.totalorder %s81, 0
    %p701 = por %p699, %p700
    %s703 = sadd.s32 %s702, 1
    %p706 = scmp.eq.s32.totalorder %s75, 1
    %p707 = scmp.ne.s32.totalorder %s702, %s704
    %p708 = scmp.eq.s32.totalorder %s75, 0
    %p709 = por %p707, %p708
    %p710 = scmp.ne.s32.totalorder %s702, %s704
    %p711 = scmp.eq.s32.totalorder %s80, 1
    %p712 = por %p710, %p711
    %p713 = scmp.ne.s32.totalorder %s704, %s705
    %p714 = scmp.eq.s32.totalorder %s80, 0
    %p715 = por %p713, %p714
    %p716 = scmp.ne.s32.totalorder %s704, %s705
    %p717 = scmp.eq.s32.totalorder %s81, 1
    %p718 = por %p716, %p717
    %p720 = scmp.ne.s32.totalorder %s705, %s719
    %p721 = scmp.eq.s32.totalorder %s81, 0
    %p722 = por %p720, %p721
    %s724 = sadd.s32 %s723, 1
    %p727 = scmp.eq.s32.totalorder %s75, 1
    %p728 = scmp.ne.s32.totalorder %s723, %s725
    %p729 = scmp.eq.s32.totalorder %s75, 0
    %p730 = por %p728, %p729
    %p731 = scmp.ne.s32.totalorder %s723, %s725
    %p732 = scmp.eq.s32.totalorder %s80, 1
    %p733 = por %p731, %p732
    %p734 = scmp.ne.s32.totalorder %s725, %s726
    %p735 = scmp.eq.s32.totalorder %s80, 0
    %p736 = por %p734, %p735
    %p737 = scmp.ne.s32.totalorder %s725, %s726
    %p738 = scmp.eq.s32.totalorder %s81, 1
    %p739 = por %p737, %p738
    %p741 = scmp.ne.s32.totalorder %s726, %s740
    %p742 = scmp.eq.s32.totalorder %s81, 0
    %p743 = por %p741, %p742
    %s745 = sadd.s32 %s744, 1
    %p748 = scmp.eq.s32.totalorder %s75, 1
    %p749 = scmp.ne.s32.totalorder %s744, %s746
    %p750 = scmp.eq.s32.totalorder %s75, 0
    %p751 = por %p749, %p750
    %p752 = scmp.ne.s32.totalorder %s744, %s746
    %p753 = scmp.eq.s32.totalorder %s80, 1
    %p754 = por %p752, %p753
    %p755 = scmp.ne.s32.totalorder %s746, %s747
    %p756 = scmp.eq.s32.totalorder %s80, 0
    %p757 = por %p755, %p756
    %p758 = scmp.ne.s32.totalorder %s746, %s747
    %p759 = scmp.eq.s32.totalorder %s81, 1
    %p760 = por %p758, %p759
    %p762 = scmp.ne.s32.totalorder %s747, %s761
    %p763 = scmp.eq.s32.totalorder %s81, 0
    %p764 = por %p762, %p763
    %s766 = sadd.s32 %s765, 1
    %p769 = scmp.eq.s32.totalorder %s75, 1
    %p770 = scmp.ne.s32.totalorder %s765, %s767
    %p771 = scmp.eq.s32.totalorder %s75, 0
    %p772 = por %p770, %p771
    %p773 = scmp.ne.s32.totalorder %s765, %s767
    %p774 = scmp.eq.s32.totalorder %s80, 1
    %p775 = por %p773, %p774
    %p776 = scmp.ne.s32.totalorder %s767, %s768
    %p777 = scmp.eq.s32.totalorder %s80, 0
    %p778 = por %p776, %p777
    %p779 = scmp.ne.s32.totalorder %s767, %s768
    %p780 = scmp.eq.s32.totalorder %s81, 1
    %p781 = por %p779, %p780
    %p783 = scmp.ne.s32.totalorder %s768, %s782
    %p784 = scmp.eq.s32.totalorder %s81, 0
    %p785 = por %p783, %p784
    %s787 = sadd.s32 %s786, 1
    %p790 = scmp.eq.s32.totalorder %s75, 1
    %p791 = scmp.ne.s32.totalorder %s786, %s788
    %p792 = scmp.eq.s32.totalorder %s75, 0
    %p793 = por %p791, %p792
    %p794 = scmp.ne.s32.totalorder %s786, %s788
    %p795 = scmp.eq.s32.totalorder %s80, 1
    %p796 = por %p794, %p795
    %p797 = scmp.ne.s32.totalorder %s788, %s789
    %p798 = scmp.eq.s32.totalorder %s80, 0
    %p799 = por %p797, %p798
    %p800 = scmp.ne.s32.totalorder %s788, %s789
    %p801 = scmp.eq.s32.totalorder %s81, 1
    %p802 = por %p800, %p801
    %p804 = scmp.ne.s32.totalorder %s789, %s803
    %p805 = scmp.eq.s32.totalorder %s81, 0
    %p806 = por %p804, %p805
    %s807 = ssub.s32 %s75, %s82
    %p808 = scmp.eq.s32.totalorder %s807, 0
    %s810 = sadd.s32 %s809, 1
    %s811 = scalar_select %p808, %s809, %s810
    %p814 = pneg %p808
    %p815 = scmp.eq.s32.totalorder %s75, 1
    %p816 = por %p814, %p815
    %p817 = scmp.ne.s32.totalorder %s809, %s812
    %p818 = scmp.eq.s32.totalorder %s75, 0
    %p819 = por %p817, %p818
    %p820 = scmp.ne.s32.totalorder %s809, %s812
    %p821 = scmp.eq.s32.totalorder %s80, 1
    %p822 = por %p820, %p821
    %p823 = scmp.ne.s32.totalorder %s812, %s813
    %p824 = scmp.eq.s32.totalorder %s80, 0
    %p825 = por %p823, %p824
    %p826 = scmp.ne.s32.totalorder %s812, %s813
    %p827 = scmp.eq.s32.totalorder %s81, 1
    %p828 = por %p826, %p827
    %p830 = scmp.ne.s32.totalorder %s813, %s829
    %p831 = scmp.eq.s32.totalorder %s81, 0
    %p832 = por %p830, %p831
    %p833 = scmp.le.s32.totalorder 1, %s75
    %p834 = scmp.lt.s32.totalorder %s75, 3
    %p835 = pnand %p833, %p834
    %p836 = pneg %p835
    // Predicated region
    $region9: #{decoder_layer_forward.1} parent=5 // pred_check
      _
    $region10: #{decoder_layer_forward.1} parent=5 // pred_check_branch
      %838 = sbr.rel (%p835) target = $region12
    $region11: #{decoder_layer_forward.1} parent=5 // pred_region
      %s839 = ssub.s32 %s75, 1
      // Predicated region
      $region13: #{decoder_layer_forward.1} parent=11 // pred_check
        %p840 = pneg %p148
      $region14: #{decoder_layer_forward.1} parent=11 // pred_check_branch
        %842 = sbr.rel (%p840) target = $region16
      $region15: #{decoder_layer_forward.1} parent=11 // pred_region
        _
      $region16: #{decoder_layer_forward.1} parent=11 // pred_fallthru
        _
      // Predicated region
      $region17: #{decoder_layer_forward.1} parent=11 // pred_check
        %p843 = pneg %p169
      $region18: #{decoder_layer_forward.1} parent=11 // pred_check_branch
        %845 = sbr.rel (%p843) target = $region20
      $region19: #{decoder_layer_forward.1} parent=11 // pred_region
        _
      $region20: #{decoder_layer_forward.1} parent=11 // pred_fallthru
        _
      // Predicated region
      $region21: #{decoder_layer_forward.1} parent=11 // pred_check
        %p846 = pneg %p190
      $region22: #{decoder_layer_forward.1} parent=11 // pred_check_branch
        %848 = sbr.rel (%p846) target = $region24
      $region23: #{decoder_layer_forward.1} parent=11 // pred_region
        _
      $region24: #{decoder_layer_forward.1} parent=11 // pred_fallthru
        _
      // Predicated region
      $region25: #{decoder_layer_forward.1} parent=11 // pred_check
        %p849 = pneg %p211
      $region26: #{decoder_layer_forward.1} parent=11 // pred_check_branch
        %851 = sbr.rel (%p849) target = $region28
      $region27: #{decoder_layer_forward.1} parent=11 // pred_region
        _
      $region28: #{decoder_layer_forward.1} parent=11 // pred_fallthru
        _
      // Predicated region
      $region29: #{decoder_layer_forward.1} parent=11 // pred_check
        %p852 = pneg %p232
      $region30: #{decoder_layer_forward.1} parent=11 // pred_check_branch
        %854 = sbr.rel (%p852) target = $region32
      $region31: #{decoder_layer_forward.1} parent=11 // pred_region
        _
      $region32: #{decoder_layer_forward.1} parent=11 // pred_fallthru
        _
      // Predicated region
      $region33: #{decoder_layer_forward.1} parent=11 // pred_check
        %p855 = pneg %p253
      $region34: #{decoder_layer_forward.1} parent=11 // pred_check_branch
        %857 = sbr.rel (%p855) target = $region36
      $region35: #{decoder_layer_forward.1} parent=11 // pred_region
        _
      $region36: #{decoder_layer_forward.1} parent=11 // pred_fallthru
        _
      // Predicated region
      $region37: #{decoder_layer_forward.1} parent=11 // pred_check
        %p858 = pneg %p274
      $region38: #{decoder_layer_forward.1} parent=11 // pred_check_branch
        %860 = sbr.rel (%p858) target = $region40
      $region39: #{decoder_layer_forward.1} parent=11 // pred_region
        _
      $region40: #{decoder_layer_forward.1} parent=11 // pred_fallthru
        _
      // Predicated region
      $region41: #{decoder_layer_forward.1} parent=11 // pred_check
        %p861 = pneg %p295
      $region42: #{decoder_layer_forward.1} parent=11 // pred_check_branch
        %863 = sbr.rel (%p861) target = $region44
      $region43: #{decoder_layer_forward.1} parent=11 // pred_region
        _
      $region44: #{decoder_layer_forward.1} parent=11 // pred_fallthru
        _
      // Predicated region
      $region45: #{decoder_layer_forward.1} parent=11 // pred_check
        %p864 = pneg %p316
      $region46: #{decoder_layer_forward.1} parent=11 // pred_check_branch
        %866 = sbr.rel (%p864) target = $region48
      $region47: #{decoder_layer_forward.1} parent=11 // pred_region
        _
      $region48: #{decoder_layer_forward.1} parent=11 // pred_fallthru
        _
      // Predicated region
      $region49: #{decoder_layer_forward.1} parent=11 // pred_check
        %p867 = pneg %p337
      $region50: #{decoder_layer_forward.1} parent=11 // pred_check_branch
        %869 = sbr.rel (%p867) target = $region52
      $region51: #{decoder_layer_forward.1} parent=11 // pred_region
        _
      $region52: #{decoder_layer_forward.1} parent=11 // pred_fallthru
        _
      // Predicated region
      $region53: #{decoder_layer_forward.1} parent=11 // pred_check
        %p870 = pneg %p358
      $region54: #{decoder_layer_forward.1} parent=11 // pred_check_branch
        %872 = sbr.rel (%p870) target = $region56
      $region55: #{decoder_layer_forward.1} parent=11 // pred_region
        _
      $region56: #{decoder_layer_forward.1} parent=11 // pred_fallthru
        _
      // Predicated region
      $region57: #{decoder_layer_forward.1} parent=11 // pred_check
        %p873 = pneg %p379
      $region58: #{decoder_layer_forward.1} parent=11 // pred_check_branch
        %875 = sbr.rel (%p873) target = $region60
      $region59: #{decoder_layer_forward.1} parent=11 // pred_region
        _
      $region60: #{decoder_layer_forward.1} parent=11 // pred_fallthru
        _
      // Predicated region
      $region61: #{decoder_layer_forward.1} parent=11 // pred_check
        %p876 = pneg %p400
      $region62: #{decoder_layer_forward.1} parent=11 // pred_check_branch
        %878 = sbr.rel (%p876) target = $region64
      $region63: #{decoder_layer_forward.1} parent=11 // pred_region
        _
      $region64: #{decoder_layer_forward.1} parent=11 // pred_fallthru
        _
      // Predicated region
      $region65: #{decoder_layer_forward.1} parent=11 // pred_check
        %p879 = pneg %p421
      $region66: #{decoder_layer_forward.1} parent=11 // pred_check_branch
        %881 = sbr.rel (%p879) target = $region68
      $region67: #{decoder_layer_forward.1} parent=11 // pred_region
        _
      $region68: #{decoder_layer_forward.1} parent=11 // pred_fallthru
        _
      // Predicated region
      $region69: #{decoder_layer_forward.1} parent=11 // pred_check
        %p882 = pneg %p442
      $region70: #{decoder_layer_forward.1} parent=11 // pred_check_branch
        %884 = sbr.rel (%p882) target = $region72
      $region71: #{decoder_layer_forward.1} parent=11 // pred_region
        _
      $region72: #{decoder_layer_forward.1} parent=11 // pred_fallthru
        _
      // Predicated region
      $region73: #{decoder_layer_forward.1} parent=11 // pred_check
        %p885 = pneg %p463
      $region74: #{decoder_layer_forward.1} parent=11 // pred_check_branch
        %887 = sbr.rel (%p885) target = $region76
      $region75: #{decoder_layer_forward.1} parent=11 // pred_region
        _
      $region76: #{decoder_layer_forward.1} parent=11 // pred_fallthru
        _
      // Predicated region
      $region77: #{decoder_layer_forward.1} parent=11 // pred_check
        %p888 = pneg %p484
      $region78: #{decoder_layer_forward.1} parent=11 // pred_check_branch
        %890 = sbr.rel (%p888) target = $region80
      $region79: #{decoder_layer_forward.1} parent=11 // pred_region
        _
      $region80: #{decoder_layer_forward.1} parent=11 // pred_fallthru
        _
      // Predicated region
      $region81: #{decoder_layer_forward.1} parent=11 // pred_check
        %p891 = pneg %p505
      $region82: #{decoder_layer_forward.1} parent=11 // pred_check_branch
        %893 = sbr.rel (%p891) target = $region84
      $region83: #{decoder_layer_forward.1} parent=11 // pred_region
        _
      $region84: #{decoder_layer_forward.1} parent=11 // pred_fallthru
        _
      // Predicated region
      $region85: #{decoder_layer_forward.1} parent=11 // pred_check
        %p894 = pneg %p526
      $region86: #{decoder_layer_forward.1} parent=11 // pred_check_branch
        %896 = sbr.rel (%p894) target = $region88
      $region87: #{decoder_layer_forward.1} parent=11 // pred_region
        _
      $region88: #{decoder_layer_forward.1} parent=11 // pred_fallthru
        _
      // Predicated region
      $region89: #{decoder_layer_forward.1} parent=11 // pred_check
        %p897 = pneg %p547
      $region90: #{decoder_layer_forward.1} parent=11 // pred_check_branch
        %899 = sbr.rel (%p897) target = $region92
      $region91: #{decoder_layer_forward.1} parent=11 // pred_region
        _
      $region92: #{decoder_layer_forward.1} parent=11 // pred_fallthru
        _
      // Predicated region
      $region93: #{decoder_layer_forward.1} parent=11 // pred_check
        %p900 = pneg %p568
      $region94: #{decoder_layer_forward.1} parent=11 // pred_check_branch
        %902 = sbr.rel (%p900) target = $region96
      $region95: #{decoder_layer_forward.1} parent=11 // pred_region
        _
      $region96: #{decoder_layer_forward.1} parent=11 // pred_fallthru
        _
      // Predicated region
      $region97: #{decoder_layer_forward.1} parent=11 // pred_check
        %p903 = pneg %p589
      $region98: #{decoder_layer_forward.1} parent=11 // pred_check_branch
        %905 = sbr.rel (%p903) target = $region100
      $region99: #{decoder_layer_forward.1} parent=11 // pred_region
        _
      $region100: #{decoder_layer_forward.1} parent=11 // pred_fallthru
        _
      // Predicated region
      $region101: #{decoder_layer_forward.1} parent=11 // pred_check
        %p906 = pneg %p610
      $region102: #{decoder_layer_forward.1} parent=11 // pred_check_branch
        %908 = sbr.rel (%p906) target = $region104
      $region103: #{decoder_layer_forward.1} parent=11 // pred_region
        _
      $region104: #{decoder_layer_forward.1} parent=11 // pred_fallthru
        _
      // Predicated region
      $region105: #{decoder_layer_forward.1} parent=11 // pred_check
        %p909 = pneg %p631
      $region106: #{decoder_layer_forward.1} parent=11 // pred_check_branch
        %911 = sbr.rel (%p909) target = $region108
      $region107: #{decoder_layer_forward.1} parent=11 // pred_region
        _
      $region108: #{decoder_layer_forward.1} parent=11 // pred_fallthru
        _
      // Predicated region
      $region109: #{decoder_layer_forward.1} parent=11 // pred_check
        %p912 = pneg %p652
      $region110: #{decoder_layer_forward.1} parent=11 // pred_check_branch
        %914 = sbr.rel (%p912) target = $region112
      $region111: #{decoder_layer_forward.1} parent=11 // pred_region
        _
      $region112: #{decoder_layer_forward.1} parent=11 // pred_fallthru
        _
      // Predicated region
      $region113: #{decoder_layer_forward.1} parent=11 // pred_check
        %p915 = pneg %p673
      $region114: #{decoder_layer_forward.1} parent=11 // pred_check_branch
        %917 = sbr.rel (%p915) target = $region116
      $region115: #{decoder_layer_forward.1} parent=11 // pred_region
        _
      $region116: #{decoder_layer_forward.1} parent=11 // pred_fallthru
        _
      // Predicated region
      $region117: #{decoder_layer_forward.1} parent=11 // pred_check
        %p918 = pneg %p694
      $region118: #{decoder_layer_forward.1} parent=11 // pred_check_branch
        %920 = sbr.rel (%p918) target = $region120
      $region119: #{decoder_layer_forward.1} parent=11 // pred_region
        _
      $region120: #{decoder_layer_forward.1} parent=11 // pred_fallthru
        _
      // Predicated region
      $region121: #{decoder_layer_forward.1} parent=11 // pred_check
        %p921 = pneg %p715
      $region122: #{decoder_layer_forward.1} parent=11 // pred_check_branch
        %923 = sbr.rel (%p921) target = $region124
      $region123: #{decoder_layer_forward.1} parent=11 // pred_region
        _
      $region124: #{decoder_layer_forward.1} parent=11 // pred_fallthru
        _
      // Predicated region
      $region125: #{decoder_layer_forward.1} parent=11 // pred_check
        %p924 = pneg %p736
      $region126: #{decoder_layer_forward.1} parent=11 // pred_check_branch
        %926 = sbr.rel (%p924) target = $region128
      $region127: #{decoder_layer_forward.1} parent=11 // pred_region
        _
      $region128: #{decoder_layer_forward.1} parent=11 // pred_fallthru
        _
      // Predicated region
      $region129: #{decoder_layer_forward.1} parent=11 // pred_check
        %p927 = pneg %p757
      $region130: #{decoder_layer_forward.1} parent=11 // pred_check_branch
        %929 = sbr.rel (%p927) target = $region132
      $region131: #{decoder_layer_forward.1} parent=11 // pred_region
        _
      $region132: #{decoder_layer_forward.1} parent=11 // pred_fallthru
        _
      // Predicated region
      $region133: #{decoder_layer_forward.1} parent=11 // pred_check
        %p930 = pneg %p778
      $region134: #{decoder_layer_forward.1} parent=11 // pred_check_branch
        %932 = sbr.rel (%p930) target = $region136
      $region135: #{decoder_layer_forward.1} parent=11 // pred_region
        _
      $region136: #{decoder_layer_forward.1} parent=11 // pred_fallthru
        _
      // Predicated region
      $region137: #{decoder_layer_forward.1} parent=11 // pred_check
        %p933 = pneg %p799
      $region138: #{decoder_layer_forward.1} parent=11 // pred_check_branch
        %935 = sbr.rel (%p933) target = $region140
      $region139: #{decoder_layer_forward.1} parent=11 // pred_region
        _
      $region140: #{decoder_layer_forward.1} parent=11 // pred_fallthru
        _
    $region12: #{decoder_layer_forward.1} parent=5 // pred_fallthru
      _
    %p936 = scmp.lt.s32.totalorder %s75, 2
    // Predicated region
    $region141: #{decoder_layer_forward.1} parent=5 // pred_check
      %p937 = pneg %p936
    $region142: #{decoder_layer_forward.1} parent=5 // pred_check_branch
      %939 = sbr.rel (%p937) target = $region144
    $region143: #{decoder_layer_forward.1} parent=5 // pred_region
      // Predicated region
      $region145: #{decoder_layer_forward.1} parent=143 // pred_check
        %p940 = pneg %p95
      $region146: #{decoder_layer_forward.1} parent=143 // pred_check_branch
        %942 = sbr.rel (%p940) target = $region148
      $region147: #{decoder_layer_forward.1} parent=143 // pred_region
        %p943 = scmp.lt.s32.totalorder %s75, 1
        %s944 = scalar_select %p943, %s75, 1
        %s945 = smul.addr %s944, 8
        %s946 = scalar_lea.vmem %s1, %s945
      $region148: #{decoder_layer_forward.1} parent=143 // pred_fallthru
        _
      // Predicated region
      $region149: #{decoder_layer_forward.1} parent=143 // pred_check
        %p947 = pneg %p121
      $region150: #{decoder_layer_forward.1} parent=143 // pred_check_branch
        %949 = sbr.rel (%p947) target = $region152
      $region151: #{decoder_layer_forward.1} parent=143 // pred_region
        %s950 = smul.u32 4, %s75
        %p951 = scmp.lt.s32.totalorder %s950, 7
        %s952 = scalar_select %p951, %s950, 7
        %s953 = smul.addr %s952, 4
        %s954 = scalar_lea.vmem %s3, %s953
        %s955 = smul.u32 4, %s75
      $region152: #{decoder_layer_forward.1} parent=143 // pred_fallthru
        _
    $region144: #{decoder_layer_forward.1} parent=5 // pred_fallthru
      _
    %p956 = scmp.le.s32.totalorder 1, %s75
    %p957 = scmp.lt.s32.totalorder %s75, 3
    %p958 = pnand %p956, %p957
    %p959 = pneg %p958
    // Predicated region
    $region153: #{decoder_layer_forward.1} parent=5 // pred_check
      _
    $region154: #{decoder_layer_forward.1} parent=5 // pred_check_branch
      %961 = sbr.rel (%p958) target = $region156
    $region155: #{decoder_layer_forward.1} parent=5 // pred_region
      %s962 = ssub.s32 %s75, 1
      %p963 = scmp.lt.s32.totalorder %s80, 1
      %s964 = scalar_select %p963, %s80, 1
      %s965 = smul.addr %s964, 8
      %s966 = scalar_lea.vmem %s1, %s965
      %p967 = pneg %p101
      %p968 = pneg %p98
      %s969 = smul.u32 4, %s80
      %p970 = scmp.lt.s32.totalorder %s969, 7
      %s971 = scalar_select %p970, %s969, 7
      %s972 = smul.addr %s971, 4
      %s973 = scalar_lea.vmem %s3, %s972
      %p974 = pneg %p127
      %p975 = pneg %p124
      %p976 = pneg %p148
      %p977 = pneg %p145
      %p978 = pneg %p169
      %p979 = pneg %p166
      %p980 = pneg %p190
      %p981 = pneg %p187
      %p982 = pneg %p211
      %p983 = pneg %p208
      %p984 = pneg %p232
      %p985 = pneg %p229
      %p986 = pneg %p253
      %p987 = pneg %p250
      %p988 = pneg %p274
      %p989 = pneg %p271
      %p990 = pneg %p295
      %p991 = pneg %p292
      %p992 = pneg %p316
      %p993 = pneg %p313
      %p994 = pneg %p337
      %p995 = pneg %p334
      %p996 = pneg %p358
      %p997 = pneg %p355
      %p998 = pneg %p379
      %p999 = pneg %p376
      %p1000 = pneg %p400
      %p1001 = pneg %p397
      %p1002 = pneg %p421
      %p1003 = pneg %p418
      %p1004 = pneg %p442
      %p1005 = pneg %p439
      %p1006 = pneg %p463
      %p1007 = pneg %p460
      %p1008 = pneg %p484
      %p1009 = pneg %p481
      %p1010 = pneg %p505
      %p1011 = pneg %p502
      %p1012 = pneg %p526
      %p1013 = pneg %p523
      %p1014 = pneg %p547
      %p1015 = pneg %p544
      %p1016 = pneg %p568
      %p1017 = pneg %p565
      %p1018 = pneg %p589
      %p1019 = pneg %p586
      %p1020 = pneg %p610
      %p1021 = pneg %p607
      %p1022 = pneg %p631
      %p1023 = pneg %p628
      %p1024 = pneg %p652
      %p1025 = pneg %p649
      %p1026 = pneg %p673
      %p1027 = pneg %p670
      %p1028 = pneg %p694
      %p1029 = pneg %p691
      %p1030 = pneg %p715
      %p1031 = pneg %p712
      %p1032 = pneg %p736
      %p1033 = pneg %p733
      %p1034 = pneg %p757
      %p1035 = pneg %p754
      %p1036 = pneg %p778
      %p1037 = pneg %p775
      %p1038 = pneg %p799
      %p1039 = pneg %p796
      %p1040 = pneg %p825
      %p1041 = pneg %p822
      %p1042 = scmp.lt.s32.totalorder %s80, 1
      %s1043 = scalar_select %p1042, %s80, 1
      %s1044 = smul.addr %s1043, 8
      %s1045 = scalar_lea.vmem %s69, %s1044
      %p1046 = scmp.lt.s32.totalorder %s80, 1
      %s1047 = scalar_select %p1046, %s80, 1
      %s1048 = smul.addr %s1047, 8
      %s1049 = scalar_lea.vmem %s1, %s1048
      %s1050 = smul.u32 4, %s80
      %p1051 = scmp.lt.s32.totalorder %s1050, 7
      %s1052 = scalar_select %p1051, %s1050, 7
      %s1053 = smul.addr %s1052, 4
      %s1054 = scalar_lea.vmem %s3, %s1053
      %s1055 = smul.u32 4, %s80
      %p1056 = scmp.lt.s32.totalorder %s80, 1
      %s1057 = scalar_select %p1056, %s80, 1
      %s1058 = smul.addr %s1057, 8
      %s1059 = scalar_lea.vmem %s69, %s1058
      %v1061 = vld [vmem:[%s1049] sm:$0xff]
      %v1062 = vpack.c.bf16 %v1061, %v1061
      loop: start=0, step=1, limit=4
      $region157: #{decoder_layer_forward.1} parent=155 // loop_pre_header
        _
      $region158: #{decoder_layer_forward.1} parent=155 // loop_header
        %s1064 = sphi 0, %s1068
        %p1065 = scmp.ge.s32.totalorder %s1064, 4
        %v1069 = vphi 0.0, %v1436
      $region159: #{decoder_layer_forward.1} parent=155 // loop_header_branch
        %1067 = sbr.rel (%p1065) target = $region163
      $region160: #{decoder_layer_forward.1} parent=155 // loop_body
        %s1070 = smul.u32 %s1064, 4
        %s1071 = smul.addr %s1070, 4
        %s1072 = scalar_lea.vmem %s5, %s1071
        %v1073 = vld [vmem:[%s1072] sm:$0xf]
        %v1074 = vld [vmem:[%s1072 + $0x4] sm:$0xf]
        %v1075 = vld [vmem:[%s1072 + $0x8] sm:$0xf]
        %v1076 = vld [vmem:[%s1072 + $0xc] sm:$0xf]
        %s1077 = scalar_lea.vmem %s11, %s1064
        %v1078 = vld [vmem:[%s1077] sm:$0x1]
        %v1080 = vlaneseq
        %v1081 = vshrl.u32 %v1080, 7
        %v1082 = vsub.s32 0, %v1081
        %v1083 = vrot.slane %v1078, %v1082
        %v1089 = vunpack.c.l.b16 %v1073
        %v1090 = vunpack.c.l.b16 %v1074
        %v1091 = vunpack.c.l.b16 %v1075
        %v1092 = vunpack.c.l.b16 %v1076
        %v1093 = vpack.c.b16 %v1090, %v1089
        %v1094 = vpack.c.b16 %v1092, %v1091
        %vm1097 = vcmask 261120
        %v1099 = vsel %vm1097, %v1062, 0
        %1101 = vmatprep.subr.bf16.mxu0 0
        %1102 = vmatpush1.bf16.msra.mxu0 %v1093
        %1103 = vmatprep.subr.bf16.mxu0 0
        %1104 = vmatpush1.bf16.msra.mxu0 %v1094
        %1105 = vmatprep.subr.bf16.mxu0 0
        %1106 = vmatpush1.bf16.msra.mxu0 0
        %1107 = vmatprep.subr.bf16.mxu0 0
        %1108 = vmatpush1.bf16.msra.mxu0 0
        %1109 = vmatprep.subr.bf16.mxu0 0
        %1110 = vmatpush1.bf16.msra.mxu0 0
        %1111 = vmatprep.subr.bf16.mxu0 0
        %1112 = vmatpush1.bf16.msra.mxu0 0
        %1113 = vmatprep.subr.bf16.mxu0 0
        %1114 = vmatpush1.bf16.msra.mxu0 0
        %1115 = vmatprep.subr.bf16.mxu0 0
        %1116 = vmatpush1.bf16.msra.mxu0 0
        %1117 = vmatprep.subr.bf16.mxu0 0
        %1118 = vmatpush1.bf16.msra.mxu0 0
        %1119 = vmatprep.subr.bf16.mxu0 0
        %1120 = vmatpush1.bf16.msra.mxu0 0
        %1121 = vmatprep.subr.bf16.mxu0 0
        %1122 = vmatpush1.bf16.msra.mxu0 0
        %1123 = vmatprep.subr.bf16.mxu0 0
        %1124 = vmatpush1.bf16.msra.mxu0 0
        %1125 = vmatprep.subr.bf16.mxu0 0
        %1126 = vmatpush1.bf16.msra.mxu0 0
        %1127 = vmatprep.subr.bf16.mxu0 0
        %1128 = vmatpush1.bf16.msra.mxu0 0
        %1129 = vmatprep.subr.bf16.mxu0 0
        %1130 = vmatpush1.bf16.msra.mxu0 0
        %1131 = vmatprep.subr.bf16.mxu0 0
        %1132 = vmatpush1.bf16.msra.mxu0 0
        %1133 = vmatprep.mubr.bf16.mxu0 0
        %1134 = vmatmul.mubr.bf16.gmra.mrb[0].mxu0 %v1099
        %v1135 = vpop.f32.mrb[0].mxu0
        %v1136 = vadd.f32 %v1083, %v1135
        %v1137 = vpop.f32.mrb[0].mxu0
        %v1138 = vpop.f32.mrb[0].mxu0
        %v1139 = vpop.f32.mrb[0].mxu0
        %1140 = vdwg.mxu0
        %s1141 = smul.addr %s1070, 4
        %s1142 = scalar_lea.vmem %s7, %s1141
        %v1143 = vld [vmem:[%s1142] sm:$0xf]
        %v1144 = vld [vmem:[%s1142 + $0x4] sm:$0xf]
        %v1145 = vld [vmem:[%s1142 + $0x8] sm:$0xf]
        %v1146 = vld [vmem:[%s1142 + $0xc] sm:$0xf]
        %s1147 = scalar_lea.vmem %s13, %s1064
        %v1148 = vld [vmem:[%s1147] sm:$0x1]
        %v1150 = vlaneseq
        %v1151 = vshrl.u32 %v1150, 7
        %v1152 = vsub.s32 0, %v1151
        %v1153 = vrot.slane %v1148, %v1152
        %v1159 = vunpack.c.l.b16 %v1143
        %v1160 = vunpack.c.l.b16 %v1144
        %v1161 = vunpack.c.l.b16 %v1145
        %v1162 = vunpack.c.l.b16 %v1146
        %v1163 = vpack.c.b16 %v1160, %v1159
        %v1164 = vpack.c.b16 %v1162, %v1161
        %1167 = vmatprep.subr.bf16.mxu0 0
        %1168 = vmatpush1.bf16.msra.mxu0 %v1163
        %1169 = vmatprep.subr.bf16.mxu0 0
        %1170 = vmatpush1.bf16.msra.mxu0 %v1164
        %1171 = vmatprep.subr.bf16.mxu0 0
        %1172 = vmatpush1.bf16.msra.mxu0 0
        %1173 = vmatprep.subr.bf16.mxu0 0
        %1174 = vmatpush1.bf16.msra.mxu0 0
        %1175 = vmatprep.subr.bf16.mxu0 0
        %1176 = vmatpush1.bf16.msra.mxu0 0
        %1177 = vmatprep.subr.bf16.mxu0 0
        %1178 = vmatpush1.bf16.msra.mxu0 0
        %1179 = vmatprep.subr.bf16.mxu0 0
        %1180 = vmatpush1.bf16.msra.mxu0 0
        %1181 = vmatprep.subr.bf16.mxu0 0
        %1182 = vmatpush1.bf16.msra.mxu0 0
        %1183 = vmatprep.subr.bf16.mxu0 0
        %1184 = vmatpush1.bf16.msra.mxu0 0
        %1185 = vmatprep.subr.bf16.mxu0 0
        %1186 = vmatpush1.bf16.msra.mxu0 0
        %1187 = vmatprep.subr.bf16.mxu0 0
        %1188 = vmatpush1.bf16.msra.mxu0 0
        %1189 = vmatprep.subr.bf16.mxu0 0
        %1190 = vmatpush1.bf16.msra.mxu0 0
        %1191 = vmatprep.subr.bf16.mxu0 0
        %1192 = vmatpush1.bf16.msra.mxu0 0
        %1193 = vmatprep.subr.bf16.mxu0 0
        %1194 = vmatpush1.bf16.msra.mxu0 0
        %1195 = vmatprep.subr.bf16.mxu0 0
        %1196 = vmatpush1.bf16.msra.mxu0 0
        %1197 = vmatprep.subr.bf16.mxu0 0
        %1198 = vmatpush1.bf16.msra.mxu0 0
        %1199 = vmatprep.mubr.bf16.mxu0 0
        %1200 = vmatmul.mubr.bf16.gmra.mrb[0].mxu0 %v1099
        %v1201 = vpop.f32.mrb[0].mxu0
        %v1202 = vadd.f32 %v1153, %v1201
        %v1203 = vpop.f32.mrb[0].mxu0
        %v1204 = vpop.f32.mrb[0].mxu0
        %v1205 = vpop.f32.mrb[0].mxu0
        %1206 = vdwg.mxu0
        %s1207 = smul.addr %s1070, 4
        %s1208 = scalar_lea.vmem %s9, %s1207
        %v1209 = vld [vmem:[%s1208] sm:$0xf]
        %v1210 = vld [vmem:[%s1208 + $0x4] sm:$0xf]
        %v1211 = vld [vmem:[%s1208 + $0x8] sm:$0xf]
        %v1212 = vld [vmem:[%s1208 + $0xc] sm:$0xf]
        %s1213 = scalar_lea.vmem %s15, %s1064
        %v1214 = vld [vmem:[%s1213] sm:$0x1]
        %v1216 = vlaneseq
        %v1217 = vshrl.u32 %v1216, 7
        %v1218 = vsub.s32 0, %v1217
        %v1219 = vrot.slane %v1214, %v1218
        %v1225 = vunpack.c.l.b16 %v1209
        %v1226 = vunpack.c.l.b16 %v1210
        %v1227 = vunpack.c.l.b16 %v1211
        %v1228 = vunpack.c.l.b16 %v1212
        %v1229 = vpack.c.b16 %v1226, %v1225
        %v1230 = vpack.c.b16 %v1228, %v1227
        %1233 = vmatprep.subr.bf16.mxu0 0
        %1234 = vmatpush1.bf16.msra.mxu0 %v1229
        %1235 = vmatprep.subr.bf16.mxu0 0
        %1236 = vmatpush1.bf16.msra.mxu0 %v1230
        %1237 = vmatprep.subr.bf16.mxu0 0
        %1238 = vmatpush1.bf16.msra.mxu0 0
        %1239 = vmatprep.subr.bf16.mxu0 0
        %1240 = vmatpush1.bf16.msra.mxu0 0
        %1241 = vmatprep.subr.bf16.mxu0 0
        %1242 = vmatpush1.bf16.msra.mxu0 0
        %1243 = vmatprep.subr.bf16.mxu0 0
        %1244 = vmatpush1.bf16.msra.mxu0 0
        %1245 = vmatprep.subr.bf16.mxu0 0
        %1246 = vmatpush1.bf16.msra.mxu0 0
        %1247 = vmatprep.subr.bf16.mxu0 0
        %1248 = vmatpush1.bf16.msra.mxu0 0
        %1249 = vmatprep.subr.bf16.mxu0 0
        %1250 = vmatpush1.bf16.msra.mxu0 0
        %1251 = vmatprep.subr.bf16.mxu0 0
        %1252 = vmatpush1.bf16.msra.mxu0 0
        %1253 = vmatprep.subr.bf16.mxu0 0
        %1254 = vmatpush1.bf16.msra.mxu0 0
        %1255 = vmatprep.subr.bf16.mxu0 0
        %1256 = vmatpush1.bf16.msra.mxu0 0
        %1257 = vmatprep.subr.bf16.mxu0 0
        %1258 = vmatpush1.bf16.msra.mxu0 0
        %1259 = vmatprep.subr.bf16.mxu0 0
        %1260 = vmatpush1.bf16.msra.mxu0 0
        %1261 = vmatprep.subr.bf16.mxu0 0
        %1262 = vmatpush1.bf16.msra.mxu0 0
        %1263 = vmatprep.subr.bf16.mxu0 0
        %1264 = vmatpush1.bf16.msra.mxu0 0
        %1265 = vmatprep.mubr.bf16.mxu0 0
        %1266 = vmatmul.mubr.bf16.gmra.mrb[0].mxu0 %v1099
        %v1267 = vpop.f32.mrb[0].mxu0
        %v1268 = vadd.f32 %v1219, %v1267
        %v1269 = vpop.f32.mrb[0].mxu0
        %v1270 = vpop.f32.mrb[0].mxu0
        %v1271 = vpop.f32.mrb[0].mxu0
        %1272 = vdwg.mxu0
        %v1273 = vpack.c.bf16 %v1136, %v1136
        %v1274 = vpack.c.bf16 %v1202, %v1202
        %s1275 = smul.addr %s1064, 4
        %s1276 = scalar_lea.vmem %s1054, %s1275
        %v1277 = vld [vmem:[%s1276] sm:$0xf]
        %v1278 = vunpack.c.l.bf16 %v1277
        %vm1279 = vcmask 64512
        %v1281 = vsel %vm1279, %v1273, 0
        %v1284 = vsel %vm1279, %v1274, 0
        %1286 = vmatprep.subr.bf16.mxu0 0
        %1287 = vmatpush1.bf16.xpose.msra.mxu0 %v1284
        %1288 = vmatprep.subr.bf16.mxu0 0
        %1289 = vmatpush1.bf16.xpose.msra.mxu0 0
        %1290 = vmatprep.subr.bf16.mxu0 0
        %1291 = vmatpush1.bf16.xpose.msra.mxu0 0
        %1292 = vmatprep.subr.bf16.mxu0 0
        %1293 = vmatpush1.bf16.xpose.msra.mxu0 0
        %1294 = vmatprep.subr.bf16.mxu0 0
        %1295 = vmatpush1.bf16.xpose.msra.mxu0 0
        %1296 = vmatprep.subr.bf16.mxu0 0
        %1297 = vmatpush1.bf16.xpose.msra.mxu0 0
        %1298 = vmatprep.subr.bf16.mxu0 0
        %1299 = vmatpush1.bf16.xpose.msra.mxu0 0
        %1300 = vmatprep.subr.bf16.mxu0 0
        %1301 = vmatpush1.bf16.xpose.msra.mxu0 0
        %1302 = vmatprep.subr.bf16.mxu0 0
        %1303 = vmatpush1.bf16.xpose.msra.mxu0 0
        %1304 = vmatprep.subr.bf16.mxu0 0
        %1305 = vmatpush1.bf16.xpose.msra.mxu0 0
        %1306 = vmatprep.subr.bf16.mxu0 0
        %1307 = vmatpush1.bf16.xpose.msra.mxu0 0
        %1308 = vmatprep.subr.bf16.mxu0 0
        %1309 = vmatpush1.bf16.xpose.msra.mxu0 0
        %1310 = vmatprep.subr.bf16.mxu0 0
        %1311 = vmatpush1.bf16.xpose.msra.mxu0 0
        %1312 = vmatprep.subr.bf16.mxu0 0
        %1313 = vmatpush1.bf16.xpose.msra.mxu0 0
        %1314 = vmatprep.subr.bf16.mxu0 0
        %1315 = vmatpush1.bf16.xpose.msra.mxu0 0
        %1316 = vmatprep.subr.bf16.mxu0 0
        %1317 = vmatpush1.bf16.xpose.msra.mxu0 0
        %1318 = vmatprep.mubr.bf16.mxu0 0
        %1319 = vmatmul.mubr.bf16.gmra.mrb[0].mxu0 %v1281
        %v1320 = vpop.f32.mrb[0].mxu0
        %v1321 = vadd.f32 %v1278, %v1320
        %v1322 = vpop.f32.mrb[0].mxu0
        %v1323 = vpop.f32.mrb[0].mxu0
        %v1324 = vpop.f32.mrb[0].mxu0
        %1325 = vdwg.mxu0
        %v1326 = vsel %vm1279, %v1321, -inf
        %1327 = vmax.xlane.f32.xlu0 %v1326
        %v1328 = vpop.xlane.xlu0 %1327
        %v1329 = vsub.f32 %v1321, %v1328
        %v1330 = vmul.f32 %v1329, 1.442695
        %v1331 = vpow.pop %v1330
        %v1332 = vsel %vm1279, %v1331, 0.0
        %1333 = vadd.xlane.f32.xlu0 %v1332
        %v1334 = vpop.xlane.xlu0 %1333
        %v1335 = vrcp.pop %v1334
        %v1336 = vmul.f32 %v1331, %v1335
        %v1337 = vpack.c.bf16 %v1336, %v1336
        %v1338 = vpack.c.bf16 %v1268, %v1268
        %v1340 = vsel %vm1279, %v1337, 0
        %vm1342 = vcmask 1043456
        %v1344 = vsel %vm1342, %v1338, 0
        %1346 = vmatprep.subr.bf16.mxu0 0
        %1347 = vmatpush1.bf16.msra.mxu0 %v1344
        %1348 = vmatprep.subr.bf16.mxu0 0
        %1349 = vmatpush1.bf16.msra.mxu0 0
        %1350 = vmatprep.subr.bf16.mxu0 0
        %1351 = vmatpush1.bf16.msra.mxu0 0
        %1352 = vmatprep.subr.bf16.mxu0 0
        %1353 = vmatpush1.bf16.msra.mxu0 0
        %1354 = vmatprep.subr.bf16.mxu0 0
        %1355 = vmatpush1.bf16.msra.mxu0 0
        %1356 = vmatprep.subr.bf16.mxu0 0
        %1357 = vmatpush1.bf16.msra.mxu0 0
        %1358 = vmatprep.subr.bf16.mxu0 0
        %1359 = vmatpush1.bf16.msra.mxu0 0
        %1360 = vmatprep.subr.bf16.mxu0 0
        %1361 = vmatpush1.bf16.msra.mxu0 0
        %1362 = vmatprep.subr.bf16.mxu0 0
        %1363 = vmatpush1.bf16.msra.mxu0 0
        %1364 = vmatprep.subr.bf16.mxu0 0
        %1365 = vmatpush1.bf16.msra.mxu0 0
        %1366 = vmatprep.subr.bf16.mxu0 0
        %1367 = vmatpush1.bf16.msra.mxu0 0
        %1368 = vmatprep.subr.bf16.mxu0 0
        %1369 = vmatpush1.bf16.msra.mxu0 0
        %1370 = vmatprep.subr.bf16.mxu0 0
        %1371 = vmatpush1.bf16.msra.mxu0 0
        %1372 = vmatprep.subr.bf16.mxu0 0
        %1373 = vmatpush1.bf16.msra.mxu0 0
        %1374 = vmatprep.subr.bf16.mxu0 0
        %1375 = vmatpush1.bf16.msra.mxu0 0
        %1376 = vmatprep.subr.bf16.mxu0 0
        %1377 = vmatpush1.bf16.msra.mxu0 0
        %1378 = vmatprep.mubr.bf16.mxu0 0
        %1379 = vmatmul.mubr.bf16.gmra.mrb[0].mxu0 %v1340
        %v1380 = vpop.f32.mrb[0].mxu0
        %v1381 = vadd.f32 0.0, %v1380
        %v1382 = vpop.f32.mrb[0].mxu0
        %v1383 = vpop.f32.mrb[0].mxu0
        %v1384 = vpop.f32.mrb[0].mxu0
        %1385 = vdwg.mxu0
        %v1386 = vpack.c.bf16 %v1381, %v1381
        %s1387 = smul.addr %s1064, 4
        %s1388 = scalar_lea.vmem %s17, %s1387
        %v1389 = vld [vmem:[%s1388] sm:$0xf]
        %v1391 = vsel %vm1279, %v1386, 0
        %v1394 = vsel %vm1342, %v1389, 0
        %1396 = vmatprep.subr.bf16.mxu0 0
        %1397 = vmatpush1.bf16.msra.mxu0 %v1394
        %1398 = vmatprep.subr.bf16.mxu0 0
        %1399 = vmatpush1.bf16.msra.mxu0 0
        %1400 = vmatprep.subr.bf16.mxu0 0
        %1401 = vmatpush1.bf16.msra.mxu0 0
        %1402 = vmatprep.subr.bf16.mxu0 0
        %1403 = vmatpush1.bf16.msra.mxu0 0
        %1404 = vmatprep.subr.bf16.mxu0 0
        %1405 = vmatpush1.bf16.msra.mxu0 0
        %1406 = vmatprep.subr.bf16.mxu0 0
        %1407 = vmatpush1.bf16.msra.mxu0 0
        %1408 = vmatprep.subr.bf16.mxu0 0
        %1409 = vmatpush1.bf16.msra.mxu0 0
        %1410 = vmatprep.subr.bf16.mxu0 0
        %1411 = vmatpush1.bf16.msra.mxu0 0
        %1412 = vmatprep.subr.bf16.mxu0 0
        %1413 = vmatpush1.bf16.msra.mxu0 0
        %1414 = vmatprep.subr.bf16.mxu0 0
        %1415 = vmatpush1.bf16.msra.mxu0 0
        %1416 = vmatprep.subr.bf16.mxu0 0
        %1417 = vmatpush1.bf16.msra.mxu0 0
        %1418 = vmatprep.subr.bf16.mxu0 0
        %1419 = vmatpush1.bf16.msra.mxu0 0
        %1420 = vmatprep.subr.bf16.mxu0 0
        %1421 = vmatpush1.bf16.msra.mxu0 0
        %1422 = vmatprep.subr.bf16.mxu0 0
        %1423 = vmatpush1.bf16.msra.mxu0 0
        %1424 = vmatprep.subr.bf16.mxu0 0
        %1425 = vmatpush1.bf16.msra.mxu0 0
        %1426 = vmatprep.subr.bf16.mxu0 0
        %1427 = vmatpush1.bf16.msra.mxu0 0
        %1428 = vmatprep.mubr.bf16.mxu0 0
        %1429 = vmatmul.mubr.bf16.gmra.mrb[0].mxu0 %v1391
        %v1430 = vpop.f32.mrb[0].mxu0
        %v1431 = vadd.f32 0.0, %v1430
        %v1432 = vpop.f32.mrb[0].mxu0
        %v1433 = vpop.f32.mrb[0].mxu0
        %v1434 = vpop.f32.mrb[0].mxu0
        %1435 = vdwg.mxu0
        %v1436 = vadd.f32 %v1069, %v1431
      $region161: #{decoder_layer_forward.1} parent=155 // loop_footer
        %s1068 = sadd.s32 1, %s1064
      $region162: #{decoder_layer_forward.1} parent=155 // loop_footer_branch
        %1063 = sbr.rel target = $region158
      $region163: #{decoder_layer_forward.1} parent=155 // loop_exit
        _
      %v1437 = vld [vmem:[%s19] sm:$0x1]
      %v1439 = vlaneseq
      %v1440 = vshrl.u32 %v1439, 7
      %v1441 = vsub.s32 0, %v1440
      %v1442 = vrot.slane %v1437, %v1441
      %v1444 = vadd.f32 %v1069, %v1442
      %v1445 = vadd.f32 %v1061, %v1444
      %vm1446 = vcmask 261120
      %v1447 = vsel %vm1446, %v1445, 0.0
      %1448 = vadd.xlane.f32.xlu0 %v1447
      %v1449 = vpop.xlane.xlu0 %1448
      %v1450 = vrcp.pop 32.0
      %v1451 = vmul.f32 %v1449, %v1450
      %v1452 = vsub.f32 %v1445, %v1451
      %v1453 = vmul.f32 %v1452, %v1452
      %v1454 = vsel %vm1446, %v1453, 0.0
      %1455 = vadd.xlane.f32.xlu0 %v1454
      %v1456 = vpop.xlane.xlu0 %1455
      %v1457 = vmul.f32 %v1456, %v1450
      %v1458 = vadd.f32 %v1457, 1e-05
      %v1459 = vrsqrt.pop %v1458
      %v1460 = vmul.f32 %v1452, %v1459
      %v1461 = vld [vmem:[%s37] sm:$0x1]
      %v1463 = vlaneseq
      %v1464 = vshrl.u32 %v1463, 7
      %v1465 = vsub.s32 0, %v1464
      %v1466 = vrot.slane %v1461, %v1465
      %v1468 = vmul.f32 %v1460, %v1466
      %v1469 = vld [vmem:[%s39] sm:$0x1]
      %v1471 = vlaneseq
      %v1472 = vshrl.u32 %v1471, 7
      %v1473 = vsub.s32 0, %v1472
      %v1474 = vrot.slane %v1469, %v1473
      %v1476 = vadd.f32 %v1468, %v1474
      %v1477 = vpack.c.bf16 %v1476, %v1476
      loop: start=0, step=1, limit=4
      $region164: #{decoder_layer_forward.1} parent=155 // loop_pre_header
        _
      $region165: #{decoder_layer_forward.1} parent=155 // loop_header
        %s1479 = sphi 0, %s1483
        %p1480 = scmp.ge.s32.totalorder %s1479, 4
        %v1484 = vphi 0.0, %v1846
      $region166: #{decoder_layer_forward.1} parent=155 // loop_header_branch
        %1482 = sbr.rel (%p1480) target = $region170
      $region167: #{decoder_layer_forward.1} parent=155 // loop_body
        %s1485 = smul.u32 %s1479, 4
        %s1486 = smul.addr %s1485, 4
        %s1487 = scalar_lea.vmem %s21, %s1486
        %v1488 = vld [vmem:[%s1487] sm:$0xf]
        %v1489 = vld [vmem:[%s1487 + $0x4] sm:$0xf]
        %v1490 = vld [vmem:[%s1487 + $0x8] sm:$0xf]
        %v1491 = vld [vmem:[%s1487 + $0xc] sm:$0xf]
        %s1492 = scalar_lea.vmem %s27, %s1479
        %v1493 = vld [vmem:[%s1492] sm:$0x1]
        %v1495 = vlaneseq
        %v1496 = vshrl.u32 %v1495, 7
        %v1497 = vsub.s32 0, %v1496
        %v1498 = vrot.slane %v1493, %v1497
        %v1504 = vunpack.c.l.b16 %v1488
        %v1505 = vunpack.c.l.b16 %v1489
        %v1506 = vunpack.c.l.b16 %v1490
        %v1507 = vunpack.c.l.b16 %v1491
        %v1508 = vpack.c.b16 %v1505, %v1504
        %v1509 = vpack.c.b16 %v1507, %v1506
        %v1513 = vsel %vm1446, %v1477, 0
        %1515 = vmatprep.subr.bf16.mxu0 0
        %1516 = vmatpush1.bf16.msra.mxu0 %v1508
        %1517 = vmatprep.subr.bf16.mxu0 0
        %1518 = vmatpush1.bf16.msra.mxu0 %v1509
        %1519 = vmatprep.subr.bf16.mxu0 0
        %1520 = vmatpush1.bf16.msra.mxu0 0
        %1521 = vmatprep.subr.bf16.mxu0 0
        %1522 = vmatpush1.bf16.msra.mxu0 0
        %1523 = vmatprep.subr.bf16.mxu0 0
        %1524 = vmatpush1.bf16.msra.mxu0 0
        %1525 = vmatprep.subr.bf16.mxu0 0
        %1526 = vmatpush1.bf16.msra.mxu0 0
        %1527 = vmatprep.subr.bf16.mxu0 0
        %1528 = vmatpush1.bf16.msra.mxu0 0
        %1529 = vmatprep.subr.bf16.mxu0 0
        %1530 = vmatpush1.bf16.msra.mxu0 0
        %1531 = vmatprep.subr.bf16.mxu0 0
        %1532 = vmatpush1.bf16.msra.mxu0 0
        %1533 = vmatprep.subr.bf16.mxu0 0
        %1534 = vmatpush1.bf16.msra.mxu0 0
        %1535 = vmatprep.subr.bf16.mxu0 0
        %1536 = vmatpush1.bf16.msra.mxu0 0
        %1537 = vmatprep.subr.bf16.mxu0 0
        %1538 = vmatpush1.bf16.msra.mxu0 0
        %1539 = vmatprep.subr.bf16.mxu0 0
        %1540 = vmatpush1.bf16.msra.mxu0 0
        %1541 = vmatprep.subr.bf16.mxu0 0
        %1542 = vmatpush1.bf16.msra.mxu0 0
        %1543 = vmatprep.subr.bf16.mxu0 0
        %1544 = vmatpush1.bf16.msra.mxu0 0
        %1545 = vmatprep.subr.bf16.mxu0 0
        %1546 = vmatpush1.bf16.msra.mxu0 0
        %1547 = vmatprep.mubr.bf16.mxu0 0
        %1548 = vmatmul.mubr.bf16.gmra.mrb[0].mxu0 %v1513
        %v1549 = vpop.f32.mrb[0].mxu0
        %v1550 = vadd.f32 %v1498, %v1549
        %v1551 = vpop.f32.mrb[0].mxu0
        %v1552 = vpop.f32.mrb[0].mxu0
        %v1553 = vpop.f32.mrb[0].mxu0
        %1554 = vdwg.mxu0
        %s1555 = smul.addr %s1485, 4
        %s1556 = scalar_lea.vmem %s23, %s1555
        %v1557 = vld [vmem:[%s1556] sm:$0xf]
        %v1558 = vld [vmem:[%s1556 + $0x4] sm:$0xf]
        %v1559 = vld [vmem:[%s1556 + $0x8] sm:$0xf]
        %v1560 = vld [vmem:[%s1556 + $0xc] sm:$0xf]
        %s1561 = scalar_lea.vmem %s29, %s1479
        %v1562 = vld [vmem:[%s1561] sm:$0x1]
        %v1564 = vlaneseq
        %v1565 = vshrl.u32 %v1564, 7
        %v1566 = vsub.s32 0, %v1565
        %v1567 = vrot.slane %v1562, %v1566
        %v1573 = vunpack.c.l.b16 %v1557
        %v1574 = vunpack.c.l.b16 %v1558
        %v1575 = vunpack.c.l.b16 %v1559
        %v1576 = vunpack.c.l.b16 %v1560
        %v1577 = vpack.c.b16 %v1574, %v1573
        %v1578 = vpack.c.b16 %v1576, %v1575
        %1581 = vmatprep.subr.bf16.mxu0 0
        %1582 = vmatpush1.bf16.msra.mxu0 %v1577
        %1583 = vmatprep.subr.bf16.mxu0 0
        %1584 = vmatpush1.bf16.msra.mxu0 %v1578
        %1585 = vmatprep.subr.bf16.mxu0 0
        %1586 = vmatpush1.bf16.msra.mxu0 0
        %1587 = vmatprep.subr.bf16.mxu0 0
        %1588 = vmatpush1.bf16.msra.mxu0 0
        %1589 = vmatprep.subr.bf16.mxu0 0
        %1590 = vmatpush1.bf16.msra.mxu0 0
        %1591 = vmatprep.subr.bf16.mxu0 0
        %1592 = vmatpush1.bf16.msra.mxu0 0
        %1593 = vmatprep.subr.bf16.mxu0 0
        %1594 = vmatpush1.bf16.msra.mxu0 0
        %1595 = vmatprep.subr.bf16.mxu0 0
        %1596 = vmatpush1.bf16.msra.mxu0 0
        %1597 = vmatprep.subr.bf16.mxu0 0
        %1598 = vmatpush1.bf16.msra.mxu0 0
        %1599 = vmatprep.subr.bf16.mxu0 0
        %1600 = vmatpush1.bf16.msra.mxu0 0
        %1601 = vmatprep.subr.bf16.mxu0 0
        %1602 = vmatpush1.bf16.msra.mxu0 0
        %1603 = vmatprep.subr.bf16.mxu0 0
        %1604 = vmatpush1.bf16.msra.mxu0 0
        %1605 = vmatprep.subr.bf16.mxu0 0
        %1606 = vmatpush1.bf16.msra.mxu0 0
        %1607 = vmatprep.subr.bf16.mxu0 0
        %1608 = vmatpush1.bf16.msra.mxu0 0
        %1609 = vmatprep.subr.bf16.mxu0 0
        %1610 = vmatpush1.bf16.msra.mxu0 0
        %1611 = vmatprep.subr.bf16.mxu0 0
        %1612 = vmatpush1.bf16.msra.mxu0 0
        %1613 = vmatprep.mubr.bf16.mxu0 0
        %1614 = vmatmul.mubr.bf16.gmra.mrb[0].mxu0 %v1513
        %v1615 = vpop.f32.mrb[0].mxu0
        %v1616 = vadd.f32 %v1567, %v1615
        %v1617 = vpop.f32.mrb[0].mxu0
        %v1618 = vpop.f32.mrb[0].mxu0
        %v1619 = vpop.f32.mrb[0].mxu0
        %1620 = vdwg.mxu0
        %s1621 = smul.addr %s1485, 4
        %s1622 = scalar_lea.vmem %s25, %s1621
        %v1623 = vld [vmem:[%s1622] sm:$0xf]
        %v1624 = vld [vmem:[%s1622 + $0x4] sm:$0xf]
        %v1625 = vld [vmem:[%s1622 + $0x8] sm:$0xf]
        %v1626 = vld [vmem:[%s1622 + $0xc] sm:$0xf]
        %s1627 = scalar_lea.vmem %s31, %s1479
        %v1628 = vld [vmem:[%s1627] sm:$0x1]
        %v1630 = vlaneseq
        %v1631 = vshrl.u32 %v1630, 7
        %v1632 = vsub.s32 0, %v1631
        %v1633 = vrot.slane %v1628, %v1632
        %v1639 = vunpack.c.l.b16 %v1623
        %v1640 = vunpack.c.l.b16 %v1624
        %v1641 = vunpack.c.l.b16 %v1625
        %v1642 = vunpack.c.l.b16 %v1626
        %v1643 = vpack.c.b16 %v1640, %v1639
        %v1644 = vpack.c.b16 %v1642, %v1641
        %1647 = vmatprep.subr.bf16.mxu0 0
        %1648 = vmatpush1.bf16.msra.mxu0 %v1643
        %1649 = vmatprep.subr.bf16.mxu0 0
        %1650 = vmatpush1.bf16.msra.mxu0 %v1644
        %1651 = vmatprep.subr.bf16.mxu0 0
        %1652 = vmatpush1.bf16.msra.mxu0 0
        %1653 = vmatprep.subr.bf16.mxu0 0
        %1654 = vmatpush1.bf16.msra.mxu0 0
        %1655 = vmatprep.subr.bf16.mxu0 0
        %1656 = vmatpush1.bf16.msra.mxu0 0
        %1657 = vmatprep.subr.bf16.mxu0 0
        %1658 = vmatpush1.bf16.msra.mxu0 0
        %1659 = vmatprep.subr.bf16.mxu0 0
        %1660 = vmatpush1.bf16.msra.mxu0 0
        %1661 = vmatprep.subr.bf16.mxu0 0
        %1662 = vmatpush1.bf16.msra.mxu0 0
        %1663 = vmatprep.subr.bf16.mxu0 0
        %1664 = vmatpush1.bf16.msra.mxu0 0
        %1665 = vmatprep.subr.bf16.mxu0 0
        %1666 = vmatpush1.bf16.msra.mxu0 0
        %1667 = vmatprep.subr.bf16.mxu0 0
        %1668 = vmatpush1.bf16.msra.mxu0 0
        %1669 = vmatprep.subr.bf16.mxu0 0
        %1670 = vmatpush1.bf16.msra.mxu0 0
        %1671 = vmatprep.subr.bf16.mxu0 0
        %1672 = vmatpush1.bf16.msra.mxu0 0
        %1673 = vmatprep.subr.bf16.mxu0 0
        %1674 = vmatpush1.bf16.msra.mxu0 0
        %1675 = vmatprep.subr.bf16.mxu0 0
        %1676 = vmatpush1.bf16.msra.mxu0 0
        %1677 = vmatprep.subr.bf16.mxu0 0
        %1678 = vmatpush1.bf16.msra.mxu0 0
        %1679 = vmatprep.mubr.bf16.mxu0 0
        %1680 = vmatmul.mubr.bf16.gmra.mrb[0].mxu0 %v1513
        %v1681 = vpop.f32.mrb[0].mxu0
        %v1682 = vadd.f32 %v1633, %v1681
        %v1683 = vpop.f32.mrb[0].mxu0
        %v1684 = vpop.f32.mrb[0].mxu0
        %v1685 = vpop.f32.mrb[0].mxu0
        %1686 = vdwg.mxu0
        %v1687 = vpack.c.bf16 %v1550, %v1550
        %v1688 = vpack.c.bf16 %v1616, %v1616
        %vm1689 = vcmask 64512
        %v1691 = vsel %vm1689, %v1687, 0
        %v1694 = vsel %vm1689, %v1688, 0
        %1696 = vmatprep.subr.bf16.mxu0 0
        %1697 = vmatpush1.bf16.xpose.msra.mxu0 %v1694
        %1698 = vmatprep.subr.bf16.mxu0 0
        %1699 = vmatpush1.bf16.xpose.msra.mxu0 0
        %1700 = vmatprep.subr.bf16.mxu0 0
        %1701 = vmatpush1.bf16.xpose.msra.mxu0 0
        %1702 = vmatprep.subr.bf16.mxu0 0
        %1703 = vmatpush1.bf16.xpose.msra.mxu0 0
        %1704 = vmatprep.subr.bf16.mxu0 0
        %1705 = vmatpush1.bf16.xpose.msra.mxu0 0
        %1706 = vmatprep.subr.bf16.mxu0 0
        %1707 = vmatpush1.bf16.xpose.msra.mxu0 0
        %1708 = vmatprep.subr.bf16.mxu0 0
        %1709 = vmatpush1.bf16.xpose.msra.mxu0 0
        %1710 = vmatprep.subr.bf16.mxu0 0
        %1711 = vmatpush1.bf16.xpose.msra.mxu0 0
        %1712 = vmatprep.subr.bf16.mxu0 0
        %1713 = vmatpush1.bf16.xpose.msra.mxu0 0
        %1714 = vmatprep.subr.bf16.mxu0 0
        %1715 = vmatpush1.bf16.xpose.msra.mxu0 0
        %1716 = vmatprep.subr.bf16.mxu0 0
        %1717 = vmatpush1.bf16.xpose.msra.mxu0 0
        %1718 = vmatprep.subr.bf16.mxu0 0
        %1719 = vmatpush1.bf16.xpose.msra.mxu0 0
        %1720 = vmatprep.subr.bf16.mxu0 0
        %1721 = vmatpush1.bf16.xpose.msra.mxu0 0
        %1722 = vmatprep.subr.bf16.mxu0 0
        %1723 = vmatpush1.bf16.xpose.msra.mxu0 0
        %1724 = vmatprep.subr.bf16.mxu0 0
        %1725 = vmatpush1.bf16.xpose.msra.mxu0 0
        %1726 = vmatprep.subr.bf16.mxu0 0
        %1727 = vmatpush1.bf16.xpose.msra.mxu0 0
        %1728 = vmatprep.mubr.bf16.mxu0 0
        %1729 = vmatmul.mubr.bf16.gmra.mrb[0].mxu0 %v1691
        %v1730 = vpop.f32.mrb[0].mxu0
        %v1731 = vadd.f32 0.0, %v1730
        %v1732 = vpop.f32.mrb[0].mxu0
        %v1733 = vpop.f32.mrb[0].mxu0
        %v1734 = vpop.f32.mrb[0].mxu0
        %1735 = vdwg.mxu0
        %v1736 = vsel %vm1689, %v1731, -inf
        %1737 = vmax.xlane.f32.xlu0 %v1736
        %v1738 = vpop.xlane.xlu0 %1737
        %v1739 = vsub.f32 %v1731, %v1738
        %v1740 = vmul.f32 %v1739, 1.442695
        %v1741 = vpow.pop %v1740
        %v1742 = vsel %vm1689, %v1741, 0.0
        %1743 = vadd.xlane.f32.xlu0 %v1742
        %v1744 = vpop.xlane.xlu0 %1743
        %v1745 = vrcp.pop %v1744
        %v1746 = vmul.f32 %v1741, %v1745
        %v1747 = vpack.c.bf16 %v1746, %v1746
        %v1748 = vpack.c.bf16 %v1682, %v1682
        %v1750 = vsel %vm1689, %v1747, 0
        %vm1752 = vcmask 1043456
        %v1754 = vsel %vm1752, %v1748, 0
        %1756 = vmatprep.subr.bf16.mxu0 0
        %1757 = vmatpush1.bf16.msra.mxu0 %v1754
        %1758 = vmatprep.subr.bf16.mxu0 0
        %1759 = vmatpush1.bf16.msra.mxu0 0
        %1760 = vmatprep.subr.bf16.mxu0 0
        %1761 = vmatpush1.bf16.msra.mxu0 0
        %1762 = vmatprep.subr.bf16.mxu0 0
        %1763 = vmatpush1.bf16.msra.mxu0 0
        %1764 = vmatprep.subr.bf16.mxu0 0
        %1765 = vmatpush1.bf16.msra.mxu0 0
        %1766 = vmatprep.subr.bf16.mxu0 0
        %1767 = vmatpush1.bf16.msra.mxu0 0
        %1768 = vmatprep.subr.bf16.mxu0 0
        %1769 = vmatpush1.bf16.msra.mxu0 0
        %1770 = vmatprep.subr.bf16.mxu0 0
        %1771 = vmatpush1.bf16.msra.mxu0 0
        %1772 = vmatprep.subr.bf16.mxu0 0
        %1773 = vmatpush1.bf16.msra.mxu0 0
        %1774 = vmatprep.subr.bf16.mxu0 0
        %1775 = vmatpush1.bf16.msra.mxu0 0
        %1776 = vmatprep.subr.bf16.mxu0 0
        %1777 = vmatpush1.bf16.msra.mxu0 0
        %1778 = vmatprep.subr.bf16.mxu0 0
        %1779 = vmatpush1.bf16.msra.mxu0 0
        %1780 = vmatprep.subr.bf16.mxu0 0
        %1781 = vmatpush1.bf16.msra.mxu0 0
        %1782 = vmatprep.subr.bf16.mxu0 0
        %1783 = vmatpush1.bf16.msra.mxu0 0
        %1784 = vmatprep.subr.bf16.mxu0 0
        %1785 = vmatpush1.bf16.msra.mxu0 0
        %1786 = vmatprep.subr.bf16.mxu0 0
        %1787 = vmatpush1.bf16.msra.mxu0 0
        %1788 = vmatprep.mubr.bf16.mxu0 0
        %1789 = vmatmul.mubr.bf16.gmra.mrb[0].mxu0 %v1750
        %v1790 = vpop.f32.mrb[0].mxu0
        %v1791 = vadd.f32 0.0, %v1790
        %v1792 = vpop.f32.mrb[0].mxu0
        %v1793 = vpop.f32.mrb[0].mxu0
        %v1794 = vpop.f32.mrb[0].mxu0
        %1795 = vdwg.mxu0
        %v1796 = vpack.c.bf16 %v1791, %v1791
        %s1797 = smul.addr %s1479, 4
        %s1798 = scalar_lea.vmem %s33, %s1797
        %v1799 = vld [vmem:[%s1798] sm:$0xf]
        %v1801 = vsel %vm1689, %v1796, 0
        %v1804 = vsel %vm1752, %v1799, 0
        %1806 = vmatprep.subr.bf16.mxu0 0
        %1807 = vmatpush1.bf16.msra.mxu0 %v1804
        %1808 = vmatprep.subr.bf16.mxu0 0
        %1809 = vmatpush1.bf16.msra.mxu0 0
        %1810 = vmatprep.subr.bf16.mxu0 0
        %1811 = vmatpush1.bf16.msra.mxu0 0
        %1812 = vmatprep.subr.bf16.mxu0 0
        %1813 = vmatpush1.bf16.msra.mxu0 0
        %1814 = vmatprep.subr.bf16.mxu0 0
        %1815 = vmatpush1.bf16.msra.mxu0 0
        %1816 = vmatprep.subr.bf16.mxu0 0
        %1817 = vmatpush1.bf16.msra.mxu0 0
        %1818 = vmatprep.subr.bf16.mxu0 0
        %1819 = vmatpush1.bf16.msra.mxu0 0
        %1820 = vmatprep.subr.bf16.mxu0 0
        %1821 = vmatpush1.bf16.msra.mxu0 0
        %1822 = vmatprep.subr.bf16.mxu0 0
        %1823 = vmatpush1.bf16.msra.mxu0 0
        %1824 = vmatprep.subr.bf16.mxu0 0
        %1825 = vmatpush1.bf16.msra.mxu0 0
        %1826 = vmatprep.subr.bf16.mxu0 0
        %1827 = vmatpush1.bf16.msra.mxu0 0
        %1828 = vmatprep.subr.bf16.mxu0 0
        %1829 = vmatpush1.bf16.msra.mxu0 0
        %1830 = vmatprep.subr.bf16.mxu0 0
        %1831 = vmatpush1.bf16.msra.mxu0 0
        %1832 = vmatprep.subr.bf16.mxu0 0
        %1833 = vmatpush1.bf16.msra.mxu0 0
        %1834 = vmatprep.subr.bf16.mxu0 0
        %1835 = vmatpush1.bf16.msra.mxu0 0
        %1836 = vmatprep.subr.bf16.mxu0 0
        %1837 = vmatpush1.bf16.msra.mxu0 0
        %1838 = vmatprep.mubr.bf16.mxu0 0
        %1839 = vmatmul.mubr.bf16.gmra.mrb[0].mxu0 %v1801
        %v1840 = vpop.f32.mrb[0].mxu0
        %v1841 = vadd.f32 0.0, %v1840
        %v1842 = vpop.f32.mrb[0].mxu0
        %v1843 = vpop.f32.mrb[0].mxu0
        %v1844 = vpop.f32.mrb[0].mxu0
        %1845 = vdwg.mxu0
        %v1846 = vadd.f32 %v1484, %v1841
      $region168: #{decoder_layer_forward.1} parent=155 // loop_footer
        %s1483 = sadd.s32 1, %s1479
      $region169: #{decoder_layer_forward.1} parent=155 // loop_footer_branch
        %1478 = sbr.rel target = $region165
      $region170: #{decoder_layer_forward.1} parent=155 // loop_exit
        _
      %v1847 = vld [vmem:[%s35] sm:$0x1]
      %v1849 = vlaneseq
      %v1850 = vshrl.u32 %v1849, 7
      %v1851 = vsub.s32 0, %v1850
      %v1852 = vrot.slane %v1847, %v1851
      %v1854 = vadd.f32 %v1484, %v1852
      %v1855 = vadd.f32 %v1476, %v1854
      %v1856 = vsel %vm1446, %v1855, 0.0
      %1857 = vadd.xlane.f32.xlu0 %v1856
      %v1858 = vpop.xlane.xlu0 %1857
      %v1859 = vmul.f32 %v1858, %v1450
      %v1860 = vsub.f32 %v1855, %v1859
      %v1861 = vmul.f32 %v1860, %v1860
      %v1862 = vsel %vm1446, %v1861, 0.0
      %1863 = vadd.xlane.f32.xlu0 %v1862
      %v1864 = vpop.xlane.xlu0 %1863
      %v1865 = vmul.f32 %v1864, %v1450
      %v1866 = vadd.f32 %v1865, 1e-05
      %v1867 = vrsqrt.pop %v1866
      %v1868 = vmul.f32 %v1860, %v1867
      %v1869 = vld [vmem:[%s41] sm:$0x1]
      %v1871 = vlaneseq
      %v1872 = vshrl.u32 %v1871, 7
      %v1873 = vsub.s32 0, %v1872
      %v1874 = vrot.slane %v1869, %v1873
      %v1876 = vmul.f32 %v1868, %v1874
      %v1877 = vld [vmem:[%s43] sm:$0x1]
      %v1879 = vlaneseq
      %v1880 = vshrl.u32 %v1879, 7
      %v1881 = vsub.s32 0, %v1880
      %v1882 = vrot.slane %v1877, %v1881
      %v1884 = vadd.f32 %v1876, %v1882
      %v1885 = vpack.c.bf16 %v1884, %v1884
      %v1886 = vld [vmem:[%s45] sm:$0xf]
      %v1887 = vld [vmem:[%s45 + $0x4] sm:$0xf]
      %v1888 = vld [vmem:[%s45 + $0x8] sm:$0xf]
      %v1889 = vld [vmem:[%s45 + $0xc] sm:$0xf]
      %v1890 = vld [vmem:[%s47] sm:$0x1]
      %v1892 = vlaneseq
      %v1893 = vshrl.u32 %v1892, 7
      %v1894 = vsub.s32 0, %v1893
      %v1895 = vrot.slane %v1890, %v1894
      %v1901 = vunpack.c.l.b16 %v1886
      %v1902 = vunpack.c.l.b16 %v1887
      %v1903 = vunpack.c.l.b16 %v1888
      %v1904 = vunpack.c.l.b16 %v1889
      %v1905 = vpack.c.b16 %v1902, %v1901
      %v1906 = vpack.c.b16 %v1904, %v1903
      %v1910 = vsel %vm1446, %v1885, 0
      %1912 = vmatprep.subr.bf16.mxu0 0
      %1913 = vmatpush1.bf16.msra.mxu0 %v1905
      %1914 = vmatprep.subr.bf16.mxu0 0
      %1915 = vmatpush1.bf16.msra.mxu0 %v1906
      %1916 = vmatprep.subr.bf16.mxu0 0
      %1917 = vmatpush1.bf16.msra.mxu0 0
      %1918 = vmatprep.subr.bf16.mxu0 0
      %1919 = vmatpush1.bf16.msra.mxu0 0
      %1920 = vmatprep.subr.bf16.mxu0 0
      %1921 = vmatpush1.bf16.msra.mxu0 0
      %1922 = vmatprep.subr.bf16.mxu0 0
      %1923 = vmatpush1.bf16.msra.mxu0 0
      %1924 = vmatprep.subr.bf16.mxu0 0
      %1925 = vmatpush1.bf16.msra.mxu0 0
      %1926 = vmatprep.subr.bf16.mxu0 0
      %1927 = vmatpush1.bf16.msra.mxu0 0
      %1928 = vmatprep.subr.bf16.mxu0 0
      %1929 = vmatpush1.bf16.msra.mxu0 0
      %1930 = vmatprep.subr.bf16.mxu0 0
      %1931 = vmatpush1.bf16.msra.mxu0 0
      %1932 = vmatprep.subr.bf16.mxu0 0
      %1933 = vmatpush1.bf16.msra.mxu0 0
      %1934 = vmatprep.subr.bf16.mxu0 0
      %1935 = vmatpush1.bf16.msra.mxu0 0
      %1936 = vmatprep.subr.bf16.mxu0 0
      %1937 = vmatpush1.bf16.msra.mxu0 0
      %1938 = vmatprep.subr.bf16.mxu0 0
      %1939 = vmatpush1.bf16.msra.mxu0 0
      %1940 = vmatprep.subr.bf16.mxu0 0
      %1941 = vmatpush1.bf16.msra.mxu0 0
      %1942 = vmatprep.subr.bf16.mxu0 0
      %1943 = vmatpush1.bf16.msra.mxu0 0
      %1944 = vmatprep.mubr.bf16.mxu0 0
      %1945 = vmatmul.mubr.bf16.gmra.mrb[0].mxu0 %v1910
      %v1946 = vpop.f32.mrb[0].mxu0
      %v1947 = vadd.f32 %v1895, %v1946
      %v1948 = vpop.f32.mrb[0].mxu0
      %v1949 = vpop.f32.mrb[0].mxu0
      %v1950 = vpop.f32.mrb[0].mxu0
      %1951 = vdwg.mxu0
      %v1952 = vmax.f32 %v1947, 0.0
      %v1953 = vpack.c.bf16 %v1952, %v1952
      %v1954 = vld [vmem:[%s49] sm:$0xf]
      %v1955 = vld [vmem:[%s49 + $0x4] sm:$0xf]
      %v1956 = vld [vmem:[%s49 + $0x8] sm:$0xf]
      %v1957 = vld [vmem:[%s49 + $0xc] sm:$0xf]
      %v1958 = vld [vmem:[%s49 + $0x10] sm:$0xf]
      %v1959 = vld [vmem:[%s49 + $0x14] sm:$0xf]
      %v1960 = vld [vmem:[%s49 + $0x18] sm:$0xf]
      %v1961 = vld [vmem:[%s49 + $0x1c] sm:$0xf]
      %v1962 = vld [vmem:[%s51] sm:$0x1]
      %v1964 = vlaneseq
      %v1965 = vshrl.u32 %v1964, 7
      %v1966 = vsub.s32 0, %v1965
      %v1967 = vrot.slane %v1962, %v1966
      %v1977 = vunpack.c.l.b16 %v1954
      %v1978 = vunpack.c.l.b16 %v1955
      %v1979 = vunpack.c.l.b16 %v1956
      %v1980 = vunpack.c.l.b16 %v1957
      %v1981 = vunpack.c.l.b16 %v1958
      %v1982 = vunpack.c.l.b16 %v1959
      %v1983 = vunpack.c.l.b16 %v1960
      %v1984 = vunpack.c.l.b16 %v1961
      %v1985 = vpack.c.b16 %v1978, %v1977
      %v1986 = vpack.c.b16 %v1980, %v1979
      %v1987 = vpack.c.b16 %v1982, %v1981
      %v1988 = vpack.c.b16 %v1984, %v1983
      %vm1993 = vcmask 523264
      %v1995 = vsel %vm1993, %v1953, 0
      %1997 = vmatprep.subr.bf16.mxu0 0
      %1998 = vmatpush1.bf16.msra.mxu0 %v1985
      %1999 = vmatprep.subr.bf16.mxu0 0
      %2000 = vmatpush1.bf16.msra.mxu0 %v1986
      %2001 = vmatprep.subr.bf16.mxu0 0
      %2002 = vmatpush1.bf16.msra.mxu0 %v1987
      %2003 = vmatprep.subr.bf16.mxu0 0
      %2004 = vmatpush1.bf16.msra.mxu0 %v1988
      %2005 = vmatprep.subr.bf16.mxu0 0
      %2006 = vmatpush1.bf16.msra.mxu0 0
      %2007 = vmatprep.subr.bf16.mxu0 0
      %2008 = vmatpush1.bf16.msra.mxu0 0
      %2009 = vmatprep.subr.bf16.mxu0 0
      %2010 = vmatpush1.bf16.msra.mxu0 0
      %2011 = vmatprep.subr.bf16.mxu0 0
      %2012 = vmatpush1.bf16.msra.mxu0 0
      %2013 = vmatprep.subr.bf16.mxu0 0
      %2014 = vmatpush1.bf16.msra.mxu0 0
      %2015 = vmatprep.subr.bf16.mxu0 0
      %2016 = vmatpush1.bf16.msra.mxu0 0
      %2017 = vmatprep.subr.bf16.mxu0 0
      %2018 = vmatpush1.bf16.msra.mxu0 0
      %2019 = vmatprep.subr.bf16.mxu0 0
      %2020 = vmatpush1.bf16.msra.mxu0 0
      %2021 = vmatprep.subr.bf16.mxu0 0
      %2022 = vmatpush1.bf16.msra.mxu0 0
      %2023 = vmatprep.subr.bf16.mxu0 0
      %2024 = vmatpush1.bf16.msra.mxu0 0
      %2025 = vmatprep.subr.bf16.mxu0 0
      %2026 = vmatpush1.bf16.msra.mxu0 0
      %2027 = vmatprep.subr.bf16.mxu0 0
      %2028 = vmatpush1.bf16.msra.mxu0 0
      %2029 = vmatprep.mubr.bf16.mxu0 0
      %2030 = vmatmul.mubr.bf16.gmra.mrb[0].mxu0 %v1995
      %v2031 = vpop.f32.mrb[0].mxu0
      %v2032 = vadd.f32 %v1967, %v2031
      %v2033 = vpop.f32.mrb[0].mxu0
      %v2034 = vpop.f32.mrb[0].mxu0
      %v2035 = vpop.f32.mrb[0].mxu0
      %2036 = vdwg.mxu0
      %v2037 = vadd.f32 %v1884, %v2032
      %vm2038 = vcmask 257024
      %v2039 = vsel %vm2038, %v2037, 0.0
      %2040 = vadd.xlane.f32.xlu0 %v2039
      %v2041 = vpop.xlane.xlu0 %2040
      %v2042 = vmul.f32 %v2041, %v1450
      %v2043 = vsub.f32 %v2037, %v2042
      %v2044 = vmul.f32 %v2043, %v2043
      %v2045 = vsel %vm2038, %v2044, 0.0
      %2046 = vadd.xlane.f32.xlu0 %v2045
      %v2047 = vpop.xlane.xlu0 %2046
      %v2048 = vmul.f32 %v2047, %v1450
      %v2049 = vadd.f32 %v2048, 1e-05
      %v2050 = vrsqrt.pop %v2049
      %v2051 = vmul.f32 %v2043, %v2050
      %v2052 = vld [vmem:[%s61] sm:$0x1]
      %v2054 = vlaneseq
      %v2055 = vshrl.u32 %v2054, 7
      %v2056 = vsub.s32 0, %v2055
      %v2057 = vrot.slane %v2052, %v2056
      %v2059 = vmul.f32 %v2051, %v2057
      %v2060 = vld [vmem:[%s63] sm:$0x1]
      %v2062 = vlaneseq
      %v2063 = vshrl.u32 %v2062, 7
      %v2064 = vsub.s32 0, %v2063
      %v2065 = vrot.slane %v2060, %v2064
      %v2067 = vadd.f32 %v2059, %v2065
      %v2068 = vld [vmem:[%s53] sm:$0xf]
      %v2069 = vld [vmem:[%s53 + $0x4] sm:$0xf]
      %v2070 = vld [vmem:[%s53 + $0x8] sm:$0xf]
      %v2071 = vld [vmem:[%s53 + $0xc] sm:$0xf]
      %v2072 = vld [vmem:[%s55] sm:$0x1]
      %v2074 = vlaneseq
      %v2075 = vshrl.u32 %v2074, 7
      %v2076 = vsub.s32 0, %v2075
      %v2077 = vrot.slane %v2072, %v2076
      %v2080 = vrot.slane %v1885, 2
      %v2085 = vunpack.c.l.b16 %v2068
      %v2086 = vunpack.c.l.b16 %v2069
      %v2087 = vunpack.c.l.b16 %v2070
      %v2088 = vunpack.c.l.b16 %v2071
      %v2089 = vpack.c.b16 %v2086, %v2085
      %v2090 = vpack.c.b16 %v2088, %v2087
      %v2094 = vsel %vm1446, %v2080, 0
      %2096 = vmatprep.subr.bf16.mxu0 0
      %2097 = vmatpush1.bf16.msra.mxu0 %v2089
      %2098 = vmatprep.subr.bf16.mxu0 0
      %2099 = vmatpush1.bf16.msra.mxu0 %v2090
      %2100 = vmatprep.subr.bf16.mxu0 0
      %2101 = vmatpush1.bf16.msra.mxu0 0
      %2102 = vmatprep.subr.bf16.mxu0 0
      %2103 = vmatpush1.bf16.msra.mxu0 0
      %2104 = vmatprep.subr.bf16.mxu0 0
      %2105 = vmatpush1.bf16.msra.mxu0 0
      %2106 = vmatprep.subr.bf16.mxu0 0
      %2107 = vmatpush1.bf16.msra.mxu0 0
      %2108 = vmatprep.subr.bf16.mxu0 0
      %2109 = vmatpush1.bf16.msra.mxu0 0
      %2110 = vmatprep.subr.bf16.mxu0 0
      %2111 = vmatpush1.bf16.msra.mxu0 0
      %2112 = vmatprep.subr.bf16.mxu0 0
      %2113 = vmatpush1.bf16.msra.mxu0 0
      %2114 = vmatprep.subr.bf16.mxu0 0
      %2115 = vmatpush1.bf16.msra.mxu0 0
      %2116 = vmatprep.subr.bf16.mxu0 0
      %2117 = vmatpush1.bf16.msra.mxu0 0
      %2118 = vmatprep.subr.bf16.mxu0 0
      %2119 = vmatpush1.bf16.msra.mxu0 0
      %2120 = vmatprep.subr.bf16.mxu0 0
      %2121 = vmatpush1.bf16.msra.mxu0 0
      %2122 = vmatprep.subr.bf16.mxu0 0
      %2123 = vmatpush1.bf16.msra.mxu0 0
      %2124 = vmatprep.subr.bf16.mxu0 0
      %2125 = vmatpush1.bf16.msra.mxu0 0
      %2126 = vmatprep.subr.bf16.mxu0 0
      %2127 = vmatpush1.bf16.msra.mxu0 0
      %2128 = vmatprep.mubr.bf16.mxu0 0
      %2129 = vmatmul.mubr.bf16.gmra.mrb[0].mxu0 %v2094
      %v2130 = vpop.f32.mrb[0].mxu0
      %v2131 = vadd.f32 %v2077, %v2130
      %v2132 = vpop.f32.mrb[0].mxu0
      %v2133 = vpop.f32.mrb[0].mxu0
      %v2134 = vpop.f32.mrb[0].mxu0
      %2135 = vdwg.mxu0
      %v2136 = vmax.f32 %v2131, 0.0
      %v2137 = vpack.c.bf16 %v2136, %v2136
      %v2138 = vld [vmem:[%s57] sm:$0xf]
      %v2139 = vld [vmem:[%s57 + $0x4] sm:$0xf]
      %v2140 = vld [vmem:[%s57 + $0x8] sm:$0xf]
      %v2141 = vld [vmem:[%s57 + $0xc] sm:$0xf]
      %v2142 = vld [vmem:[%s57 + $0x10] sm:$0xf]
      %v2143 = vld [vmem:[%s57 + $0x14] sm:$0xf]
      %v2144 = vld [vmem:[%s57 + $0x18] sm:$0xf]
      %v2145 = vld [vmem:[%s57 + $0x1c] sm:$0xf]
      %v2146 = vld [vmem:[%s59] sm:$0x1]
      %v2148 = vlaneseq
      %v2149 = vshrl.u32 %v2148, 7
      %v2150 = vsub.s32 0, %v2149
      %v2151 = vrot.slane %v2146, %v2150
      %v2161 = vunpack.c.l.b16 %v2138
      %v2162 = vunpack.c.l.b16 %v2139
      %v2163 = vunpack.c.l.b16 %v2140
      %v2164 = vunpack.c.l.b16 %v2141
      %v2165 = vunpack.c.l.b16 %v2142
      %v2166 = vunpack.c.l.b16 %v2143
      %v2167 = vunpack.c.l.b16 %v2144
      %v2168 = vunpack.c.l.b16 %v2145
      %v2169 = vpack.c.b16 %v2162, %v2161
      %v2170 = vpack.c.b16 %v2164, %v2163
      %v2171 = vpack.c.b16 %v2166, %v2165
      %v2172 = vpack.c.b16 %v2168, %v2167
      %v2178 = vsel %vm1993, %v2137, 0
      %2180 = vmatprep.subr.bf16.mxu0 0
      %2181 = vmatpush1.bf16.msra.mxu0 %v2169
      %2182 = vmatprep.subr.bf16.mxu0 0
      %2183 = vmatpush1.bf16.msra.mxu0 %v2170
      %2184 = vmatprep.subr.bf16.mxu0 0
      %2185 = vmatpush1.bf16.msra.mxu0 %v2171
      %2186 = vmatprep.subr.bf16.mxu0 0
      %2187 = vmatpush1.bf16.msra.mxu0 %v2172
      %2188 = vmatprep.subr.bf16.mxu0 0
      %2189 = vmatpush1.bf16.msra.mxu0 0
      %2190 = vmatprep.subr.bf16.mxu0 0
      %2191 = vmatpush1.bf16.msra.mxu0 0
      %2192 = vmatprep.subr.bf16.mxu0 0
      %2193 = vmatpush1.bf16.msra.mxu0 0
      %2194 = vmatprep.subr.bf16.mxu0 0
      %2195 = vmatpush1.bf16.msra.mxu0 0
      %2196 = vmatprep.subr.bf16.mxu0 0
      %2197 = vmatpush1.bf16.msra.mxu0 0
      %2198 = vmatprep.subr.bf16.mxu0 0
      %2199 = vmatpush1.bf16.msra.mxu0 0
      %2200 = vmatprep.subr.bf16.mxu0 0
      %2201 = vmatpush1.bf16.msra.mxu0 0
      %2202 = vmatprep.subr.bf16.mxu0 0
      %2203 = vmatpush1.bf16.msra.mxu0 0
      %2204 = vmatprep.subr.bf16.mxu0 0
      %2205 = vmatpush1.bf16.msra.mxu0 0
      %2206 = vmatprep.subr.bf16.mxu0 0
      %2207 = vmatpush1.bf16.msra.mxu0 0
      %2208 = vmatprep.subr.bf16.mxu0 0
      %2209 = vmatpush1.bf16.msra.mxu0 0
      %2210 = vmatprep.subr.bf16.mxu0 0
      %2211 = vmatpush1.bf16.msra.mxu0 0
      %2212 = vmatprep.mubr.bf16.mxu0 0
      %2213 = vmatmul.mubr.bf16.gmra.mrb[0].mxu0 %v2178
      %v2214 = vpop.f32.mrb[0].mxu0
      %v2215 = vadd.f32 %v2151, %v2214
      %v2216 = vpop.f32.mrb[0].mxu0
      %v2217 = vpop.f32.mrb[0].mxu0
      %v2218 = vpop.f32.mrb[0].mxu0
      %2219 = vdwg.mxu0
      %v2221 = vrot.slane %v2215, 4
      %v2223 = vadd.f32 %v1884, %v2221
      %vm2224 = vcmask 261124
      %v2225 = vsel %vm2224, %v2223, 0.0
      %2226 = vadd.xlane.f32.xlu0 %v2225
      %v2227 = vpop.xlane.xlu0 %2226
      %v2228 = vmul.f32 %v2227, %v1450
      %v2229 = vsub.f32 %v2223, %v2228
      %v2230 = vmul.f32 %v2229, %v2229
      %v2231 = vsel %vm2224, %v2230, 0.0
      %2232 = vadd.xlane.f32.xlu0 %v2231
      %v2233 = vpop.xlane.xlu0 %2232
      %v2234 = vmul.f32 %v2233, %v1450
      %v2235 = vadd.f32 %v2234, 1e-05
      %v2236 = vrsqrt.pop %v2235
      %v2237 = vmul.f32 %v2229, %v2236
      %v2238 = vld [vmem:[%s65] sm:$0x1]
      %v2240 = vlaneseq
      %v2241 = vshrl.u32 %v2240, 7
      %v2242 = vsub.s32 0, %v2241
      %v2243 = vrot.slane %v2238, %v2242
      %v2245 = vmul.f32 %v2237, %v2243
      %v2246 = vld [vmem:[%s67] sm:$0x1]
      %v2248 = vlaneseq
      %v2249 = vshrl.u32 %v2248, 7
      %v2250 = vsub.s32 0, %v2249
      %v2251 = vrot.slane %v2246, %v2250
      %v2253 = vadd.f32 %v2245, %v2251
      %2254 = vst.msk [vmem:[%s1059] sm:$0xf] %vm2038, %v2067
      %2255 = vst.msk [vmem:[%s1059] sm:$0xf0] %vm2224, %v2253
      %p2256 = scmp.lt.s32.totalorder %s80, 1
      %s2257 = scalar_select %p2256, %s80, 1
      %s2258 = smul.addr %s2257, 8
      %s2259 = scalar_lea.vmem %s69, %s2258
      // Predicated region
      $region171: #{decoder_layer_forward.1} parent=155 // pred_check
        %p2260 = pneg %p822
      $region172: #{decoder_layer_forward.1} parent=155 // pred_check_branch
        %2262 = sbr.rel (%p2260) target = $region174
      $region173: #{decoder_layer_forward.1} parent=155 // pred_region
        _
      $region174: #{decoder_layer_forward.1} parent=155 // pred_fallthru
        _
    $region156: #{decoder_layer_forward.1} parent=5 // pred_fallthru
      _
    %p2263 = scmp.le.s32.totalorder 2, %s75
    // Predicated region
    $region175: #{decoder_layer_forward.1} parent=5 // pred_check
      %p2264 = pneg %p2263
    $region176: #{decoder_layer_forward.1} parent=5 // pred_check_branch
      %2266 = sbr.rel (%p2264) target = $region178
    $region177: #{decoder_layer_forward.1} parent=5 // pred_region
      %s2267 = ssub.s32 %s75, 2
      // Predicated region
      $region179: #{decoder_layer_forward.1} parent=177 // pred_check
        %p2268 = pneg %p828
      $region180: #{decoder_layer_forward.1} parent=177 // pred_check_branch
        %2270 = sbr.rel (%p2268) target = $region182
      $region181: #{decoder_layer_forward.1} parent=177 // pred_region
        %p2271 = scmp.lt.s32.totalorder %s81, 1
        %s2272 = scalar_select %p2271, %s81, 1
        %s2273 = smul.addr %s2272, 8
        %s2274 = scalar_lea.vmem %s69, %s2273
      $region182: #{decoder_layer_forward.1} parent=177 // pred_fallthru
        _
    $region178: #{decoder_layer_forward.1} parent=5 // pred_fallthru
      _
  $region6: #{decoder_layer_forward.1} parent=0 // loop_footer
    %s79 = sadd.s32 1, %s75
  $region7: #{decoder_layer_forward.1} parent=0 // loop_footer_branch
    %74 = sbr.rel target = $region3
  $region8: #{decoder_layer_forward.1} parent=0 // loop_exit
    _

</llo_original>
